<compile_context>
chip_gen: v6e
topology: v6e:2x2x1
jax: 0.10.0
libtpu: 0.0.40
codegen_flags: <defaults>
</compile_context>

<pallas_src>
import jax
import jax.numpy as jnp
from jax.experimental import pallas as pl
from jax.experimental.pallas import tpu as pltpu

NEG_SLOPE = 0.01  # PyTorch nn.LeakyReLU default negative_slope
LANES = 128


def _round_up(x, m):
    return (x + m - 1) // m * m


def _pick_tm(m, target=1024):
    """Row tile: a divisor of m, multiple of 8, <= target.  Prefers an even
    grid count (v7x megacore split), then multiples of 16 (bf16 sublane
    packing), then the largest tile (fewer per-step overheads)."""
    cands = [t for t in range(8, min(m, target) + 1, 8) if m % t == 0]
    if not cands:
        return m

    def score(t):
        g = m // t
        return (int(g % 2 == 0 and g >= 2), int(t % 16 == 0), t)

    return max(cands, key=score)


def _pick_tk(k, target=2048):
    """Reduction tile for the fc head: largest multiple-of-128 divisor of k
    that is <= target (k is a multiple of 128 by construction)."""
    best = k
    t = LANES
    while t <= min(k, target):
        if k % t == 0:
            best = t
        t += LANES
    return best


# ----------------------------- Pallas kernels ------------------------------ #

def _mm_bias_leaky_kernel(x_ref, w_ref, b_ref, o_ref):
    # bf16 operands, f32 accumulation on the MXU, bf16 store.
    acc = jnp.dot(x_ref[...], w_ref[...], preferred_element_type=jnp.float32)
    acc = acc + b_ref[...]
    out = jnp.where(acc >= 0.0, acc, NEG_SLOPE * acc)
    o_ref[...] = out.astype(o_ref.dtype)


def matmul_bias_leaky(x, w, b_row):
    """bf16 out = leaky_relu(x @ w + b); tiled over M, weight kept resident."""
    M, K = x.shape
    N = w.shape[1]
    tm = _pick_tm(M)
    grid = (M // tm,)
    return pl.pallas_call(
        _mm_bias_leaky_kernel,
        out_shape=jax.ShapeDtypeStruct((M, N), jnp.bfloat16),
        grid=grid,
        in_specs=[pl.BlockSpec((tm, K), lambda i: (i, 0)),
                  pl.BlockSpec((K, N), lambda i: (0, 0)),
                  pl.BlockSpec((1, N), lambda i: (0, 0))],
        out_specs=pl.BlockSpec((tm, N), lambda i: (i, 0)),
        compiler_params=pltpu.CompilerParams(
            dimension_semantics=("parallel",)),
    )(x, w, b_row)


def _fc_head_kernel(x_ref, w1q_ref, s1_ref, xe_ref, we_ref, b1_ref,
                    w2_ref, b2_ref, o_ref, acc_ref):
    k = pl.program_id(0)

    @pl.when(k == 0)
    def _init():
        acc_ref[...] = jnp.zeros_like(acc_ref)

    # int8 fc1 weight block -> bf16 in VMEM (per-column scale folded into the
    # f32 accumulator at finalize).  Halves the dominant HBM weight stream.
    w1 = w1q_ref[...].astype(jnp.bfloat16)
    acc_ref[...] += jnp.dot(x_ref[...], w1, preferred_element_type=jnp.float32)

    @pl.when(k == pl.num_programs(0) - 1)
    def _finalize():
        # Dropout (p=0.1) is identity in eval mode.
        h = acc_ref[...] * s1_ref[...]                       # undo int8 scale
        h = h + jnp.dot(xe_ref[...], we_ref[...],            # features+label (f32)
                        preferred_element_type=jnp.float32)
        h = h + b1_ref[...]
        h = jnp.where(h >= 0.0, h, NEG_SLOPE * h)
        # 256 -> 1 projection as a VPU reduction (keeps the N=1 dot off the MXU).
        y = jnp.sum(h * w2_ref[...], axis=1, keepdims=True) + b2_ref[...]
        o_ref[...] = 1.0 / (1.0 + jnp.exp(-y))               # sigmoid


def fc_head(x_img, w1q, s1, xe, we, b1, w2_row, b2):
    """Fused Dropout->Linear->LeakyReLU->Dropout->Linear->Sigmoid head,
    K-tiled over the image features so the fc1 weight DMA pipelines with MXU."""
    M, K = x_img.shape
    N1 = w1q.shape[1]
    Ke = xe.shape[1]
    tk = _pick_tk(K)
    assert K % tk == 0, (K, tk)
    grid = (K // tk,)
    return pl.pallas_call(
        _fc_head_kernel,
        out_shape=jax.ShapeDtypeStruct((M, 1), jnp.float32),
        grid=grid,
        in_specs=[pl.BlockSpec((M, tk), lambda k: (0, k)),
                  pl.BlockSpec((tk, N1), lambda k: (k, 0)),
                  pl.BlockSpec((1, N1), lambda k: (0, 0)),
                  pl.BlockSpec((M, Ke), lambda k: (0, 0)),
                  pl.BlockSpec((Ke, N1), lambda k: (0, 0)),
                  pl.BlockSpec((1, N1), lambda k: (0, 0)),
                  pl.BlockSpec((1, N1), lambda k: (0, 0)),
                  pl.BlockSpec((1, 1), lambda k: (0, 0))],
        out_specs=pl.BlockSpec((M, 1), lambda k: (0, 0)),
        scratch_shapes=[pltpu.VMEM((M, N1), jnp.float32)],
        compiler_params=pltpu.CompilerParams(
            dimension_semantics=("arbitrary",)),
    )(x_img, w1q, s1, xe, we, b1, w2_row, b2)


# ------------------------------- JAX glue ---------------------------------- #

def _im2col(x, kh, kw, stride, k_pad):
    """x: (B,H,W,C) -> (B*OH*OW, k_pad) patches, channel-fastest feature order.
    The lane-pad of K is folded into the same concat (zeros slab), and the
    input is already bf16 so there is no extra pad/convert pass."""
    B, H, W, C = x.shape
    OH = (H - kh) // stride + 1
    OW = (W - kw) // stride + 1
    cols = []
    for i in range(kh):
        for j in range(kw):
            cols.append(x[:, i:i + stride * OH:stride,
                          j:j + stride * OW:stride, :])
    k = kh * kw * C
    if k_pad > k:
        cols.append(jnp.zeros((B, OH, OW, k_pad - k), x.dtype))
    patches = jnp.concatenate(cols, axis=-1)           # (B, OH, OW, k_pad)
    return patches.reshape(B * OH * OW, k_pad), B, OH, OW


def conv_block(x_nhwc, w, b, kh, kw, stride):
    """BN-folded Conv (im2col matmul) + bias + LeakyReLU, bf16 in / bf16 out."""
    patches, B, OH, OW = _im2col(x_nhwc, kh, kw, stride, w.shape[0])
    out = matmul_bias_leaky(patches, w, b)             # (B*OH*OW, Cout) bf16
    return out.reshape(B, OH, OW, w.shape[1])


def d2_forward(params, img_nchw, features, label):
    # conv1: BN(3) -> Conv(3->32, k5, s2) -> LeakyReLU : 64x64 -> 30x30
    x = jnp.transpose(img_nchw, (0, 2, 3, 1)).astype(jnp.bfloat16)  # NHWC bf16
    x = conv_block(x, params['c1_w'], params['c1_b'], 5, 5, 2)      # (B,30,30,32)
    # conv2: BN(32) -> Conv(32->64, k3, s2) -> LeakyReLU : 30x30 -> 14x14
    x = conv_block(x, params['c2_w'], params['c2_b'], 3, 3, 2)      # (B,14,14,64)
    B = x.shape[0]
    # NHWC flatten is a contiguous (free) reshape; fc1's image-weight rows were
    # permuted to NHWC order at setup so this matches PyTorch's NCHW flatten.
    x_img = x.reshape(B, -1)                                        # (B, 12544) bf16
    xe = jnp.concatenate([features, label], axis=1)                 # (B, 240) f32
    return fc_head(x_img, params['fc1_wq'], params['fc1_scale'], xe,
                   params['fc1_we'], params['fc1_b'],
                   params['fc2_w_row'], params['fc2_b'])            # (B, 1)


# --------------------------- parameter preparation -------------------------- #

def _fold_bn_conv(bn, conv):
    """Fold eval-mode BN (applied before conv) into conv weight/bias exactly."""
    gamma, beta, mean, var, eps = bn
    w, b = conv                                        # w: (Cout, Cin, kh, kw)
    scale = gamma / jnp.sqrt(var + eps)
    shift = beta - mean * scale
    w_fold = w * scale[None, :, None, None]
    b_fold = b + jnp.einsum('ocij,c->o', w, shift)
    return w_fold, b_fold


def prepare_params(p):
    """One-time setup: BN folding, im2col weight layout, lane padding, bf16
    casts, int8 compression of fc1's image rows, and the NCHW->NHWC row
    permutation of fc1.  Returns a dict of ARRAYS ONLY (jit-safe)."""

    def conv_mat(w_fold, b_fold):
        cout, cin, kh, kw = w_fold.shape
        # (kh, kw, cin, cout) row order matches the im2col feature order.
        w_mat = jnp.transpose(w_fold, (2, 3, 1, 0)).reshape(kh * kw * cin, cout)
        kp = _round_up(w_mat.shape[0], LANES)
        w_full = jnp.zeros((kp, cout), jnp.float32).at[:w_mat.shape[0]].set(w_mat)
        return w_full.astype(jnp.bfloat16), b_fold.reshape(1, cout).astype(jnp.float32)

    w1f, b1f = _fold_bn_conv(p['bn1'], p['conv1'])     # 3 -> 32, k5
    c1_w, c1_b = conv_mat(w1f, b1f)                    # (128, 32), (1, 32)
    w2f, b2f = _fold_bn_conv(p['bn2'], p['conv2'])     # 32 -> 64, k3
    c2_w, c2_b = conv_mat(w2f, b2f)                    # (384, 64), (1, 64)

    # FC head geometry: 64 -> (k5,s2) -> 30 -> (k3,s2) -> 14; C = 64.
    C, H, W = 64, 14, 14
    n_img = C * H * W                                  # 12544 (multiple of 128)

    w1, b1 = p['fc1']                                  # (12784, 226), (226,)
    w2, b2 = p['fc2']                                  # (226, 1), (1,)
    n1 = w1.shape[1]
    n1p = _round_up(n1, LANES)                         # 256

    # Image rows of fc1, permuted NCHW-flatten -> NHWC-flatten order, col-padded.
    w_img = jnp.transpose(w1[:n_img].reshape(C, H, W, n1),
                          (1, 2, 0, 3)).reshape(n_img, n1)
    w_img = jnp.zeros((n_img, n1p), jnp.float32).at[:, :n1].set(w_img)
    # int8 compression with per-output-column scales (dequantized in-kernel).
    amax = jnp.max(jnp.abs(w_img), axis=0)
    s1 = jnp.where(amax > 0, amax / 127.0, 1.0)
    w1q = jnp.clip(jnp.round(w_img / s1[None, :]), -127, 127).astype(jnp.int8)

    # features + label rows stay f32 (preserves precision of raw features/label).
    we = jnp.zeros((w1.shape[0] - n_img, n1p),
                   jnp.float32).at[:, :n1].set(w1[n_img:])
    b1_full = jnp.zeros((1, n1p), jnp.float32).at[0, :n1].set(b1)
    w2_row = jnp.zeros((1, n1p), jnp.float32).at[0, :n1].set(w2[:, 0])

    return {
        'c1_w': c1_w, 'c1_b': c1_b,
        'c2_w': c2_w, 'c2_b': c2_b,
        'fc1_wq': w1q,
        'fc1_scale': s1.reshape(1, n1p).astype(jnp.float32),
        'fc1_we': we, 'fc1_b': b1_full,
        'fc2_w_row': w2_row, 'fc2_b': b2.reshape(1, 1),
    }


# --------------------------- deterministic params --------------------------- #

def init_params(key):
    ks = jax.random.split(key, 8)

    def conv_p(k, cout, cin, kh, kw):
        k1, k2 = jax.random.split(k)
        bound = 1.0 / jnp.sqrt(cin * kh * kw)
        w = jax.random.uniform(k1, (cout, cin, kh, kw), jnp.float32, -bound, bound)
        b = jax.random.uniform(k2, (cout,), jnp.float32, -bound, bound)
        return w, b

    def bn_p(k, c):
        k1, k2, k3, k4 = jax.random.split(k, 4)
        gamma = 1.0 + 0.1 * jax.random.normal(k1, (c,), jnp.float32)
        beta = 0.1 * jax.random.normal(k2, (c,), jnp.float32)
        mean = 0.1 * jax.random.normal(k3, (c,), jnp.float32)
        var = 1.0 + 0.1 * jax.random.uniform(k4, (c,), jnp.float32)
        return gamma, beta, mean, var, 1e-5

    def lin_p(k, fin, fout):
        k1, k2 = jax.random.split(k)
        bound = 1.0 / jnp.sqrt(fin)
        w = jax.random.uniform(k1, (fin, fout), jnp.float32, -bound, bound)
        b = jax.random.uniform(k2, (fout,), jnp.float32, -bound, bound)
        return w, b

    # conv3/conv4/final_fc_cylinder/final_fc2 exist in __init__ but are unused
    # in forward(); not instantiated here.
    return {
        'bn1': bn_p(ks[0], 3),
        'conv1': conv_p(ks[1], 32, 3, 5, 5),
        'bn2': bn_p(ks[2], 32),
        'conv2': conv_p(ks[3], 64, 32, 3, 3),
        'fc1': lin_p(ks[4], 12784, 226),
        'fc2': lin_p(ks[5], 226, 1),
    }


if __name__ == "__main__":
    key = jax.random.PRNGKey(0)
    pk, ik, fk, lk = jax.random.split(key, 4)
    raw = init_params(pk)
    prep = prepare_params(raw)

    # D2.__forward_check requires (3, 64, 64) images; features (239) + label (1)
    # pad the flattened conv output (12544) up to final_fc's 12784 inputs.
    img = jax.random.normal(ik, (2, 3, 64, 64), jnp.float32)
    features = jax.random.normal(fk, (2, 239), jnp.float32)
    label = jax.random.normal(lk, (2, 1), jnp.float32)

    fwd = jax.jit(d2_forward)
    out = jax.block_until_ready(fwd(prep, img, features, label))
    assert out.shape == (2, 1), out.shape
    assert bool(jnp.all((out >= 0.0) & (out <= 1.0)))
    print("KERNEL_OK")
</pallas_src>

<mosaic_0001>
module attributes {stable_mosaic.version = 11 : i64} {
  func.func @_mm_bias_leaky_kernel(%arg0: i32, %arg1: memref<600x128xbf16, #tpu.memory_space<vmem>>, %arg2: memref<128x32xbf16, #tpu.memory_space<vmem>>, %arg3: memref<1x32xf32, #tpu.memory_space<vmem>>, %arg4: memref<600x32xbf16, #tpu.memory_space<vmem>>) attributes {dimension_semantics = [#tpu.dimension_semantics<parallel>], iteration_bounds = array<i64: 3>, scalar_prefetch = 0 : i64, scratch_operands = 0 : i64, tpu.core_type = #tpu.core_type<tc>, window_params = [{transform_indices = @transform_0, window_bounds = array<i64: 600, 128>}, {pipeline_mode = #tpu.pipeline_mode<synchronous>, transform_indices = @transform_1, window_bounds = array<i64: 128, 32>}, {pipeline_mode = #tpu.pipeline_mode<synchronous>, transform_indices = @transform_2, window_bounds = array<i64: 1, 32>}, {transform_indices = @transform_3, window_bounds = array<i64: 600, 32>}]} {
    %c0 = arith.constant 0 : index
    %c0_0 = arith.constant 0 : index
    %0 = vector.load %arg1[%c0, %c0_0] : memref<600x128xbf16, #tpu.memory_space<vmem>>, vector<600x128xbf16>
    %c0_1 = arith.constant 0 : index
    %c0_2 = arith.constant 0 : index
    %1 = vector.load %arg2[%c0_1, %c0_2] : memref<128x32xbf16, #tpu.memory_space<vmem>>, vector<128x32xbf16>
    %cst = arith.constant dense<0.000000e+00> : vector<600x32xf32>
    %2 = tpu.matmul %0, %1, %cst {dimension_numbers = #tpu.dot_dimension_numbers<[1], [0], [0], [1], [0, 0, 1, 1], [], []>} : vector<600x128xbf16>, vector<128x32xbf16>, vector<600x32xf32> -> vector<600x32xf32>
    %c0_3 = arith.constant 0 : index
    %c0_4 = arith.constant 0 : index
    %3 = vector.load %arg3[%c0_3, %c0_4] : memref<1x32xf32, #tpu.memory_space<vmem>>, vector<1x32xf32>
    %4 = vector.broadcast %3 : vector<1x32xf32> to vector<600x32xf32>
    %5 = arith.addf %2, %4 : vector<600x32xf32>
    %cst_5 = arith.constant 0.000000e+00 : f32
    %6 = vector.broadcast %cst_5 : f32 to vector<600x32xf32>
    %7 = arith.cmpf oge, %5, %6 : vector<600x32xf32>
    %cst_6 = arith.constant 0.00999999977 : f32
    %8 = vector.broadcast %cst_6 : f32 to vector<600x32xf32>
    %9 = arith.mulf %8, %5 : vector<600x32xf32>
    %10 = arith.select %7, %5, %9 : vector<600x32xi1>, vector<600x32xf32>
    %11 = arith.truncf %10 : vector<600x32xf32> to vector<600x32xbf16>
    %c0_7 = arith.constant 0 : index
    %c0_8 = arith.constant 0 : index
    %12 = vector.load %arg4[%c0_7, %c0_8] : memref<600x32xbf16, #tpu.memory_space<vmem>>, vector<600x32xbf16>
    tpu.vector_store %arg4[%c0_7, %c0_8], %11 {strides = array<i32>} : memref<600x32xbf16, #tpu.memory_space<vmem>>, vector<600x32xbf16>,
    return
  }
  func.func @transform_0(%arg0: i32) -> (i32, i32) {
    %c0_i32 = arith.constant 0 : i32
    %c0_i32_0 = arith.constant 0 : i32
    return %arg0, %c0_i32 : i32, i32
  }
  func.func @transform_1(%arg0: i32) -> (i32, i32) {
    %c0_i32 = arith.constant 0 : i32
    %c0_i32_0 = arith.constant 0 : i32
    %c0_i32_1 = arith.constant 0 : i32
    return %c0_i32, %c0_i32_0 : i32, i32
  }
  func.func @transform_2(%arg0: i32) -> (i32, i32) {
    %c0_i32 = arith.constant 0 : i32
    %c0_i32_0 = arith.constant 0 : i32
    %c0_i32_1 = arith.constant 0 : i32
    return %c0_i32, %c0_i32_0 : i32, i32
  }
  func.func @transform_3(%arg0: i32) -> (i32, i32) {
    %c0_i32 = arith.constant 0 : i32
    %c0_i32_0 = arith.constant 0 : i32
    return %arg0, %c0_i32 : i32, i32
  }
}

module attributes {stable_mosaic.version = 11 : i64} {
  func.func @_mm_bias_leaky_kernel(%arg0: i32, %arg1: memref<392x384xbf16, #tpu.memory_space<vmem>>, %arg2: memref<384x64xbf16, #tpu.memory_space<vmem>>, %arg3: memref<1x64xf32, #tpu.memory_space<vmem>>, %arg4: memref<392x64xbf16, #tpu.memory_space<vmem>>) attributes {dimension_semantics = [#tpu.dimension_semantics<parallel>], iteration_bounds = array<i64: 1>, scalar_prefetch = 0 : i64, scratch_operands = 0 : i64, tpu.core_type = #tpu.core_type<tc>, window_params = [{transform_indices = @transform_0, window_bounds = array<i64: 392, 384>}, {pipeline_mode = #tpu.pipeline_mode<synchronous>, transform_indices = @transform_1, window_bounds = array<i64: 384, 64>}, {pipeline_mode = #tpu.pipeline_mode<synchronous>, transform_indices = @transform_2, window_bounds = array<i64: 1, 64>}, {transform_indices = @transform_3, window_bounds = array<i64: 392, 64>}]} {
    %c0 = arith.constant 0 : index
    %c0_0 = arith.constant 0 : index
    %0 = vector.load %arg1[%c0, %c0_0] : memref<392x384xbf16, #tpu.memory_space<vmem>>, vector<392x384xbf16>
    %c0_1 = arith.constant 0 : index
    %c0_2 = arith.constant 0 : index
    %1 = vector.load %arg2[%c0_1, %c0_2] : memref<384x64xbf16, #tpu.memory_space<vmem>>, vector<384x64xbf16>
    %cst = arith.constant dense<0.000000e+00> : vector<392x64xf32>
    %2 = tpu.matmul %0, %1, %cst {dimension_numbers = #tpu.dot_dimension_numbers<[1], [0], [0], [1], [0, 0, 1, 1], [], []>} : vector<392x384xbf16>, vector<384x64xbf16>, vector<392x64xf32> -> vector<392x64xf32>
    %c0_3 = arith.constant 0 : index
    %c0_4 = arith.constant 0 : index
    %3 = vector.load %arg3[%c0_3, %c0_4] : memref<1x64xf32, #tpu.memory_space<vmem>>, vector<1x64xf32>
    %4 = vector.broadcast %3 : vector<1x64xf32> to vector<392x64xf32>
    %5 = arith.addf %2, %4 : vector<392x64xf32>
    %cst_5 = arith.constant 0.000000e+00 : f32
    %6 = vector.broadcast %cst_5 : f32 to vector<392x64xf32>
    %7 = arith.cmpf oge, %5, %6 : vector<392x64xf32>
    %cst_6 = arith.constant 0.00999999977 : f32
    %8 = vector.broadcast %cst_6 : f32 to vector<392x64xf32>
    %9 = arith.mulf %8, %5 : vector<392x64xf32>
    %10 = arith.select %7, %5, %9 : vector<392x64xi1>, vector<392x64xf32>
    %11 = arith.truncf %10 : vector<392x64xf32> to vector<392x64xbf16>
    %c0_7 = arith.constant 0 : index
    %c0_8 = arith.constant 0 : index
    %12 = vector.load %arg4[%c0_7, %c0_8] : memref<392x64xbf16, #tpu.memory_space<vmem>>, vector<392x64xbf16>
    tpu.vector_store %arg4[%c0_7, %c0_8], %11 {strides = array<i32>} : memref<392x64xbf16, #tpu.memory_space<vmem>>, vector<392x64xbf16>,
    return
  }
  func.func @transform_0(%arg0: i32) -> (i32, i32) {
    %c0_i32 = arith.constant 0 : i32
    %c0_i32_0 = arith.constant 0 : i32
    return %arg0, %c0_i32 : i32, i32
  }
  func.func @transform_1(%arg0: i32) -> (i32, i32) {
    %c0_i32 = arith.constant 0 : i32
    %c0_i32_0 = arith.constant 0 : i32
    %c0_i32_1 = arith.constant 0 : i32
    return %c0_i32, %c0_i32_0 : i32, i32
  }
  func.func @transform_2(%arg0: i32) -> (i32, i32) {
    %c0_i32 = arith.constant 0 : i32
    %c0_i32_0 = arith.constant 0 : i32
    %c0_i32_1 = arith.constant 0 : i32
    return %c0_i32, %c0_i32_0 : i32, i32
  }
  func.func @transform_3(%arg0: i32) -> (i32, i32) {
    %c0_i32 = arith.constant 0 : i32
    %c0_i32_0 = arith.constant 0 : i32
    return %arg0, %c0_i32 : i32, i32
  }
}

module attributes {stable_mosaic.version = 11 : i64} {
  func.func @_fc_head_kernel(%arg0: i32, %arg1: memref<2x1792xbf16, #tpu.memory_space<vmem>>, %arg2: memref<1792x256xi8, #tpu.memory_space<vmem>>, %arg3: memref<1x256xf32, #tpu.memory_space<vmem>>, %arg4: memref<2x240xf32, #tpu.memory_space<vmem>>, %arg5: memref<240x256xf32, #tpu.memory_space<vmem>>, %arg6: memref<1x256xf32, #tpu.memory_space<vmem>>, %arg7: memref<1x256xf32, #tpu.memory_space<vmem>>, %arg8: memref<1x1xf32, #tpu.memory_space<vmem>>, %arg9: memref<2x1xf32, #tpu.memory_space<vmem>>, %arg10: memref<2x256xf32, #tpu.memory_space<vmem>>) attributes {dimension_semantics = [#tpu.dimension_semantics<arbitrary>], iteration_bounds = array<i64: 7>, scalar_prefetch = 0 : i64, scratch_operands = 1 : i64, tpu.core_type = #tpu.core_type<tc>, window_params = [{transform_indices = @transform_0, window_bounds = array<i64: 2, 1792>}, {transform_indices = @transform_1, window_bounds = array<i64: 1792, 256>}, {pipeline_mode = #tpu.pipeline_mode<synchronous>, transform_indices = @transform_2, window_bounds = array<i64: 1, 256>}, {pipeline_mode = #tpu.pipeline_mode<synchronous>, transform_indices = @transform_3, window_bounds = array<i64: 2, 240>}, {pipeline_mode = #tpu.pipeline_mode<synchronous>, transform_indices = @transform_4, window_bounds = array<i64: 240, 256>}, {pipeline_mode = #tpu.pipeline_mode<synchronous>, transform_indices = @transform_5, window_bounds = array<i64: 1, 256>}, {pipeline_mode = #tpu.pipeline_mode<synchronous>, transform_indices = @transform_6, window_bounds = array<i64: 1, 256>}, {pipeline_mode = #tpu.pipeline_mode<synchronous>, transform_indices = @transform_7, window_bounds = array<i64: 1, 1>}, {pipeline_mode = #tpu.pipeline_mode<synchronous>, transform_indices = @transform_8, window_bounds = array<i64: 2, 1>}]} {
    %c0_i32 = arith.constant 0 : i32
    %0 = arith.cmpi eq, %arg0, %c0_i32 : i32
    %1 = arith.extui %0 : i1 to i32
    %c0_i32_0 = arith.constant 0 : i32
    %2 = arith.cmpi ne, %1, %c0_i32_0 : i32
    scf.if %2 {
      %cst_9 = arith.constant 0.000000e+00 : f32
      %13 = vector.broadcast %cst_9 : f32 to vector<2x256xf32>
      %c0_10 = arith.constant 0 : index
      %c0_11 = arith.constant 0 : index
      %14 = vector.load %arg10[%c0_10, %c0_11] : memref<2x256xf32, #tpu.memory_space<vmem>>, vector<2x256xf32>
      tpu.vector_store %arg10[%c0_10, %c0_11], %13 {strides = array<i32>} : memref<2x256xf32, #tpu.memory_space<vmem>>, vector<2x256xf32>,
    } else {
    }
    %c0 = arith.constant 0 : index
    %c0_1 = arith.constant 0 : index
    %3 = vector.load %arg2[%c0, %c0_1] : memref<1792x256xi8, #tpu.memory_space<vmem>>, vector<1792x256xi8>
    %4 = arith.sitofp %3 : vector<1792x256xi8> to vector<1792x256xbf16>
    %c0_2 = arith.constant 0 : index
    %c0_3 = arith.constant 0 : index
    %5 = vector.load %arg10[%c0_2, %c0_3] : memref<2x256xf32, #tpu.memory_space<vmem>>, vector<2x256xf32>
    %c0_4 = arith.constant 0 : index
    %c0_5 = arith.constant 0 : index
    %6 = vector.load %arg1[%c0_4, %c0_5] : memref<2x1792xbf16, #tpu.memory_space<vmem>>, vector<2x1792xbf16>
    %cst = arith.constant dense<0.000000e+00> : vector<2x256xf32>
    %7 = tpu.matmul %6, %4, %cst {dimension_numbers = #tpu.dot_dimension_numbers<[1], [0], [0], [1], [0, 0, 1, 1], [], []>} : vector<2x1792xbf16>, vector<1792x256xbf16>, vector<2x256xf32> -> vector<2x256xf32>
    %8 = arith.addf %5, %7 : vector<2x256xf32>
    %c0_6 = arith.constant 0 : index
    %c0_7 = arith.constant 0 : index
    %9 = vector.load %arg10[%c0_6, %c0_7] : memref<2x256xf32, #tpu.memory_space<vmem>>, vector<2x256xf32>
    tpu.vector_store %arg10[%c0_6, %c0_7], %8 {strides = array<i32>} : memref<2x256xf32, #tpu.memory_space<vmem>>, vector<2x256xf32>,
    %c6_i32 = arith.constant 6 : i32
    %10 = arith.cmpi eq, %arg0, %c6_i32 : i32
    %11 = arith.extui %10 : i1 to i32
    %c0_i32_8 = arith.constant 0 : i32
    %12 = arith.cmpi ne, %11, %c0_i32_8 : i32
    scf.if %12 {
      %c0_9 = arith.constant 0 : index
      %c0_10 = arith.constant 0 : index
      %13 = vector.load %arg10[%c0_9, %c0_10] : memref<2x256xf32, #tpu.memory_space<vmem>>, vector<2x256xf32>
      %c0_11 = arith.constant 0 : index
      %c0_12 = arith.constant 0 : index
      %14 = vector.load %arg3[%c0_11, %c0_12] : memref<1x256xf32, #tpu.memory_space<vmem>>, vector<1x256xf32>
      %15 = vector.broadcast %14 : vector<1x256xf32> to vector<2x256xf32>
      %16 = arith.mulf %13, %15 : vector<2x256xf32>
      %c0_13 = arith.constant 0 : index
      %c0_14 = arith.constant 0 : index
      %17 = vector.load %arg4[%c0_13, %c0_14] : memref<2x240xf32, #tpu.memory_space<vmem>>, vector<2x240xf32>
      %c0_15 = arith.constant 0 : index
      %c0_16 = arith.constant 0 : index
      %18 = vector.load %arg5[%c0_15, %c0_16] : memref<240x256xf32, #tpu.memory_space<vmem>>, vector<240x256xf32>
      %cst_17 = arith.constant dense<0.000000e+00> : vector<2x256xf32>
      %19 = tpu.matmul %17, %18, %cst_17 {dimension_numbers = #tpu.dot_dimension_numbers<[1], [0], [0], [1], [0, 0, 1, 1], [], []>} : vector<2x240xf32>, vector<240x256xf32>, vector<2x256xf32> -> vector<2x256xf32>
      %20 = arith.addf %16, %19 : vector<2x256xf32>
      %c0_18 = arith.constant 0 : index
      %c0_19 = arith.constant 0 : index
      %21 = vector.load %arg6[%c0_18, %c0_19] : memref<1x256xf32, #tpu.memory_space<vmem>>, vector<1x256xf32>
      %22 = vector.broadcast %21 : vector<1x256xf32> to vector<2x256xf32>
      %23 = arith.addf %20, %22 : vector<2x256xf32>
      %cst_20 = arith.constant 0.000000e+00 : f32
      %24 = vector.broadcast %cst_20 : f32 to vector<2x256xf32>
      %25 = arith.cmpf oge, %23, %24 : vector<2x256xf32>
      %cst_21 = arith.constant 0.00999999977 : f32
      %26 = vector.broadcast %cst_21 : f32 to vector<2x256xf32>
      %27 = arith.mulf %26, %23 : vector<2x256xf32>
      %28 = arith.select %25, %23, %27 : vector<2x256xi1>, vector<2x256xf32>
      %c0_22 = arith.constant 0 : index
      %c0_23 = arith.constant 0 : index
      %29 = vector.load %arg7[%c0_22, %c0_23] : memref<1x256xf32, #tpu.memory_space<vmem>>, vector<1x256xf32>
      %30 = vector.broadcast %29 : vector<1x256xf32> to vector<2x256xf32>
      %31 = arith.mulf %28, %30 : vector<2x256xf32>
      %cst_24 = arith.constant dense<0.000000e+00> : vector<2xf32>
      %32 = vector.multi_reduction <add>, %31, %cst_24 [1] : vector<2x256xf32> to vector<2xf32>
      %33 = vector.shape_cast %32 : vector<2xf32> to vector<2x1xf32>
      %c0_25 = arith.constant 0 : index
      %c0_26 = arith.constant 0 : index
      %34 = vector.load %arg8[%c0_25, %c0_26] : memref<1x1xf32, #tpu.memory_space<vmem>>, vector<1x1xf32>
      %35 = vector.broadcast %34 : vector<1x1xf32> to vector<2x1xf32>
      %36 = arith.addf %33, %35 : vector<2x1xf32>
      %cst_27 = arith.constant 0.000000e+00 : f32
      %37 = vector.broadcast %cst_27 : f32 to vector<2x1xf32>
      %38 = arith.subf %37, %36 : vector<2x1xf32>
      %39 = math.exp %38 : vector<2x1xf32>
      %cst_28 = arith.constant 1.000000e+00 : f32
      %40 = vector.broadcast %cst_28 : f32 to vector<2x1xf32>
      %41 = arith.addf %40, %39 : vector<2x1xf32>
      %cst_29 = arith.constant 1.000000e+00 : f32
      %42 = vector.broadcast %cst_29 : f32 to vector<2x1xf32>
      %43 = arith.divf %42, %41 : vector<2x1xf32>
      %c0_30 = arith.constant 0 : index
      %c0_31 = arith.constant 0 : index
      %44 = vector.load %arg9[%c0_30, %c0_31] : memref<2x1xf32, #tpu.memory_space<vmem>>, vector<2x1xf32>
      tpu.vector_store %arg9[%c0_30, %c0_31], %43 {strides = array<i32>} : memref<2x1xf32, #tpu.memory_space<vmem>>, vector<2x1xf32>,
    } else {
    }
    return
  }
  func.func @transform_0(%arg0: i32) -> (i32, i32) {
    %c0_i32 = arith.constant 0 : i32
    %c0_i32_0 = arith.constant 0 : i32
    return %c0_i32, %arg0 : i32, i32
  }
  func.func @transform_1(%arg0: i32) -> (i32, i32) {
    %c0_i32 = arith.constant 0 : i32
    %c0_i32_0 = arith.constant 0 : i32
    return %arg0, %c0_i32 : i32, i32
  }
  func.func @transform_2(%arg0: i32) -> (i32, i32) {
    %c0_i32 = arith.constant 0 : i32
    %c0_i32_0 = arith.constant 0 : i32
    %c0_i32_1 = arith.constant 0 : i32
    return %c0_i32, %c0_i32_0 : i32, i32
  }
  func.func @transform_3(%arg0: i32) -> (i32, i32) {
    %c0_i32 = arith.constant 0 : i32
    %c0_i32_0 = arith.constant 0 : i32
    %c0_i32_1 = arith.constant 0 : i32
    return %c0_i32, %c0_i32_0 : i32, i32
  }
  func.func @transform_4(%arg0: i32) -> (i32, i32) {
    %c0_i32 = arith.constant 0 : i32
    %c0_i32_0 = arith.constant 0 : i32
    %c0_i32_1 = arith.constant 0 : i32
    return %c0_i32, %c0_i32_0 : i32, i32
  }
  func.func @transform_5(%arg0: i32) -> (i32, i32) {
    %c0_i32 = arith.constant 0 : i32
    %c0_i32_0 = arith.constant 0 : i32
    %c0_i32_1 = arith.constant 0 : i32
    return %c0_i32, %c0_i32_0 : i32, i32
  }
  func.func @transform_6(%arg0: i32) -> (i32, i32) {
    %c0_i32 = arith.constant 0 : i32
    %c0_i32_0 = arith.constant 0 : i32
    %c0_i32_1 = arith.constant 0 : i32
    return %c0_i32, %c0_i32_0 : i32, i32
  }
  func.func @transform_7(%arg0: i32) -> (i32, i32) {
    %c0_i32 = arith.constant 0 : i32
    %c0_i32_0 = arith.constant 0 : i32
    %c0_i32_1 = arith.constant 0 : i32
    return %c0_i32, %c0_i32_0 : i32, i32
  }
  func.func @transform_8(%arg0: i32) -> (i32, i32) {
    %c0_i32 = arith.constant 0 : i32
    %c0_i32_0 = arith.constant 0 : i32
    %c0_i32_1 = arith.constant 0 : i32
    return %c0_i32, %c0_i32_0 : i32, i32
  }
}

</mosaic_0001>

<llo_original>
// kernel: d2_forward.3
$region0: #{d2_forward.3}
  #allocation0 [shape = 'u32[]', space=smem, size = 0x4, offset = 0x4, fixed_abs, tag = 'smem constant byte address 0x4 - core index']
  #allocation1 [shape = 'u32[144,128]{1,0:T(1,128)}', space=vmem, size = 0x12000, scoped, tag = 'internal scratch']
  %s0 = inlined_call_operand.vmem [shape: bf16[1800,128], index: 0, kind: input, shape index: {}]
  %s1 = inlined_call_operand.vmem [shape: bf16[128,32], index: 1, kind: input, shape index: {}]
  %s2 = inlined_call_operand.vmem [shape: f32[1,32], index: 2, kind: input, shape index: {}]
  %s3 = inlined_call_operand.vmem [shape: bf16[1800,32], index: 3, kind: output, shape index: {}]
  %s4 = sld [smem:[#allocation0]]
  $region45: #{d2_forward.3} parent=0
    _
  %s6 = ssub.s32 1, %s4
  %s7 = scalar_select 0, %s6, %s4
  loop: start=0, step=1, limit=5
  $region2: #{d2_forward.3} parent=0 // loop_pre_header
    _
  $region3: #{d2_forward.3} parent=0 // loop_header
    %s9 = sphi 0, %s13
    %p10 = scmp.ge.s32.totalorder %s9, 5
    %s19 = sphi 0, %s21
    %s22 = sphi 0, %s19
    %s23 = sphi 0, %s22
    %s39 = sphi 0, %s23
    %s43 = sphi 0, %s43
    %s45 = sphi 0, %s43
    %s46 = sphi 0, %s45
    %s60 = sphi 0, %s46
    %s64 = sphi 0, %s64
    %s66 = sphi 0, %s64
    %s67 = sphi 0, %s66
    %s81 = sphi 0, %s67
    %s87 = sphi 0, %s89
    %s90 = sphi 0, %s87
    %s91 = sphi 0, %s90
    %s107 = sphi 0, %s91
  $region4: #{d2_forward.3} parent=0 // loop_header_branch
    %12 = sbr.rel (%p10) target = $region8
  $region5: #{d2_forward.3} parent=0 // loop_body
    %s14 = ssub.s32 %s9, 1
    %s15 = ssub.s32 %s9, 2
    %s16 = sadd.s32 %s9, 1
    %s17 = ssub.s32 %s9, %s16
    %p18 = scmp.eq.s32.totalorder %s17, 0
    %s20 = sadd.s32 %s19, 1
    %s21 = scalar_select %p18, %s19, %s20
    %p24 = pneg %p18
    %p25 = scmp.eq.s32.totalorder %s9, 2
    %p26 = por %p24, %p25
    %p27 = scmp.ne.s32.totalorder %s19, %s22
    %p28 = scmp.eq.s32.totalorder %s9, 0
    %p29 = por %p27, %p28
    %p30 = scmp.ne.s32.totalorder %s19, %s22
    %p31 = scmp.eq.s32.totalorder %s14, 2
    %p32 = por %p30, %p31
    %p33 = scmp.ne.s32.totalorder %s22, %s23
    %p34 = scmp.eq.s32.totalorder %s14, 0
    %p35 = por %p33, %p34
    %p36 = scmp.ne.s32.totalorder %s22, %s23
    %p37 = scmp.eq.s32.totalorder %s15, 2
    %p38 = por %p36, %p37
    %p40 = scmp.ne.s32.totalorder %s23, %s39
    %p41 = scmp.eq.s32.totalorder %s15, 0
    %p42 = por %p40, %p41
    %s44 = sadd.s32 %s43, 1
    %p47 = scmp.eq.s32.totalorder %s9, 2
    %p48 = scmp.ne.s32.totalorder %s43, %s45
    %p49 = scmp.eq.s32.totalorder %s9, 0
    %p50 = por %p48, %p49
    %p51 = scmp.ne.s32.totalorder %s43, %s45
    %p52 = scmp.eq.s32.totalorder %s14, 2
    %p53 = por %p51, %p52
    %p54 = scmp.ne.s32.totalorder %s45, %s46
    %p55 = scmp.eq.s32.totalorder %s14, 0
    %p56 = por %p54, %p55
    %p57 = scmp.ne.s32.totalorder %s45, %s46
    %p58 = scmp.eq.s32.totalorder %s15, 2
    %p59 = por %p57, %p58
    %p61 = scmp.ne.s32.totalorder %s46, %s60
    %p62 = scmp.eq.s32.totalorder %s15, 0
    %p63 = por %p61, %p62
    %s65 = sadd.s32 %s64, 1
    %p68 = scmp.eq.s32.totalorder %s9, 2
    %p69 = scmp.ne.s32.totalorder %s64, %s66
    %p70 = scmp.eq.s32.totalorder %s9, 0
    %p71 = por %p69, %p70
    %p72 = scmp.ne.s32.totalorder %s64, %s66
    %p73 = scmp.eq.s32.totalorder %s14, 2
    %p74 = por %p72, %p73
    %p75 = scmp.ne.s32.totalorder %s66, %s67
    %p76 = scmp.eq.s32.totalorder %s14, 0
    %p77 = por %p75, %p76
    %p78 = scmp.ne.s32.totalorder %s66, %s67
    %p79 = scmp.eq.s32.totalorder %s15, 2
    %p80 = por %p78, %p79
    %p82 = scmp.ne.s32.totalorder %s67, %s81
    %p83 = scmp.eq.s32.totalorder %s15, 0
    %p84 = por %p82, %p83
    %s85 = ssub.s32 %s9, %s16
    %p86 = scmp.eq.s32.totalorder %s85, 0
    %s88 = sadd.s32 %s87, 1
    %s89 = scalar_select %p86, %s87, %s88
    %p92 = pneg %p86
    %p93 = scmp.eq.s32.totalorder %s9, 2
    %p94 = por %p92, %p93
    %p95 = scmp.ne.s32.totalorder %s87, %s90
    %p96 = scmp.eq.s32.totalorder %s9, 0
    %p97 = por %p95, %p96
    %p98 = scmp.ne.s32.totalorder %s87, %s90
    %p99 = scmp.eq.s32.totalorder %s14, 2
    %p100 = por %p98, %p99
    %p101 = scmp.ne.s32.totalorder %s90, %s91
    %p102 = scmp.eq.s32.totalorder %s14, 0
    %p103 = por %p101, %p102
    %p104 = scmp.ne.s32.totalorder %s90, %s91
    %p105 = scmp.eq.s32.totalorder %s15, 2
    %p106 = por %p104, %p105
    %p108 = scmp.ne.s32.totalorder %s91, %s107
    %p109 = scmp.eq.s32.totalorder %s15, 0
    %p110 = por %p108, %p109
    %p111 = scmp.le.s32.totalorder 1, %s9
    %p112 = scmp.lt.s32.totalorder %s9, 4
    %p113 = pnand %p111, %p112
    %p114 = pneg %p113
    // Predicated region
    $region9: #{d2_forward.3} parent=5 // pred_check
      _
    $region10: #{d2_forward.3} parent=5 // pred_check_branch
      %116 = sbr.rel (%p113) target = $region12
    $region11: #{d2_forward.3} parent=5 // pred_region
      %s117 = ssub.s32 %s9, 1
      // Predicated region
      $region13: #{d2_forward.3} parent=11 // pred_check
        %p118 = pneg %p56
      $region14: #{d2_forward.3} parent=11 // pred_check_branch
        %120 = sbr.rel (%p118) target = $region16
      $region15: #{d2_forward.3} parent=11 // pred_region
        _
      $region16: #{d2_forward.3} parent=11 // pred_fallthru
        _
      // Predicated region
      $region17: #{d2_forward.3} parent=11 // pred_check
        %p121 = pneg %p77
      $region18: #{d2_forward.3} parent=11 // pred_check_branch
        %123 = sbr.rel (%p121) target = $region20
      $region19: #{d2_forward.3} parent=11 // pred_region
        _
      $region20: #{d2_forward.3} parent=11 // pred_fallthru
        _
    $region12: #{d2_forward.3} parent=5 // pred_fallthru
      _
    %p124 = scmp.lt.s32.totalorder %s9, 3
    // Predicated region
    $region21: #{d2_forward.3} parent=5 // pred_check
      %p125 = pneg %p124
    $region22: #{d2_forward.3} parent=5 // pred_check_branch
      %127 = sbr.rel (%p125) target = $region24
    $region23: #{d2_forward.3} parent=5 // pred_region
      // Predicated region
      $region25: #{d2_forward.3} parent=23 // pred_check
        %p128 = pneg %p29
      $region26: #{d2_forward.3} parent=23 // pred_check_branch
        %130 = sbr.rel (%p128) target = $region28
      $region27: #{d2_forward.3} parent=23 // pred_region
        %s131 = smul.u32 75, %s9
        %p132 = scmp.lt.s32.totalorder %s131, 224
        %s133 = scalar_select %p132, %s131, 224
        %s134 = smul.addr %s133, 4
        %s135 = scalar_lea.vmem %s0, %s134
        %s136 = smul.u32 75, %s9
      $region28: #{d2_forward.3} parent=23 // pred_fallthru
        _
    $region24: #{d2_forward.3} parent=5 // pred_fallthru
      _
    %p137 = scmp.le.s32.totalorder 1, %s9
    %p138 = scmp.lt.s32.totalorder %s9, 4
    %p139 = pnand %p137, %p138
    %p140 = pneg %p139
    // Predicated region
    $region29: #{d2_forward.3} parent=5 // pred_check
      _
    $region30: #{d2_forward.3} parent=5 // pred_check_branch
      %142 = sbr.rel (%p139) target = $region32
    $region31: #{d2_forward.3} parent=5 // pred_region
      %s143 = ssub.s32 %s9, 1
      %s144 = smul.u32 75, %s14
      %p145 = scmp.lt.s32.totalorder %s144, 224
      %s146 = scalar_select %p145, %s144, 224
      %s147 = smul.addr %s146, 4
      %s148 = scalar_lea.vmem %s0, %s147
      %p149 = pneg %p35
      %p150 = pneg %p32
      %p151 = pneg %p56
      %p152 = pneg %p53
      %p153 = pneg %p77
      %p154 = pneg %p74
      %p155 = pneg %p103
      %p156 = pneg %p100
      %s157 = smul.u32 75, %s14
      %p158 = scmp.lt.s32.totalorder %s157, 224
      %s159 = scalar_select %p158, %s157, 224
      %s160 = smul.addr %s159, 4
      %s161 = scalar_lea.vmem %s3, %s160
      %s162 = smul.u32 75, %s14
      %p163 = scmp.lt.s32.totalorder %s162, 224
      %s164 = scalar_select %p163, %s162, 224
      %s165 = smul.addr %s164, 4
      %s166 = scalar_lea.vmem %s0, %s165
      %s167 = smul.u32 75, %s14
      %s168 = smul.u32 75, %s14
      %p169 = scmp.lt.s32.totalorder %s168, 224
      %s170 = scalar_select %p169, %s168, 224
      %s171 = smul.addr %s170, 4
      %s172 = scalar_lea.vmem %s3, %s171
      %s173 = smul.u32 75, %s14
      %v175 = vld [vmem:[%s166] sm:$0xf]
      %v176 = vld [vmem:[%s166 + $0x4] sm:$0xf]
      %v177 = vld [vmem:[%s166 + $0x8] sm:$0xf]
      %v178 = vld [vmem:[%s166 + $0xc] sm:$0xf]
      %v179 = vld [vmem:[%s166 + $0x10] sm:$0xf]
      %v180 = vld [vmem:[%s166 + $0x14] sm:$0xf]
      %v181 = vld [vmem:[%s166 + $0x18] sm:$0xf]
      %v182 = vld [vmem:[%s166 + $0x1c] sm:$0xf]
      %v183 = vld [vmem:[%s166 + $0x20] sm:$0xf]
      %v184 = vld [vmem:[%s166 + $0x24] sm:$0xf]
      %v185 = vld [vmem:[%s166 + $0x28] sm:$0xf]
      %v186 = vld [vmem:[%s166 + $0x2c] sm:$0xf]
      %v187 = vld [vmem:[%s166 + $0x30] sm:$0xf]
      %v188 = vld [vmem:[%s166 + $0x34] sm:$0xf]
      %v189 = vld [vmem:[%s166 + $0x38] sm:$0xf]
      %v190 = vld [vmem:[%s166 + $0x3c] sm:$0xf]
      %v191 = vld [vmem:[%s166 + $0x40] sm:$0xf]
      %v192 = vld [vmem:[%s166 + $0x44] sm:$0xf]
      %v193 = vld [vmem:[%s166 + $0x48] sm:$0xf]
      %v194 = vld [vmem:[%s166 + $0x4c] sm:$0xf]
      %v195 = vld [vmem:[%s166 + $0x50] sm:$0xf]
      %v196 = vld [vmem:[%s166 + $0x54] sm:$0xf]
      %v197 = vld [vmem:[%s166 + $0x58] sm:$0xf]
      %v198 = vld [vmem:[%s166 + $0x5c] sm:$0xf]
      %v199 = vld [vmem:[%s166 + $0x60] sm:$0xf]
      %v200 = vld [vmem:[%s166 + $0x64] sm:$0xf]
      %v201 = vld [vmem:[%s166 + $0x68] sm:$0xf]
      %v202 = vld [vmem:[%s166 + $0x6c] sm:$0xf]
      %v203 = vld [vmem:[%s166 + $0x70] sm:$0xf]
      %v204 = vld [vmem:[%s166 + $0x74] sm:$0xf]
      %v205 = vld [vmem:[%s166 + $0x78] sm:$0xf]
      %v206 = vld [vmem:[%s166 + $0x7c] sm:$0xf]
      %v207 = vld [vmem:[%s166 + $0x80] sm:$0xf]
      %v208 = vld [vmem:[%s166 + $0x84] sm:$0xf]
      %v209 = vld [vmem:[%s166 + $0x88] sm:$0xf]
      %v210 = vld [vmem:[%s166 + $0x8c] sm:$0xf]
      %v211 = vld [vmem:[%s166 + $0x90] sm:$0xf]
      %v212 = vld [vmem:[%s166 + $0x94] sm:$0xf]
      %v213 = vld [vmem:[%s166 + $0x98] sm:$0xf]
      %v214 = vld [vmem:[%s166 + $0x9c] sm:$0xf]
      %v215 = vld [vmem:[%s166 + $0xa0] sm:$0xf]
      %v216 = vld [vmem:[%s166 + $0xa4] sm:$0xf]
      %v217 = vld [vmem:[%s166 + $0xa8] sm:$0xf]
      %v218 = vld [vmem:[%s166 + $0xac] sm:$0xf]
      %v219 = vld [vmem:[%s166 + $0xb0] sm:$0xf]
      %v220 = vld [vmem:[%s166 + $0xb4] sm:$0xf]
      %v221 = vld [vmem:[%s166 + $0xb8] sm:$0xf]
      %v222 = vld [vmem:[%s166 + $0xbc] sm:$0xf]
      %v223 = vld [vmem:[%s166 + $0xc0] sm:$0xf]
      %v224 = vld [vmem:[%s166 + $0xc4] sm:$0xf]
      %v225 = vld [vmem:[%s166 + $0xc8] sm:$0xf]
      %v226 = vld [vmem:[%s166 + $0xcc] sm:$0xf]
      %v227 = vld [vmem:[%s166 + $0xd0] sm:$0xf]
      %v228 = vld [vmem:[%s166 + $0xd4] sm:$0xf]
      %v229 = vld [vmem:[%s166 + $0xd8] sm:$0xf]
      %v230 = vld [vmem:[%s166 + $0xdc] sm:$0xf]
      %v231 = vld [vmem:[%s166 + $0xe0] sm:$0xf]
      %v232 = vld [vmem:[%s166 + $0xe4] sm:$0xf]
      %v233 = vld [vmem:[%s166 + $0xe8] sm:$0xf]
      %v234 = vld [vmem:[%s166 + $0xec] sm:$0xf]
      %v235 = vld [vmem:[%s166 + $0xf0] sm:$0xf]
      %v236 = vld [vmem:[%s166 + $0xf4] sm:$0xf]
      %v237 = vld [vmem:[%s166 + $0xf8] sm:$0xf]
      %v238 = vld [vmem:[%s166 + $0xfc] sm:$0xf]
      %v239 = vld [vmem:[%s166 + $0x100] sm:$0xf]
      %v240 = vld [vmem:[%s166 + $0x104] sm:$0xf]
      %v241 = vld [vmem:[%s166 + $0x108] sm:$0xf]
      %v242 = vld [vmem:[%s166 + $0x10c] sm:$0xf]
      %v243 = vld [vmem:[%s166 + $0x110] sm:$0xf]
      %v244 = vld [vmem:[%s166 + $0x114] sm:$0xf]
      %v245 = vld [vmem:[%s166 + $0x118] sm:$0xf]
      %v246 = vld [vmem:[%s166 + $0x11c] sm:$0xf]
      %v247 = vld [vmem:[%s166 + $0x120] sm:$0xf]
      %v248 = vld [vmem:[%s166 + $0x124] sm:$0xf]
      %v249 = vld [vmem:[%s166 + $0x128] sm:$0xf]
      %v250 = vld [vmem:[%s1] sm:$0xf]
      %v251 = vld [vmem:[%s1 + $0x4] sm:$0xf]
      %v252 = vld [vmem:[%s1 + $0x8] sm:$0xf]
      %v253 = vld [vmem:[%s1 + $0xc] sm:$0xf]
      %v254 = vld [vmem:[%s1 + $0x10] sm:$0xf]
      %v255 = vld [vmem:[%s1 + $0x14] sm:$0xf]
      %v256 = vld [vmem:[%s1 + $0x18] sm:$0xf]
      %v257 = vld [vmem:[%s1 + $0x1c] sm:$0xf]
      %v258 = vld [vmem:[%s1 + $0x20] sm:$0xf]
      %v259 = vld [vmem:[%s1 + $0x24] sm:$0xf]
      %v260 = vld [vmem:[%s1 + $0x28] sm:$0xf]
      %v261 = vld [vmem:[%s1 + $0x2c] sm:$0xf]
      %v262 = vld [vmem:[%s1 + $0x30] sm:$0xf]
      %v263 = vld [vmem:[%s1 + $0x34] sm:$0xf]
      %v264 = vld [vmem:[%s1 + $0x38] sm:$0xf]
      %v265 = vld [vmem:[%s1 + $0x3c] sm:$0xf]
      %v266 = vld [vmem:[%s2] sm:$0x1]
      %v268 = vlaneseq
      %v269 = vshrl.u32 %v268, 7
      %v270 = vsub.s32 0, %v269
      %v271 = vrot.slane %v266, %v270
      %v348 = vunpack.c.l.b16 %v175
      %v349 = vunpack.c.l.b16 %v176
      %v350 = vunpack.c.l.b16 %v177
      %v351 = vunpack.c.l.b16 %v178
      %v352 = vunpack.c.l.b16 %v179
      %v353 = vunpack.c.l.b16 %v180
      %v354 = vunpack.c.l.b16 %v181
      %v355 = vunpack.c.l.b16 %v182
      %v356 = vunpack.c.l.b16 %v183
      %v357 = vunpack.c.l.b16 %v184
      %v358 = vunpack.c.l.b16 %v185
      %v359 = vunpack.c.l.b16 %v186
      %v360 = vunpack.c.l.b16 %v187
      %v361 = vunpack.c.l.b16 %v188
      %v362 = vunpack.c.l.b16 %v189
      %v363 = vunpack.c.l.b16 %v190
      %v364 = vunpack.c.l.b16 %v191
      %v365 = vunpack.c.l.b16 %v192
      %v366 = vunpack.c.l.b16 %v193
      %v367 = vunpack.c.l.b16 %v194
      %v368 = vunpack.c.l.b16 %v195
      %v369 = vunpack.c.l.b16 %v196
      %v370 = vunpack.c.l.b16 %v197
      %v371 = vunpack.c.l.b16 %v198
      %v372 = vunpack.c.l.b16 %v199
      %v373 = vunpack.c.l.b16 %v200
      %v374 = vunpack.c.l.b16 %v201
      %v375 = vunpack.c.l.b16 %v202
      %v376 = vunpack.c.l.b16 %v203
      %v377 = vunpack.c.l.b16 %v204
      %v378 = vunpack.c.l.b16 %v205
      %v379 = vunpack.c.l.b16 %v206
      %v380 = vunpack.c.l.b16 %v207
      %v381 = vunpack.c.l.b16 %v208
      %v382 = vunpack.c.l.b16 %v209
      %v383 = vunpack.c.l.b16 %v210
      %v384 = vunpack.c.l.b16 %v211
      %v385 = vunpack.c.l.b16 %v212
      %v386 = vunpack.c.l.b16 %v213
      %v387 = vunpack.c.l.b16 %v214
      %v388 = vunpack.c.l.b16 %v215
      %v389 = vunpack.c.l.b16 %v216
      %v390 = vunpack.c.l.b16 %v217
      %v391 = vunpack.c.l.b16 %v218
      %v392 = vunpack.c.l.b16 %v219
      %v393 = vunpack.c.l.b16 %v220
      %v394 = vunpack.c.l.b16 %v221
      %v395 = vunpack.c.l.b16 %v222
      %v396 = vunpack.c.l.b16 %v223
      %v397 = vunpack.c.l.b16 %v224
      %v398 = vunpack.c.l.b16 %v225
      %v399 = vunpack.c.l.b16 %v226
      %v400 = vunpack.c.l.b16 %v227
      %v401 = vunpack.c.l.b16 %v228
      %v402 = vunpack.c.l.b16 %v229
      %v403 = vunpack.c.l.b16 %v230
      %v404 = vunpack.c.l.b16 %v231
      %v405 = vunpack.c.l.b16 %v232
      %v406 = vunpack.c.l.b16 %v233
      %v407 = vunpack.c.l.b16 %v234
      %v408 = vunpack.c.l.b16 %v235
      %v409 = vunpack.c.l.b16 %v236
      %v410 = vunpack.c.l.b16 %v237
      %v411 = vunpack.c.l.b16 %v238
      %v412 = vunpack.c.l.b16 %v239
      %v413 = vunpack.c.l.b16 %v240
      %v414 = vunpack.c.l.b16 %v241
      %v415 = vunpack.c.l.b16 %v242
      %v416 = vunpack.c.l.b16 %v243
      %v417 = vunpack.c.l.b16 %v244
      %v418 = vunpack.c.l.b16 %v245
      %v419 = vunpack.c.l.b16 %v246
      %v420 = vunpack.c.l.b16 %v247
      %v421 = vunpack.c.l.b16 %v248
      %v422 = vunpack.c.l.b16 %v249
      %v423 = vpack.c.b16 %v349, %v348
      %v424 = vpack.c.b16 %v351, %v350
      %v425 = vpack.c.b16 %v353, %v352
      %v426 = vpack.c.b16 %v355, %v354
      %v427 = vpack.c.b16 %v357, %v356
      %v428 = vpack.c.b16 %v359, %v358
      %v429 = vpack.c.b16 %v361, %v360
      %v430 = vpack.c.b16 %v363, %v362
      %v431 = vpack.c.b16 %v365, %v364
      %v432 = vpack.c.b16 %v367, %v366
      %v433 = vpack.c.b16 %v369, %v368
      %v434 = vpack.c.b16 %v371, %v370
      %v435 = vpack.c.b16 %v373, %v372
      %v436 = vpack.c.b16 %v375, %v374
      %v437 = vpack.c.b16 %v377, %v376
      %v438 = vpack.c.b16 %v379, %v378
      %v439 = vpack.c.b16 %v381, %v380
      %v440 = vpack.c.b16 %v383, %v382
      %v441 = vpack.c.b16 %v385, %v384
      %v442 = vpack.c.b16 %v387, %v386
      %v443 = vpack.c.b16 %v389, %v388
      %v444 = vpack.c.b16 %v391, %v390
      %v445 = vpack.c.b16 %v393, %v392
      %v446 = vpack.c.b16 %v395, %v394
      %v447 = vpack.c.b16 %v397, %v396
      %v448 = vpack.c.b16 %v399, %v398
      %v449 = vpack.c.b16 %v401, %v400
      %v450 = vpack.c.b16 %v403, %v402
      %v451 = vpack.c.b16 %v405, %v404
      %v452 = vpack.c.b16 %v407, %v406
      %v453 = vpack.c.b16 %v409, %v408
      %v454 = vpack.c.b16 %v411, %v410
      %v455 = vpack.c.b16 %v413, %v412
      %v456 = vpack.c.b16 %v415, %v414
      %v457 = vpack.c.b16 %v417, %v416
      %v458 = vpack.c.b16 %v419, %v418
      %v459 = vpack.c.b16 %v421, %v420
      %v460 = vpack.c.b16 %v422, %v422
      %v515 = vunpack.c.l.b16 %v250
      %v516 = vunpack.c.l.b16 %v251
      %v517 = vunpack.c.l.b16 %v252
      %v518 = vunpack.c.l.b16 %v253
      %v519 = vunpack.c.l.b16 %v254
      %v520 = vunpack.c.l.b16 %v255
      %v521 = vunpack.c.l.b16 %v256
      %v522 = vunpack.c.l.b16 %v257
      %v523 = vunpack.c.l.b16 %v258
      %v524 = vunpack.c.l.b16 %v259
      %v525 = vunpack.c.l.b16 %v260
      %v526 = vunpack.c.l.b16 %v261
      %v527 = vunpack.c.l.b16 %v262
      %v528 = vunpack.c.l.b16 %v263
      %v529 = vunpack.c.l.b16 %v264
      %v530 = vunpack.c.l.b16 %v265
      %v531 = vpack.c.b16 %v516, %v515
      %v532 = vpack.c.b16 %v518, %v517
      %v533 = vpack.c.b16 %v520, %v519
      %v534 = vpack.c.b16 %v522, %v521
      %v535 = vpack.c.b16 %v524, %v523
      %v536 = vpack.c.b16 %v526, %v525
      %v537 = vpack.c.b16 %v528, %v527
      %v538 = vpack.c.b16 %v530, %v529
      %547 = vmatprep.subr.bf16.mxu0 0
      %548 = vmatpush1.bf16.msra.mxu0 %v538
      %549 = vmatprep.subr.bf16.mxu0 0
      %550 = vmatpush1.bf16.msra.mxu0 %v537
      %551 = vmatprep.subr.bf16.mxu0 0
      %552 = vmatpush1.bf16.msra.mxu0 %v536
      %553 = vmatprep.subr.bf16.mxu0 0
      %554 = vmatpush1.bf16.msra.mxu0 %v535
      %555 = vmatprep.subr.bf16.mxu0 0
      %556 = vmatpush1.bf16.msra.mxu0 %v534
      %557 = vmatprep.subr.bf16.mxu0 0
      %558 = vmatpush1.bf16.msra.mxu0 %v533
      %559 = vmatprep.subr.bf16.mxu0 0
      %560 = vmatpush1.bf16.msra.mxu0 %v532
      %561 = vmatprep.subr.bf16.mxu0 0
      %562 = vmatpush1.bf16.msra.mxu0 %v531
      %563 = vmatprep.subr.bf16.mxu0 0
      %564 = vmatpush2.bf16.msra.mxu0 0
      %565 = vmatprep.subr.bf16.mxu0 0
      %566 = vmatpush2.bf16.msra.mxu0 0
      %567 = vmatprep.subr.bf16.mxu0 0
      %568 = vmatpush2.bf16.msra.mxu0 0
      %569 = vmatprep.subr.bf16.mxu0 0
      %570 = vmatpush2.bf16.msra.mxu0 0
      %571 = vmatprep.subr.bf16.mxu0 0
      %572 = vmatpush2.bf16.msra.mxu0 0
      %573 = vmatprep.subr.bf16.mxu0 0
      %574 = vmatpush2.bf16.msra.mxu0 0
      %575 = vmatprep.subr.bf16.mxu0 0
      %576 = vmatpush2.bf16.msra.mxu0 0
      %577 = vmatprep.subr.bf16.mxu0 0
      %578 = vmatpush2.bf16.msra.mxu0 0
      %579 = vmatprep.mubr.bf16.mxu0 0
      %580 = vmatmul.mubr.bf16.gmra.mxu0 %v423
      %v581 = vpop.f32.mrf.mxu0
      %v582 = vadd.f32 %v271, %v581
      %v583 = vpop.f32.mrf.mxu0
      %v584 = vpop.f32.mrf.mxu0
      %v585 = vadd.f32 %v271, %v584
      %v586 = vpop.f32.mrf.mxu0
      %587 = vmatprep.mubr.bf16.mxu0 0
      %588 = vmatmul.mubr.bf16.gmra.mxu0 %v424
      %v589 = vpop.f32.mrf.mxu0
      %v590 = vadd.f32 %v271, %v589
      %v591 = vpop.f32.mrf.mxu0
      %v592 = vpop.f32.mrf.mxu0
      %v593 = vadd.f32 %v271, %v592
      %v594 = vpop.f32.mrf.mxu0
      %595 = vmatprep.mubr.bf16.mxu0 0
      %596 = vmatmul.mubr.bf16.gmra.mxu0 %v425
      %v597 = vpop.f32.mrf.mxu0
      %v598 = vadd.f32 %v271, %v597
      %v599 = vpop.f32.mrf.mxu0
      %v600 = vpop.f32.mrf.mxu0
      %v601 = vadd.f32 %v271, %v600
      %v602 = vpop.f32.mrf.mxu0
      %603 = vmatprep.mubr.bf16.mxu0 0
      %604 = vmatmul.mubr.bf16.gmra.mxu0 %v426
      %v605 = vpop.f32.mrf.mxu0
      %v606 = vadd.f32 %v271, %v605
      %v607 = vpop.f32.mrf.mxu0
      %v608 = vpop.f32.mrf.mxu0
      %v609 = vadd.f32 %v271, %v608
      %v610 = vpop.f32.mrf.mxu0
      %611 = vmatprep.mubr.bf16.mxu0 0
      %612 = vmatmul.mubr.bf16.gmra.mxu0 %v427
      %v613 = vpop.f32.mrf.mxu0
      %v614 = vadd.f32 %v271, %v613
      %v615 = vpop.f32.mrf.mxu0
      %v616 = vpop.f32.mrf.mxu0
      %v617 = vadd.f32 %v271, %v616
      %v618 = vpop.f32.mrf.mxu0
      %619 = vmatprep.mubr.bf16.mxu0 0
      %620 = vmatmul.mubr.bf16.gmra.mxu0 %v428
      %v621 = vpop.f32.mrf.mxu0
      %v622 = vadd.f32 %v271, %v621
      %v623 = vpop.f32.mrf.mxu0
      %v624 = vpop.f32.mrf.mxu0
      %v625 = vadd.f32 %v271, %v624
      %v626 = vpop.f32.mrf.mxu0
      %627 = vmatprep.mubr.bf16.mxu0 0
      %628 = vmatmul.mubr.bf16.gmra.mxu0 %v429
      %v629 = vpop.f32.mrf.mxu0
      %v630 = vadd.f32 %v271, %v629
      %v631 = vpop.f32.mrf.mxu0
      %v632 = vpop.f32.mrf.mxu0
      %v633 = vadd.f32 %v271, %v632
      %v634 = vpop.f32.mrf.mxu0
      %635 = vmatprep.mubr.bf16.mxu0 0
      %636 = vmatmul.mubr.bf16.gmra.mxu0 %v430
      %v637 = vpop.f32.mrf.mxu0
      %v638 = vadd.f32 %v271, %v637
      %v639 = vpop.f32.mrf.mxu0
      %v640 = vpop.f32.mrf.mxu0
      %v641 = vadd.f32 %v271, %v640
      %v642 = vpop.f32.mrf.mxu0
      %643 = vmatprep.mubr.bf16.mxu0 0
      %644 = vmatmul.mubr.bf16.gmra.mxu0 %v431
      %v645 = vpop.f32.mrf.mxu0
      %v646 = vadd.f32 %v271, %v645
      %v647 = vpop.f32.mrf.mxu0
      %v648 = vpop.f32.mrf.mxu0
      %v649 = vadd.f32 %v271, %v648
      %v650 = vpop.f32.mrf.mxu0
      %651 = vmatprep.mubr.bf16.mxu0 0
      %652 = vmatmul.mubr.bf16.gmra.mxu0 %v432
      %v653 = vpop.f32.mrf.mxu0
      %v654 = vadd.f32 %v271, %v653
      %v655 = vpop.f32.mrf.mxu0
      %v656 = vpop.f32.mrf.mxu0
      %v657 = vadd.f32 %v271, %v656
      %v658 = vpop.f32.mrf.mxu0
      %659 = vmatprep.mubr.bf16.mxu0 0
      %660 = vmatmul.mubr.bf16.gmra.mxu0 %v433
      %v661 = vpop.f32.mrf.mxu0
      %v662 = vadd.f32 %v271, %v661
      %v663 = vpop.f32.mrf.mxu0
      %v664 = vpop.f32.mrf.mxu0
      %v665 = vadd.f32 %v271, %v664
      %v666 = vpop.f32.mrf.mxu0
      %667 = vmatprep.mubr.bf16.mxu0 0
      %668 = vmatmul.mubr.bf16.gmra.mxu0 %v434
      %v669 = vpop.f32.mrf.mxu0
      %v670 = vadd.f32 %v271, %v669
      %v671 = vpop.f32.mrf.mxu0
      %v672 = vpop.f32.mrf.mxu0
      %v673 = vadd.f32 %v271, %v672
      %v674 = vpop.f32.mrf.mxu0
      %675 = vmatprep.mubr.bf16.mxu0 0
      %676 = vmatmul.mubr.bf16.gmra.mxu0 %v435
      %v677 = vpop.f32.mrf.mxu0
      %v678 = vadd.f32 %v271, %v677
      %v679 = vpop.f32.mrf.mxu0
      %v680 = vpop.f32.mrf.mxu0
      %v681 = vadd.f32 %v271, %v680
      %v682 = vpop.f32.mrf.mxu0
      %683 = vmatprep.mubr.bf16.mxu0 0
      %684 = vmatmul.mubr.bf16.gmra.mxu0 %v436
      %v685 = vpop.f32.mrf.mxu0
      %v686 = vadd.f32 %v271, %v685
      %v687 = vpop.f32.mrf.mxu0
      %v688 = vpop.f32.mrf.mxu0
      %v689 = vadd.f32 %v271, %v688
      %v690 = vpop.f32.mrf.mxu0
      %691 = vmatprep.mubr.bf16.mxu0 0
      %692 = vmatmul.mubr.bf16.gmra.mxu0 %v437
      %v693 = vpop.f32.mrf.mxu0
      %v694 = vadd.f32 %v271, %v693
      %v695 = vpop.f32.mrf.mxu0
      %v696 = vpop.f32.mrf.mxu0
      %v697 = vadd.f32 %v271, %v696
      %v698 = vpop.f32.mrf.mxu0
      %699 = vmatprep.mubr.bf16.mxu0 0
      %700 = vmatmul.mubr.bf16.gmra.mxu0 %v438
      %v701 = vpop.f32.mrf.mxu0
      %v702 = vadd.f32 %v271, %v701
      %v703 = vpop.f32.mrf.mxu0
      %v704 = vpop.f32.mrf.mxu0
      %v705 = vadd.f32 %v271, %v704
      %v706 = vpop.f32.mrf.mxu0
      %707 = vmatprep.mubr.bf16.mxu0 0
      %708 = vmatmul.mubr.bf16.gmra.mxu0 %v439
      %v709 = vpop.f32.mrf.mxu0
      %v710 = vadd.f32 %v271, %v709
      %v711 = vpop.f32.mrf.mxu0
      %v712 = vpop.f32.mrf.mxu0
      %v713 = vadd.f32 %v271, %v712
      %v714 = vpop.f32.mrf.mxu0
      %715 = vmatprep.mubr.bf16.mxu0 0
      %716 = vmatmul.mubr.bf16.gmra.mxu0 %v440
      %v717 = vpop.f32.mrf.mxu0
      %v718 = vadd.f32 %v271, %v717
      %v719 = vpop.f32.mrf.mxu0
      %v720 = vpop.f32.mrf.mxu0
      %v721 = vadd.f32 %v271, %v720
      %v722 = vpop.f32.mrf.mxu0
      %723 = vmatprep.mubr.bf16.mxu0 0
      %724 = vmatmul.mubr.bf16.gmra.mxu0 %v441
      %v725 = vpop.f32.mrf.mxu0
      %v726 = vadd.f32 %v271, %v725
      %v727 = vpop.f32.mrf.mxu0
      %v728 = vpop.f32.mrf.mxu0
      %v729 = vadd.f32 %v271, %v728
      %v730 = vpop.f32.mrf.mxu0
      %731 = vmatprep.mubr.bf16.mxu0 0
      %732 = vmatmul.mubr.bf16.gmra.mxu0 %v442
      %v733 = vpop.f32.mrf.mxu0
      %v734 = vadd.f32 %v271, %v733
      %v735 = vpop.f32.mrf.mxu0
      %v736 = vpop.f32.mrf.mxu0
      %v737 = vadd.f32 %v271, %v736
      %v738 = vpop.f32.mrf.mxu0
      %739 = vmatprep.mubr.bf16.mxu0 0
      %740 = vmatmul.mubr.bf16.gmra.mxu0 %v443
      %v741 = vpop.f32.mrf.mxu0
      %v742 = vadd.f32 %v271, %v741
      %v743 = vpop.f32.mrf.mxu0
      %v744 = vpop.f32.mrf.mxu0
      %v745 = vadd.f32 %v271, %v744
      %v746 = vpop.f32.mrf.mxu0
      %747 = vmatprep.mubr.bf16.mxu0 0
      %748 = vmatmul.mubr.bf16.gmra.mxu0 %v444
      %v749 = vpop.f32.mrf.mxu0
      %v750 = vadd.f32 %v271, %v749
      %v751 = vpop.f32.mrf.mxu0
      %v752 = vpop.f32.mrf.mxu0
      %v753 = vadd.f32 %v271, %v752
      %v754 = vpop.f32.mrf.mxu0
      %755 = vmatprep.mubr.bf16.mxu0 0
      %756 = vmatmul.mubr.bf16.gmra.mxu0 %v445
      %v757 = vpop.f32.mrf.mxu0
      %v758 = vadd.f32 %v271, %v757
      %v759 = vpop.f32.mrf.mxu0
      %v760 = vpop.f32.mrf.mxu0
      %v761 = vadd.f32 %v271, %v760
      %v762 = vpop.f32.mrf.mxu0
      %763 = vmatprep.mubr.bf16.mxu0 0
      %764 = vmatmul.mubr.bf16.gmra.mxu0 %v446
      %v765 = vpop.f32.mrf.mxu0
      %v766 = vadd.f32 %v271, %v765
      %v767 = vpop.f32.mrf.mxu0
      %v768 = vpop.f32.mrf.mxu0
      %v769 = vadd.f32 %v271, %v768
      %v770 = vpop.f32.mrf.mxu0
      %771 = vmatprep.mubr.bf16.mxu0 0
      %772 = vmatmul.mubr.bf16.gmra.mxu0 %v447
      %v773 = vpop.f32.mrf.mxu0
      %v774 = vadd.f32 %v271, %v773
      %v775 = vpop.f32.mrf.mxu0
      %v776 = vpop.f32.mrf.mxu0
      %v777 = vadd.f32 %v271, %v776
      %v778 = vpop.f32.mrf.mxu0
      %779 = vmatprep.mubr.bf16.mxu0 0
      %780 = vmatmul.mubr.bf16.gmra.mxu0 %v448
      %v781 = vpop.f32.mrf.mxu0
      %v782 = vadd.f32 %v271, %v781
      %v783 = vpop.f32.mrf.mxu0
      %v784 = vpop.f32.mrf.mxu0
      %v785 = vadd.f32 %v271, %v784
      %v786 = vpop.f32.mrf.mxu0
      %787 = vmatprep.mubr.bf16.mxu0 0
      %788 = vmatmul.mubr.bf16.gmra.mxu0 %v449
      %v789 = vpop.f32.mrf.mxu0
      %v790 = vadd.f32 %v271, %v789
      %v791 = vpop.f32.mrf.mxu0
      %v792 = vpop.f32.mrf.mxu0
      %v793 = vadd.f32 %v271, %v792
      %v794 = vpop.f32.mrf.mxu0
      %795 = vmatprep.mubr.bf16.mxu0 0
      %796 = vmatmul.mubr.bf16.gmra.mxu0 %v450
      %v797 = vpop.f32.mrf.mxu0
      %v798 = vadd.f32 %v271, %v797
      %v799 = vpop.f32.mrf.mxu0
      %v800 = vpop.f32.mrf.mxu0
      %v801 = vadd.f32 %v271, %v800
      %v802 = vpop.f32.mrf.mxu0
      %803 = vmatprep.mubr.bf16.mxu0 0
      %804 = vmatmul.mubr.bf16.gmra.mxu0 %v451
      %v805 = vpop.f32.mrf.mxu0
      %v806 = vadd.f32 %v271, %v805
      %v807 = vpop.f32.mrf.mxu0
      %v808 = vpop.f32.mrf.mxu0
      %v809 = vadd.f32 %v271, %v808
      %v810 = vpop.f32.mrf.mxu0
      %811 = vmatprep.mubr.bf16.mxu0 0
      %812 = vmatmul.mubr.bf16.gmra.mxu0 %v452
      %v813 = vpop.f32.mrf.mxu0
      %v814 = vadd.f32 %v271, %v813
      %v815 = vpop.f32.mrf.mxu0
      %v816 = vpop.f32.mrf.mxu0
      %v817 = vadd.f32 %v271, %v816
      %v818 = vpop.f32.mrf.mxu0
      %819 = vmatprep.mubr.bf16.mxu0 0
      %820 = vmatmul.mubr.bf16.gmra.mxu0 %v453
      %v821 = vpop.f32.mrf.mxu0
      %v822 = vadd.f32 %v271, %v821
      %v823 = vpop.f32.mrf.mxu0
      %v824 = vpop.f32.mrf.mxu0
      %v825 = vadd.f32 %v271, %v824
      %v826 = vpop.f32.mrf.mxu0
      %827 = vmatprep.mubr.bf16.mxu0 0
      %828 = vmatmul.mubr.bf16.gmra.mxu0 %v454
      %v829 = vpop.f32.mrf.mxu0
      %v830 = vadd.f32 %v271, %v829
      %v831 = vpop.f32.mrf.mxu0
      %v832 = vpop.f32.mrf.mxu0
      %v833 = vadd.f32 %v271, %v832
      %v834 = vpop.f32.mrf.mxu0
      %835 = vmatprep.mubr.bf16.mxu0 0
      %836 = vmatmul.mubr.bf16.gmra.mxu0 %v455
      %v837 = vpop.f32.mrf.mxu0
      %v838 = vadd.f32 %v271, %v837
      %v839 = vpop.f32.mrf.mxu0
      %v840 = vpop.f32.mrf.mxu0
      %v841 = vadd.f32 %v271, %v840
      %v842 = vpop.f32.mrf.mxu0
      %843 = vmatprep.mubr.bf16.mxu0 0
      %844 = vmatmul.mubr.bf16.gmra.mxu0 %v456
      %v845 = vpop.f32.mrf.mxu0
      %v846 = vadd.f32 %v271, %v845
      %v847 = vpop.f32.mrf.mxu0
      %v848 = vpop.f32.mrf.mxu0
      %v849 = vadd.f32 %v271, %v848
      %v850 = vpop.f32.mrf.mxu0
      %851 = vmatprep.mubr.bf16.mxu0 0
      %852 = vmatmul.mubr.bf16.gmra.mxu0 %v457
      %v853 = vpop.f32.mrf.mxu0
      %v854 = vadd.f32 %v271, %v853
      %v855 = vpop.f32.mrf.mxu0
      %v856 = vpop.f32.mrf.mxu0
      %v857 = vadd.f32 %v271, %v856
      %v858 = vpop.f32.mrf.mxu0
      %859 = vmatprep.mubr.bf16.mxu0 0
      %860 = vmatmul.mubr.bf16.gmra.mxu0 %v458
      %v861 = vpop.f32.mrf.mxu0
      %v862 = vadd.f32 %v271, %v861
      %v863 = vpop.f32.mrf.mxu0
      %v864 = vpop.f32.mrf.mxu0
      %v865 = vadd.f32 %v271, %v864
      %v866 = vpop.f32.mrf.mxu0
      %867 = vmatprep.mubr.bf16.mxu0 0
      %868 = vmatmul.mubr.bf16.gmra.mxu0 %v459
      %v869 = vpop.f32.mrf.mxu0
      %v870 = vadd.f32 %v271, %v869
      %v871 = vpop.f32.mrf.mxu0
      %v872 = vpop.f32.mrf.mxu0
      %v873 = vadd.f32 %v271, %v872
      %v874 = vpop.f32.mrf.mxu0
      %875 = vmatprep.mubr.bf16.mxu0 0
      %876 = vmatmul.mubr.bf16.gmra.mxu0 %v460
      %v877 = vpop.f32.mrf.mxu0
      %v878 = vadd.f32 %v271, %v877
      %v879 = vpop.f32.mrf.mxu0
      %v880 = vpop.f32.mrf.mxu0
      %v881 = vpop.f32.mrf.mxu0
      %882 = vdwg.mxu0
      %vm883 = vcmp.ge.f32.partialorder %v582, 0.0
      %vm884 = vcmp.ge.f32.partialorder %v585, 0.0
      %vm885 = vcmp.ge.f32.partialorder %v590, 0.0
      %vm886 = vcmp.ge.f32.partialorder %v593, 0.0
      %vm887 = vcmp.ge.f32.partialorder %v598, 0.0
      %vm888 = vcmp.ge.f32.partialorder %v601, 0.0
      %vm889 = vcmp.ge.f32.partialorder %v606, 0.0
      %vm890 = vcmp.ge.f32.partialorder %v609, 0.0
      %vm891 = vcmp.ge.f32.partialorder %v614, 0.0
      %vm892 = vcmp.ge.f32.partialorder %v617, 0.0
      %vm893 = vcmp.ge.f32.partialorder %v622, 0.0
      %vm894 = vcmp.ge.f32.partialorder %v625, 0.0
      %vm895 = vcmp.ge.f32.partialorder %v630, 0.0
      %vm896 = vcmp.ge.f32.partialorder %v633, 0.0
      %vm897 = vcmp.ge.f32.partialorder %v638, 0.0
      %vm898 = vcmp.ge.f32.partialorder %v641, 0.0
      %vm899 = vcmp.ge.f32.partialorder %v646, 0.0
      %vm900 = vcmp.ge.f32.partialorder %v649, 0.0
      %vm901 = vcmp.ge.f32.partialorder %v654, 0.0
      %vm902 = vcmp.ge.f32.partialorder %v657, 0.0
      %vm903 = vcmp.ge.f32.partialorder %v662, 0.0
      %vm904 = vcmp.ge.f32.partialorder %v665, 0.0
      %vm905 = vcmp.ge.f32.partialorder %v670, 0.0
      %vm906 = vcmp.ge.f32.partialorder %v673, 0.0
      %vm907 = vcmp.ge.f32.partialorder %v678, 0.0
      %vm908 = vcmp.ge.f32.partialorder %v681, 0.0
      %vm909 = vcmp.ge.f32.partialorder %v686, 0.0
      %vm910 = vcmp.ge.f32.partialorder %v689, 0.0
      %vm911 = vcmp.ge.f32.partialorder %v694, 0.0
      %vm912 = vcmp.ge.f32.partialorder %v697, 0.0
      %vm913 = vcmp.ge.f32.partialorder %v702, 0.0
      %vm914 = vcmp.ge.f32.partialorder %v705, 0.0
      %vm915 = vcmp.ge.f32.partialorder %v710, 0.0
      %vm916 = vcmp.ge.f32.partialorder %v713, 0.0
      %vm917 = vcmp.ge.f32.partialorder %v718, 0.0
      %vm918 = vcmp.ge.f32.partialorder %v721, 0.0
      %vm919 = vcmp.ge.f32.partialorder %v726, 0.0
      %vm920 = vcmp.ge.f32.partialorder %v729, 0.0
      %vm921 = vcmp.ge.f32.partialorder %v734, 0.0
      %vm922 = vcmp.ge.f32.partialorder %v737, 0.0
      %vm923 = vcmp.ge.f32.partialorder %v742, 0.0
      %vm924 = vcmp.ge.f32.partialorder %v745, 0.0
      %vm925 = vcmp.ge.f32.partialorder %v750, 0.0
      %vm926 = vcmp.ge.f32.partialorder %v753, 0.0
      %vm927 = vcmp.ge.f32.partialorder %v758, 0.0
      %vm928 = vcmp.ge.f32.partialorder %v761, 0.0
      %vm929 = vcmp.ge.f32.partialorder %v766, 0.0
      %vm930 = vcmp.ge.f32.partialorder %v769, 0.0
      %vm931 = vcmp.ge.f32.partialorder %v774, 0.0
      %vm932 = vcmp.ge.f32.partialorder %v777, 0.0
      %vm933 = vcmp.ge.f32.partialorder %v782, 0.0
      %vm934 = vcmp.ge.f32.partialorder %v785, 0.0
      %vm935 = vcmp.ge.f32.partialorder %v790, 0.0
      %vm936 = vcmp.ge.f32.partialorder %v793, 0.0
      %vm937 = vcmp.ge.f32.partialorder %v798, 0.0
      %vm938 = vcmp.ge.f32.partialorder %v801, 0.0
      %vm939 = vcmp.ge.f32.partialorder %v806, 0.0
      %vm940 = vcmp.ge.f32.partialorder %v809, 0.0
      %vm941 = vcmp.ge.f32.partialorder %v814, 0.0
      %vm942 = vcmp.ge.f32.partialorder %v817, 0.0
      %vm943 = vcmp.ge.f32.partialorder %v822, 0.0
      %vm944 = vcmp.ge.f32.partialorder %v825, 0.0
      %vm945 = vcmp.ge.f32.partialorder %v830, 0.0
      %vm946 = vcmp.ge.f32.partialorder %v833, 0.0
      %vm947 = vcmp.ge.f32.partialorder %v838, 0.0
      %vm948 = vcmp.ge.f32.partialorder %v841, 0.0
      %vm949 = vcmp.ge.f32.partialorder %v846, 0.0
      %vm950 = vcmp.ge.f32.partialorder %v849, 0.0
      %vm951 = vcmp.ge.f32.partialorder %v854, 0.0
      %vm952 = vcmp.ge.f32.partialorder %v857, 0.0
      %vm953 = vcmp.ge.f32.partialorder %v862, 0.0
      %vm954 = vcmp.ge.f32.partialorder %v865, 0.0
      %vm955 = vcmp.ge.f32.partialorder %v870, 0.0
      %vm956 = vcmp.ge.f32.partialorder %v873, 0.0
      %vm957 = vcmp.ge.f32.partialorder %v878, 0.0
      %v958 = vmul.f32 %v582, 0.01
      %v959 = vmul.f32 %v585, 0.01
      %v960 = vmul.f32 %v590, 0.01
      %v961 = vmul.f32 %v593, 0.01
      %v962 = vmul.f32 %v598, 0.01
      %v963 = vmul.f32 %v601, 0.01
      %v964 = vmul.f32 %v606, 0.01
      %v965 = vmul.f32 %v609, 0.01
      %v966 = vmul.f32 %v614, 0.01
      %v967 = vmul.f32 %v617, 0.01
      %v968 = vmul.f32 %v622, 0.01
      %v969 = vmul.f32 %v625, 0.01
      %v970 = vmul.f32 %v630, 0.01
      %v971 = vmul.f32 %v633, 0.01
      %v972 = vmul.f32 %v638, 0.01
      %v973 = vmul.f32 %v641, 0.01
      %v974 = vmul.f32 %v646, 0.01
      %v975 = vmul.f32 %v649, 0.01
      %v976 = vmul.f32 %v654, 0.01
      %v977 = vmul.f32 %v657, 0.01
      %v978 = vmul.f32 %v662, 0.01
      %v979 = vmul.f32 %v665, 0.01
      %v980 = vmul.f32 %v670, 0.01
      %v981 = vmul.f32 %v673, 0.01
      %v982 = vmul.f32 %v678, 0.01
      %v983 = vmul.f32 %v681, 0.01
      %v984 = vmul.f32 %v686, 0.01
      %v985 = vmul.f32 %v689, 0.01
      %v986 = vmul.f32 %v694, 0.01
      %v987 = vmul.f32 %v697, 0.01
      %v988 = vmul.f32 %v702, 0.01
      %v989 = vmul.f32 %v705, 0.01
      %v990 = vmul.f32 %v710, 0.01
      %v991 = vmul.f32 %v713, 0.01
      %v992 = vmul.f32 %v718, 0.01
      %v993 = vmul.f32 %v721, 0.01
      %v994 = vmul.f32 %v726, 0.01
      %v995 = vmul.f32 %v729, 0.01
      %v996 = vmul.f32 %v734, 0.01
      %v997 = vmul.f32 %v737, 0.01
      %v998 = vmul.f32 %v742, 0.01
      %v999 = vmul.f32 %v745, 0.01
      %v1000 = vmul.f32 %v750, 0.01
      %v1001 = vmul.f32 %v753, 0.01
      %v1002 = vmul.f32 %v758, 0.01
      %v1003 = vmul.f32 %v761, 0.01
      %v1004 = vmul.f32 %v766, 0.01
      %v1005 = vmul.f32 %v769, 0.01
      %v1006 = vmul.f32 %v774, 0.01
      %v1007 = vmul.f32 %v777, 0.01
      %v1008 = vmul.f32 %v782, 0.01
      %v1009 = vmul.f32 %v785, 0.01
      %v1010 = vmul.f32 %v790, 0.01
      %v1011 = vmul.f32 %v793, 0.01
      %v1012 = vmul.f32 %v798, 0.01
      %v1013 = vmul.f32 %v801, 0.01
      %v1014 = vmul.f32 %v806, 0.01
      %v1015 = vmul.f32 %v809, 0.01
      %v1016 = vmul.f32 %v814, 0.01
      %v1017 = vmul.f32 %v817, 0.01
      %v1018 = vmul.f32 %v822, 0.01
      %v1019 = vmul.f32 %v825, 0.01
      %v1020 = vmul.f32 %v830, 0.01
      %v1021 = vmul.f32 %v833, 0.01
      %v1022 = vmul.f32 %v838, 0.01
      %v1023 = vmul.f32 %v841, 0.01
      %v1024 = vmul.f32 %v846, 0.01
      %v1025 = vmul.f32 %v849, 0.01
      %v1026 = vmul.f32 %v854, 0.01
      %v1027 = vmul.f32 %v857, 0.01
      %v1028 = vmul.f32 %v862, 0.01
      %v1029 = vmul.f32 %v865, 0.01
      %v1030 = vmul.f32 %v870, 0.01
      %v1031 = vmul.f32 %v873, 0.01
      %v1032 = vmul.f32 %v878, 0.01
      %v1033 = vsel %vm883, %v582, %v958
      %v1034 = vsel %vm884, %v585, %v959
      %v1035 = vsel %vm885, %v590, %v960
      %v1036 = vsel %vm886, %v593, %v961
      %v1037 = vsel %vm887, %v598, %v962
      %v1038 = vsel %vm888, %v601, %v963
      %v1039 = vsel %vm889, %v606, %v964
      %v1040 = vsel %vm890, %v609, %v965
      %v1041 = vsel %vm891, %v614, %v966
      %v1042 = vsel %vm892, %v617, %v967
      %v1043 = vsel %vm893, %v622, %v968
      %v1044 = vsel %vm894, %v625, %v969
      %v1045 = vsel %vm895, %v630, %v970
      %v1046 = vsel %vm896, %v633, %v971
      %v1047 = vsel %vm897, %v638, %v972
      %v1048 = vsel %vm898, %v641, %v973
      %v1049 = vsel %vm899, %v646, %v974
      %v1050 = vsel %vm900, %v649, %v975
      %v1051 = vsel %vm901, %v654, %v976
      %v1052 = vsel %vm902, %v657, %v977
      %v1053 = vsel %vm903, %v662, %v978
      %v1054 = vsel %vm904, %v665, %v979
      %v1055 = vsel %vm905, %v670, %v980
      %v1056 = vsel %vm906, %v673, %v981
      %v1057 = vsel %vm907, %v678, %v982
      %v1058 = vsel %vm908, %v681, %v983
      %v1059 = vsel %vm909, %v686, %v984
      %v1060 = vsel %vm910, %v689, %v985
      %v1061 = vsel %vm911, %v694, %v986
      %v1062 = vsel %vm912, %v697, %v987
      %v1063 = vsel %vm913, %v702, %v988
      %v1064 = vsel %vm914, %v705, %v989
      %v1065 = vsel %vm915, %v710, %v990
      %v1066 = vsel %vm916, %v713, %v991
      %v1067 = vsel %vm917, %v718, %v992
      %v1068 = vsel %vm918, %v721, %v993
      %v1069 = vsel %vm919, %v726, %v994
      %v1070 = vsel %vm920, %v729, %v995
      %v1071 = vsel %vm921, %v734, %v996
      %v1072 = vsel %vm922, %v737, %v997
      %v1073 = vsel %vm923, %v742, %v998
      %v1074 = vsel %vm924, %v745, %v999
      %v1075 = vsel %vm925, %v750, %v1000
      %v1076 = vsel %vm926, %v753, %v1001
      %v1077 = vsel %vm927, %v758, %v1002
      %v1078 = vsel %vm928, %v761, %v1003
      %v1079 = vsel %vm929, %v766, %v1004
      %v1080 = vsel %vm930, %v769, %v1005
      %v1081 = vsel %vm931, %v774, %v1006
      %v1082 = vsel %vm932, %v777, %v1007
      %v1083 = vsel %vm933, %v782, %v1008
      %v1084 = vsel %vm934, %v785, %v1009
      %v1085 = vsel %vm935, %v790, %v1010
      %v1086 = vsel %vm936, %v793, %v1011
      %v1087 = vsel %vm937, %v798, %v1012
      %v1088 = vsel %vm938, %v801, %v1013
      %v1089 = vsel %vm939, %v806, %v1014
      %v1090 = vsel %vm940, %v809, %v1015
      %v1091 = vsel %vm941, %v814, %v1016
      %v1092 = vsel %vm942, %v817, %v1017
      %v1093 = vsel %vm943, %v822, %v1018
      %v1094 = vsel %vm944, %v825, %v1019
      %v1095 = vsel %vm945, %v830, %v1020
      %v1096 = vsel %vm946, %v833, %v1021
      %v1097 = vsel %vm947, %v838, %v1022
      %v1098 = vsel %vm948, %v841, %v1023
      %v1099 = vsel %vm949, %v846, %v1024
      %v1100 = vsel %vm950, %v849, %v1025
      %v1101 = vsel %vm951, %v854, %v1026
      %v1102 = vsel %vm952, %v857, %v1027
      %v1103 = vsel %vm953, %v862, %v1028
      %v1104 = vsel %vm954, %v865, %v1029
      %v1105 = vsel %vm955, %v870, %v1030
      %v1106 = vsel %vm956, %v873, %v1031
      %v1107 = vsel %vm957, %v878, %v1032
      %v1108 = vpack.c.bf16 %v1034, %v1033
      %v1109 = vpack.c.bf16 %v1036, %v1035
      %v1110 = vpack.c.bf16 %v1038, %v1037
      %v1111 = vpack.c.bf16 %v1040, %v1039
      %v1112 = vpack.c.bf16 %v1042, %v1041
      %v1113 = vpack.c.bf16 %v1044, %v1043
      %v1114 = vpack.c.bf16 %v1046, %v1045
      %v1115 = vpack.c.bf16 %v1048, %v1047
      %v1116 = vpack.c.bf16 %v1050, %v1049
      %v1117 = vpack.c.bf16 %v1052, %v1051
      %v1118 = vpack.c.bf16 %v1054, %v1053
      %v1119 = vpack.c.bf16 %v1056, %v1055
      %v1120 = vpack.c.bf16 %v1058, %v1057
      %v1121 = vpack.c.bf16 %v1060, %v1059
      %v1122 = vpack.c.bf16 %v1062, %v1061
      %v1123 = vpack.c.bf16 %v1064, %v1063
      %v1124 = vpack.c.bf16 %v1066, %v1065
      %v1125 = vpack.c.bf16 %v1068, %v1067
      %v1126 = vpack.c.bf16 %v1070, %v1069
      %v1127 = vpack.c.bf16 %v1072, %v1071
      %v1128 = vpack.c.bf16 %v1074, %v1073
      %v1129 = vpack.c.bf16 %v1076, %v1075
      %v1130 = vpack.c.bf16 %v1078, %v1077
      %v1131 = vpack.c.bf16 %v1080, %v1079
      %v1132 = vpack.c.bf16 %v1082, %v1081
      %v1133 = vpack.c.bf16 %v1084, %v1083
      %v1134 = vpack.c.bf16 %v1086, %v1085
      %v1135 = vpack.c.bf16 %v1088, %v1087
      %v1136 = vpack.c.bf16 %v1090, %v1089
      %v1137 = vpack.c.bf16 %v1092, %v1091
      %v1138 = vpack.c.bf16 %v1094, %v1093
      %v1139 = vpack.c.bf16 %v1096, %v1095
      %v1140 = vpack.c.bf16 %v1098, %v1097
      %v1141 = vpack.c.bf16 %v1100, %v1099
      %v1142 = vpack.c.bf16 %v1102, %v1101
      %v1143 = vpack.c.bf16 %v1104, %v1103
      %v1144 = vpack.c.bf16 %v1106, %v1105
      %v1145 = vpack.c.bf16 %v1107, %v1107
      %v1184 = vunpack.c.l.b16 %v1108
      %v1185 = vunpack.c.h.b16 %v1108
      %v1186 = vunpack.c.l.b16 %v1109
      %v1187 = vunpack.c.h.b16 %v1109
      %v1188 = vunpack.c.l.b16 %v1110
      %v1189 = vunpack.c.h.b16 %v1110
      %v1190 = vunpack.c.l.b16 %v1111
      %v1191 = vunpack.c.h.b16 %v1111
      %v1192 = vunpack.c.l.b16 %v1112
      %v1193 = vunpack.c.h.b16 %v1112
      %v1194 = vunpack.c.l.b16 %v1113
      %v1195 = vunpack.c.h.b16 %v1113
      %v1196 = vunpack.c.l.b16 %v1114
      %v1197 = vunpack.c.h.b16 %v1114
      %v1198 = vunpack.c.l.b16 %v1115
      %v1199 = vunpack.c.h.b16 %v1115
      %v1200 = vunpack.c.l.b16 %v1116
      %v1201 = vunpack.c.h.b16 %v1116
      %v1202 = vunpack.c.l.b16 %v1117
      %v1203 = vunpack.c.h.b16 %v1117
      %v1204 = vunpack.c.l.b16 %v1118
      %v1205 = vunpack.c.h.b16 %v1118
      %v1206 = vunpack.c.l.b16 %v1119
      %v1207 = vunpack.c.h.b16 %v1119
      %v1208 = vunpack.c.l.b16 %v1120
      %v1209 = vunpack.c.h.b16 %v1120
      %v1210 = vunpack.c.l.b16 %v1121
      %v1211 = vunpack.c.h.b16 %v1121
      %v1212 = vunpack.c.l.b16 %v1122
      %v1213 = vunpack.c.h.b16 %v1122
      %v1214 = vunpack.c.l.b16 %v1123
      %v1215 = vunpack.c.h.b16 %v1123
      %v1216 = vunpack.c.l.b16 %v1124
      %v1217 = vunpack.c.h.b16 %v1124
      %v1218 = vunpack.c.l.b16 %v1125
      %v1219 = vunpack.c.h.b16 %v1125
      %v1220 = vunpack.c.l.b16 %v1126
      %v1221 = vunpack.c.h.b16 %v1126
      %v1222 = vunpack.c.l.b16 %v1127
      %v1223 = vunpack.c.h.b16 %v1127
      %v1224 = vunpack.c.l.b16 %v1128
      %v1225 = vunpack.c.h.b16 %v1128
      %v1226 = vunpack.c.l.b16 %v1129
      %v1227 = vunpack.c.h.b16 %v1129
      %v1228 = vunpack.c.l.b16 %v1130
      %v1229 = vunpack.c.h.b16 %v1130
      %v1230 = vunpack.c.l.b16 %v1131
      %v1231 = vunpack.c.h.b16 %v1131
      %v1232 = vunpack.c.l.b16 %v1132
      %v1233 = vunpack.c.h.b16 %v1132
      %v1234 = vunpack.c.l.b16 %v1133
      %v1235 = vunpack.c.h.b16 %v1133
      %v1236 = vunpack.c.l.b16 %v1134
      %v1237 = vunpack.c.h.b16 %v1134
      %v1238 = vunpack.c.l.b16 %v1135
      %v1239 = vunpack.c.h.b16 %v1135
      %v1240 = vunpack.c.l.b16 %v1136
      %v1241 = vunpack.c.h.b16 %v1136
      %v1242 = vunpack.c.l.b16 %v1137
      %v1243 = vunpack.c.h.b16 %v1137
      %v1244 = vunpack.c.l.b16 %v1138
      %v1245 = vunpack.c.h.b16 %v1138
      %v1246 = vunpack.c.l.b16 %v1139
      %v1247 = vunpack.c.h.b16 %v1139
      %v1248 = vunpack.c.l.b16 %v1140
      %v1249 = vunpack.c.h.b16 %v1140
      %v1250 = vunpack.c.l.b16 %v1141
      %v1251 = vunpack.c.h.b16 %v1141
      %v1252 = vunpack.c.l.b16 %v1142
      %v1253 = vunpack.c.h.b16 %v1142
      %v1254 = vunpack.c.l.b16 %v1143
      %v1255 = vunpack.c.h.b16 %v1143
      %v1256 = vunpack.c.l.b16 %v1144
      %v1257 = vunpack.c.h.b16 %v1144
      %v1258 = vunpack.c.l.b16 %v1145
      %v1259 = vpack.c.b16 %v1184, %v1184
      %v1260 = vpack.c.b16 %v1185, %v1185
      %v1261 = vpack.c.b16 %v1186, %v1186
      %v1262 = vpack.c.b16 %v1187, %v1187
      %v1263 = vpack.c.b16 %v1188, %v1188
      %v1264 = vpack.c.b16 %v1189, %v1189
      %v1265 = vpack.c.b16 %v1190, %v1190
      %v1266 = vpack.c.b16 %v1191, %v1191
      %v1267 = vpack.c.b16 %v1192, %v1192
      %v1268 = vpack.c.b16 %v1193, %v1193
      %v1269 = vpack.c.b16 %v1194, %v1194
      %v1270 = vpack.c.b16 %v1195, %v1195
      %v1271 = vpack.c.b16 %v1196, %v1196
      %v1272 = vpack.c.b16 %v1197, %v1197
      %v1273 = vpack.c.b16 %v1198, %v1198
      %v1274 = vpack.c.b16 %v1199, %v1199
      %v1275 = vpack.c.b16 %v1200, %v1200
      %v1276 = vpack.c.b16 %v1201, %v1201
      %v1277 = vpack.c.b16 %v1202, %v1202
      %v1278 = vpack.c.b16 %v1203, %v1203
      %v1279 = vpack.c.b16 %v1204, %v1204
      %v1280 = vpack.c.b16 %v1205, %v1205
      %v1281 = vpack.c.b16 %v1206, %v1206
      %v1282 = vpack.c.b16 %v1207, %v1207
      %v1283 = vpack.c.b16 %v1208, %v1208
      %v1284 = vpack.c.b16 %v1209, %v1209
      %v1285 = vpack.c.b16 %v1210, %v1210
      %v1286 = vpack.c.b16 %v1211, %v1211
      %v1287 = vpack.c.b16 %v1212, %v1212
      %v1288 = vpack.c.b16 %v1213, %v1213
      %v1289 = vpack.c.b16 %v1214, %v1214
      %v1290 = vpack.c.b16 %v1215, %v1215
      %v1291 = vpack.c.b16 %v1216, %v1216
      %v1292 = vpack.c.b16 %v1217, %v1217
      %v1293 = vpack.c.b16 %v1218, %v1218
      %v1294 = vpack.c.b16 %v1219, %v1219
      %v1295 = vpack.c.b16 %v1220, %v1220
      %v1296 = vpack.c.b16 %v1221, %v1221
      %v1297 = vpack.c.b16 %v1222, %v1222
      %v1298 = vpack.c.b16 %v1223, %v1223
      %v1299 = vpack.c.b16 %v1224, %v1224
      %v1300 = vpack.c.b16 %v1225, %v1225
      %v1301 = vpack.c.b16 %v1226, %v1226
      %v1302 = vpack.c.b16 %v1227, %v1227
      %v1303 = vpack.c.b16 %v1228, %v1228
      %v1304 = vpack.c.b16 %v1229, %v1229
      %v1305 = vpack.c.b16 %v1230, %v1230
      %v1306 = vpack.c.b16 %v1231, %v1231
      %v1307 = vpack.c.b16 %v1232, %v1232
      %v1308 = vpack.c.b16 %v1233, %v1233
      %v1309 = vpack.c.b16 %v1234, %v1234
      %v1310 = vpack.c.b16 %v1235, %v1235
      %v1311 = vpack.c.b16 %v1236, %v1236
      %v1312 = vpack.c.b16 %v1237, %v1237
      %v1313 = vpack.c.b16 %v1238, %v1238
      %v1314 = vpack.c.b16 %v1239, %v1239
      %v1315 = vpack.c.b16 %v1240, %v1240
      %v1316 = vpack.c.b16 %v1241, %v1241
      %v1317 = vpack.c.b16 %v1242, %v1242
      %v1318 = vpack.c.b16 %v1243, %v1243
      %v1319 = vpack.c.b16 %v1244, %v1244
      %v1320 = vpack.c.b16 %v1245, %v1245
      %v1321 = vpack.c.b16 %v1246, %v1246
      %v1322 = vpack.c.b16 %v1247, %v1247
      %v1323 = vpack.c.b16 %v1248, %v1248
      %v1324 = vpack.c.b16 %v1249, %v1249
      %v1325 = vpack.c.b16 %v1250, %v1250
      %v1326 = vpack.c.b16 %v1251, %v1251
      %v1327 = vpack.c.b16 %v1252, %v1252
      %v1328 = vpack.c.b16 %v1253, %v1253
      %v1329 = vpack.c.b16 %v1254, %v1254
      %v1330 = vpack.c.b16 %v1255, %v1255
      %v1331 = vpack.c.b16 %v1256, %v1256
      %v1332 = vpack.c.b16 %v1257, %v1257
      %v1333 = vpack.c.b16 %v1258, %v1258
      %vm1409 = vcmask 257024
      %1410 = vst.msk [vmem:[%s172] sm:$0xf] %vm1409, %v1259
      %1411 = vst.msk [vmem:[%s172 + $0x4] sm:$0xf] %vm1409, %v1260
      %1412 = vst.msk [vmem:[%s172 + $0x8] sm:$0xf] %vm1409, %v1261
      %1413 = vst.msk [vmem:[%s172 + $0xc] sm:$0xf] %vm1409, %v1262
      %1414 = vst.msk [vmem:[%s172 + $0x10] sm:$0xf] %vm1409, %v1263
      %1415 = vst.msk [vmem:[%s172 + $0x14] sm:$0xf] %vm1409, %v1264
      %1416 = vst.msk [vmem:[%s172 + $0x18] sm:$0xf] %vm1409, %v1265
      %1417 = vst.msk [vmem:[%s172 + $0x1c] sm:$0xf] %vm1409, %v1266
      %1418 = vst.msk [vmem:[%s172 + $0x20] sm:$0xf] %vm1409, %v1267
      %1419 = vst.msk [vmem:[%s172 + $0x24] sm:$0xf] %vm1409, %v1268
      %1420 = vst.msk [vmem:[%s172 + $0x28] sm:$0xf] %vm1409, %v1269
      %1421 = vst.msk [vmem:[%s172 + $0x2c] sm:$0xf] %vm1409, %v1270
      %1422 = vst.msk [vmem:[%s172 + $0x30] sm:$0xf] %vm1409, %v1271
      %1423 = vst.msk [vmem:[%s172 + $0x34] sm:$0xf] %vm1409, %v1272
      %1424 = vst.msk [vmem:[%s172 + $0x38] sm:$0xf] %vm1409, %v1273
      %1425 = vst.msk [vmem:[%s172 + $0x3c] sm:$0xf] %vm1409, %v1274
      %1426 = vst.msk [vmem:[%s172 + $0x40] sm:$0xf] %vm1409, %v1275
      %1427 = vst.msk [vmem:[%s172 + $0x44] sm:$0xf] %vm1409, %v1276
      %1428 = vst.msk [vmem:[%s172 + $0x48] sm:$0xf] %vm1409, %v1277
      %1429 = vst.msk [vmem:[%s172 + $0x4c] sm:$0xf] %vm1409, %v1278
      %1430 = vst.msk [vmem:[%s172 + $0x50] sm:$0xf] %vm1409, %v1279
      %1431 = vst.msk [vmem:[%s172 + $0x54] sm:$0xf] %vm1409, %v1280
      %1432 = vst.msk [vmem:[%s172 + $0x58] sm:$0xf] %vm1409, %v1281
      %1433 = vst.msk [vmem:[%s172 + $0x5c] sm:$0xf] %vm1409, %v1282
      %1434 = vst.msk [vmem:[%s172 + $0x60] sm:$0xf] %vm1409, %v1283
      %1435 = vst.msk [vmem:[%s172 + $0x64] sm:$0xf] %vm1409, %v1284
      %1436 = vst.msk [vmem:[%s172 + $0x68] sm:$0xf] %vm1409, %v1285
      %1437 = vst.msk [vmem:[%s172 + $0x6c] sm:$0xf] %vm1409, %v1286
      %1438 = vst.msk [vmem:[%s172 + $0x70] sm:$0xf] %vm1409, %v1287
      %1439 = vst.msk [vmem:[%s172 + $0x74] sm:$0xf] %vm1409, %v1288
      %1440 = vst.msk [vmem:[%s172 + $0x78] sm:$0xf] %vm1409, %v1289
      %1441 = vst.msk [vmem:[%s172 + $0x7c] sm:$0xf] %vm1409, %v1290
      %1442 = vst.msk [vmem:[%s172 + $0x80] sm:$0xf] %vm1409, %v1291
      %1443 = vst.msk [vmem:[%s172 + $0x84] sm:$0xf] %vm1409, %v1292
      %1444 = vst.msk [vmem:[%s172 + $0x88] sm:$0xf] %vm1409, %v1293
      %1445 = vst.msk [vmem:[%s172 + $0x8c] sm:$0xf] %vm1409, %v1294
      %1446 = vst.msk [vmem:[%s172 + $0x90] sm:$0xf] %vm1409, %v1295
      %1447 = vst.msk [vmem:[%s172 + $0x94] sm:$0xf] %vm1409, %v1296
      %1448 = vst.msk [vmem:[%s172 + $0x98] sm:$0xf] %vm1409, %v1297
      %1449 = vst.msk [vmem:[%s172 + $0x9c] sm:$0xf] %vm1409, %v1298
      %1450 = vst.msk [vmem:[%s172 + $0xa0] sm:$0xf] %vm1409, %v1299
      %1451 = vst.msk [vmem:[%s172 + $0xa4] sm:$0xf] %vm1409, %v1300
      %1452 = vst.msk [vmem:[%s172 + $0xa8] sm:$0xf] %vm1409, %v1301
      %1453 = vst.msk [vmem:[%s172 + $0xac] sm:$0xf] %vm1409, %v1302
      %1454 = vst.msk [vmem:[%s172 + $0xb0] sm:$0xf] %vm1409, %v1303
      %1455 = vst.msk [vmem:[%s172 + $0xb4] sm:$0xf] %vm1409, %v1304
      %1456 = vst.msk [vmem:[%s172 + $0xb8] sm:$0xf] %vm1409, %v1305
      %1457 = vst.msk [vmem:[%s172 + $0xbc] sm:$0xf] %vm1409, %v1306
      %1458 = vst.msk [vmem:[%s172 + $0xc0] sm:$0xf] %vm1409, %v1307
      %1459 = vst.msk [vmem:[%s172 + $0xc4] sm:$0xf] %vm1409, %v1308
      %1460 = vst.msk [vmem:[%s172 + $0xc8] sm:$0xf] %vm1409, %v1309
      %1461 = vst.msk [vmem:[%s172 + $0xcc] sm:$0xf] %vm1409, %v1310
      %1462 = vst.msk [vmem:[%s172 + $0xd0] sm:$0xf] %vm1409, %v1311
      %1463 = vst.msk [vmem:[%s172 + $0xd4] sm:$0xf] %vm1409, %v1312
      %1464 = vst.msk [vmem:[%s172 + $0xd8] sm:$0xf] %vm1409, %v1313
      %1465 = vst.msk [vmem:[%s172 + $0xdc] sm:$0xf] %vm1409, %v1314
      %1466 = vst.msk [vmem:[%s172 + $0xe0] sm:$0xf] %vm1409, %v1315
      %1467 = vst.msk [vmem:[%s172 + $0xe4] sm:$0xf] %vm1409, %v1316
      %1468 = vst.msk [vmem:[%s172 + $0xe8] sm:$0xf] %vm1409, %v1317
      %1469 = vst.msk [vmem:[%s172 + $0xec] sm:$0xf] %vm1409, %v1318
      %1470 = vst.msk [vmem:[%s172 + $0xf0] sm:$0xf] %vm1409, %v1319
      %1471 = vst.msk [vmem:[%s172 + $0xf4] sm:$0xf] %vm1409, %v1320
      %1472 = vst.msk [vmem:[%s172 + $0xf8] sm:$0xf] %vm1409, %v1321
      %1473 = vst.msk [vmem:[%s172 + $0xfc] sm:$0xf] %vm1409, %v1322
      %1474 = vst.msk [vmem:[%s172 + $0x100] sm:$0xf] %vm1409, %v1323
      %1475 = vst.msk [vmem:[%s172 + $0x104] sm:$0xf] %vm1409, %v1324
      %1476 = vst.msk [vmem:[%s172 + $0x108] sm:$0xf] %vm1409, %v1325
      %1477 = vst.msk [vmem:[%s172 + $0x10c] sm:$0xf] %vm1409, %v1326
      %1478 = vst.msk [vmem:[%s172 + $0x110] sm:$0xf] %vm1409, %v1327
      %1479 = vst.msk [vmem:[%s172 + $0x114] sm:$0xf] %vm1409, %v1328
      %1480 = vst.msk [vmem:[%s172 + $0x118] sm:$0xf] %vm1409, %v1329
      %1481 = vst.msk [vmem:[%s172 + $0x11c] sm:$0xf] %vm1409, %v1330
      %1482 = vst.msk [vmem:[%s172 + $0x120] sm:$0xf] %vm1409, %v1331
      %1483 = vst.msk [vmem:[%s172 + $0x124] sm:$0xf] %vm1409, %v1332
      %1484 = vst.msk [vmem:[%s172 + $0x128] sm:$0xf] %vm1409, %v1333
      %s1485 = smul.u32 75, %s14
      %p1486 = scmp.lt.s32.totalorder %s1485, 224
      %s1487 = scalar_select %p1486, %s1485, 224
      %s1488 = smul.addr %s1487, 4
      %s1489 = scalar_lea.vmem %s3, %s1488
      // Predicated region
      $region33: #{d2_forward.3} parent=31 // pred_check
        %p1490 = pneg %p100
      $region34: #{d2_forward.3} parent=31 // pred_check_branch
        %1492 = sbr.rel (%p1490) target = $region36
      $region35: #{d2_forward.3} parent=31 // pred_region
        %s1493 = smul.u32 75, %s14
      $region36: #{d2_forward.3} parent=31 // pred_fallthru
        _
    $region32: #{d2_forward.3} parent=5 // pred_fallthru
      _
    %p1494 = scmp.le.s32.totalorder 2, %s9
    // Predicated region
    $region37: #{d2_forward.3} parent=5 // pred_check
      %p1495 = pneg %p1494
    $region38: #{d2_forward.3} parent=5 // pred_check_branch
      %1497 = sbr.rel (%p1495) target = $region40
    $region39: #{d2_forward.3} parent=5 // pred_region
      %s1498 = ssub.s32 %s9, 2
      // Predicated region
      $region41: #{d2_forward.3} parent=39 // pred_check
        %p1499 = pneg %p106
      $region42: #{d2_forward.3} parent=39 // pred_check_branch
        %1501 = sbr.rel (%p1499) target = $region44
      $region43: #{d2_forward.3} parent=39 // pred_region
        %s1502 = smul.u32 75, %s15
        %p1503 = scmp.lt.s32.totalorder %s1502, 224
        %s1504 = scalar_select %p1503, %s1502, 224
        %s1505 = smul.addr %s1504, 4
        %s1506 = scalar_lea.vmem %s3, %s1505
      $region44: #{d2_forward.3} parent=39 // pred_fallthru
        _
    $region40: #{d2_forward.3} parent=5 // pred_fallthru
      _
  $region6: #{d2_forward.3} parent=0 // loop_footer
    %s13 = sadd.s32 1, %s9
  $region7: #{d2_forward.3} parent=0 // loop_footer_branch
    %8 = sbr.rel target = $region3
  $region8: #{d2_forward.3} parent=0 // loop_exit
    _

// kernel: d2_forward.4
$region0: #{d2_forward.4}
  #allocation0 [shape = 'u32[]', space=smem, size = 0x4, offset = 0x4, fixed_abs, tag = 'smem constant byte address 0x4 - core index']
  #allocation1 [shape = 'u32[144,128]{1,0:T(1,128)}', space=vmem, size = 0x12000, scoped, tag = 'internal scratch']
  %s0 = inlined_call_operand.vmem [shape: bf16[392,384], index: 0, kind: input, shape index: {}]
  %s1 = inlined_call_operand.vmem [shape: bf16[384,64], index: 1, kind: input, shape index: {}]
  %s2 = inlined_call_operand.vmem [shape: f32[1,64], index: 2, kind: input, shape index: {}]
  %s3 = inlined_call_operand.vmem [shape: bf16[392,64], index: 3, kind: output, shape index: {}]
  %s4 = sld [smem:[#allocation0]]
  $region22: #{d2_forward.4} parent=0
    _
  %s6 = ssub.s32 1, %s4
  %s7 = scalar_select 0, %s6, %s4
  // Predicated region
  $region2: #{d2_forward.4} parent=0 // pred_check
    _
  $region3: #{d2_forward.4} parent=0 // pred_check_branch
    %9 = sbr.rel (0) target = $region5
  $region4: #{d2_forward.4} parent=0 // pred_region
    _
  $region5: #{d2_forward.4} parent=0 // pred_fallthru
    _
  // Predicated region
  $region6: #{d2_forward.4} parent=0 // pred_check
    _
  $region7: #{d2_forward.4} parent=0 // pred_check_branch
    %11 = sbr.rel (0) target = $region9
  $region8: #{d2_forward.4} parent=0 // pred_region
    _
  $region9: #{d2_forward.4} parent=0 // pred_fallthru
    _
  // Predicated region
  $region10: #{d2_forward.4} parent=0 // pred_check
    _
  $region11: #{d2_forward.4} parent=0 // pred_check_branch
    %13 = sbr.rel (0) target = $region13
  $region12: #{d2_forward.4} parent=0 // pred_region
    _
  $region13: #{d2_forward.4} parent=0 // pred_fallthru
    _
  %v15 = vld [vmem:[%s0] sm:$0xff]
  %v16 = vld [vmem:[%s0 + $0x8] sm:$0xf]
  %v17 = vld [vmem:[%s0 + $0xc] sm:$0xff]
  %v18 = vld [vmem:[%s0 + $0x14] sm:$0xf]
  %v19 = vld [vmem:[%s0 + $0x18] sm:$0xff]
  %v20 = vld [vmem:[%s0 + $0x20] sm:$0xf]
  %v21 = vld [vmem:[%s0 + $0x24] sm:$0xff]
  %v22 = vld [vmem:[%s0 + $0x2c] sm:$0xf]
  %v23 = vld [vmem:[%s0 + $0x30] sm:$0xff]
  %v24 = vld [vmem:[%s0 + $0x38] sm:$0xf]
  %v25 = vld [vmem:[%s0 + $0x3c] sm:$0xff]
  %v26 = vld [vmem:[%s0 + $0x44] sm:$0xf]
  %v27 = vld [vmem:[%s0 + $0x48] sm:$0xff]
  %v28 = vld [vmem:[%s0 + $0x50] sm:$0xf]
  %v29 = vld [vmem:[%s0 + $0x54] sm:$0xff]
  %v30 = vld [vmem:[%s0 + $0x5c] sm:$0xf]
  %v31 = vld [vmem:[%s0 + $0x60] sm:$0xff]
  %v32 = vld [vmem:[%s0 + $0x68] sm:$0xf]
  %v33 = vld [vmem:[%s0 + $0x6c] sm:$0xff]
  %v34 = vld [vmem:[%s0 + $0x74] sm:$0xf]
  %v35 = vld [vmem:[%s0 + $0x78] sm:$0xff]
  %v36 = vld [vmem:[%s0 + $0x80] sm:$0xf]
  %v37 = vld [vmem:[%s0 + $0x84] sm:$0xff]
  %v38 = vld [vmem:[%s0 + $0x8c] sm:$0xf]
  %v39 = vld [vmem:[%s0 + $0x90] sm:$0xff]
  %v40 = vld [vmem:[%s0 + $0x98] sm:$0xf]
  %v41 = vld [vmem:[%s0 + $0x9c] sm:$0xff]
  %v42 = vld [vmem:[%s0 + $0xa4] sm:$0xf]
  %v43 = vld [vmem:[%s0 + $0xa8] sm:$0xff]
  %v44 = vld [vmem:[%s0 + $0xb0] sm:$0xf]
  %v45 = vld [vmem:[%s0 + $0xb4] sm:$0xff]
  %v46 = vld [vmem:[%s0 + $0xbc] sm:$0xf]
  %v47 = vld [vmem:[%s0 + $0xc0] sm:$0xff]
  %v48 = vld [vmem:[%s0 + $0xc8] sm:$0xf]
  %v49 = vld [vmem:[%s0 + $0xcc] sm:$0xff]
  %v50 = vld [vmem:[%s0 + $0xd4] sm:$0xf]
  %v51 = vld [vmem:[%s0 + $0xd8] sm:$0xff]
  %v52 = vld [vmem:[%s0 + $0xe0] sm:$0xf]
  %v53 = vld [vmem:[%s0 + $0xe4] sm:$0xff]
  %v54 = vld [vmem:[%s0 + $0xec] sm:$0xf]
  %v55 = vld [vmem:[%s0 + $0xf0] sm:$0xff]
  %v56 = vld [vmem:[%s0 + $0xf8] sm:$0xf]
  %v57 = vld [vmem:[%s0 + $0xfc] sm:$0xff]
  %v58 = vld [vmem:[%s0 + $0x104] sm:$0xf]
  %v59 = vld [vmem:[%s0 + $0x108] sm:$0xff]
  %v60 = vld [vmem:[%s0 + $0x110] sm:$0xf]
  %v61 = vld [vmem:[%s0 + $0x114] sm:$0xff]
  %v62 = vld [vmem:[%s0 + $0x11c] sm:$0xf]
  %v63 = vld [vmem:[%s0 + $0x120] sm:$0xff]
  %v64 = vld [vmem:[%s0 + $0x128] sm:$0xf]
  %v65 = vld [vmem:[%s0 + $0x12c] sm:$0xff]
  %v66 = vld [vmem:[%s0 + $0x134] sm:$0xf]
  %v67 = vld [vmem:[%s0 + $0x138] sm:$0xff]
  %v68 = vld [vmem:[%s0 + $0x140] sm:$0xf]
  %v69 = vld [vmem:[%s0 + $0x144] sm:$0xff]
  %v70 = vld [vmem:[%s0 + $0x14c] sm:$0xf]
  %v71 = vld [vmem:[%s0 + $0x150] sm:$0xff]
  %v72 = vld [vmem:[%s0 + $0x158] sm:$0xf]
  %v73 = vld [vmem:[%s0 + $0x15c] sm:$0xff]
  %v74 = vld [vmem:[%s0 + $0x164] sm:$0xf]
  %v75 = vld [vmem:[%s0 + $0x168] sm:$0xff]
  %v76 = vld [vmem:[%s0 + $0x170] sm:$0xf]
  %v77 = vld [vmem:[%s0 + $0x174] sm:$0xff]
  %v78 = vld [vmem:[%s0 + $0x17c] sm:$0xf]
  %v79 = vld [vmem:[%s0 + $0x180] sm:$0xff]
  %v80 = vld [vmem:[%s0 + $0x188] sm:$0xf]
  %v81 = vld [vmem:[%s0 + $0x18c] sm:$0xff]
  %v82 = vld [vmem:[%s0 + $0x194] sm:$0xf]
  %v83 = vld [vmem:[%s0 + $0x198] sm:$0xff]
  %v84 = vld [vmem:[%s0 + $0x1a0] sm:$0xf]
  %v85 = vld [vmem:[%s0 + $0x1a4] sm:$0xff]
  %v86 = vld [vmem:[%s0 + $0x1ac] sm:$0xf]
  %v87 = vld [vmem:[%s0 + $0x1b0] sm:$0xff]
  %v88 = vld [vmem:[%s0 + $0x1b8] sm:$0xf]
  %v89 = vld [vmem:[%s0 + $0x1bc] sm:$0xff]
  %v90 = vld [vmem:[%s0 + $0x1c4] sm:$0xf]
  %v91 = vld [vmem:[%s0 + $0x1c8] sm:$0xff]
  %v92 = vld [vmem:[%s0 + $0x1d0] sm:$0xf]
  %v93 = vld [vmem:[%s0 + $0x1d4] sm:$0xff]
  %v94 = vld [vmem:[%s0 + $0x1dc] sm:$0xf]
  %v95 = vld [vmem:[%s0 + $0x1e0] sm:$0xff]
  %v96 = vld [vmem:[%s0 + $0x1e8] sm:$0xf]
  %v97 = vld [vmem:[%s0 + $0x1ec] sm:$0xff]
  %v98 = vld [vmem:[%s0 + $0x1f4] sm:$0xf]
  %v99 = vld [vmem:[%s0 + $0x1f8] sm:$0xff]
  %v100 = vld [vmem:[%s0 + $0x200] sm:$0xf]
  %v101 = vld [vmem:[%s0 + $0x204] sm:$0xff]
  %v102 = vld [vmem:[%s0 + $0x20c] sm:$0xf]
  %v103 = vld [vmem:[%s0 + $0x210] sm:$0xff]
  %v104 = vld [vmem:[%s0 + $0x218] sm:$0xf]
  %v105 = vld [vmem:[%s0 + $0x21c] sm:$0xff]
  %v106 = vld [vmem:[%s0 + $0x224] sm:$0xf]
  %v107 = vld [vmem:[%s0 + $0x228] sm:$0xff]
  %v108 = vld [vmem:[%s0 + $0x230] sm:$0xf]
  %v109 = vld [vmem:[%s0 + $0x234] sm:$0xff]
  %v110 = vld [vmem:[%s0 + $0x23c] sm:$0xf]
  %v111 = vld [vmem:[%s0 + $0x240] sm:$0xff]
  %v112 = vld [vmem:[%s0 + $0x248] sm:$0xf]
  %v113 = vld [vmem:[%s1] sm:$0xf]
  %v114 = vld [vmem:[%s1 + $0x4] sm:$0xf]
  %v115 = vld [vmem:[%s1 + $0x8] sm:$0xf]
  %v116 = vld [vmem:[%s1 + $0xc] sm:$0xf]
  %v117 = vld [vmem:[%s1 + $0x10] sm:$0xf]
  %v118 = vld [vmem:[%s1 + $0x14] sm:$0xf]
  %v119 = vld [vmem:[%s1 + $0x18] sm:$0xf]
  %v120 = vld [vmem:[%s1 + $0x1c] sm:$0xf]
  %v121 = vld [vmem:[%s1 + $0x20] sm:$0xf]
  %v122 = vld [vmem:[%s1 + $0x24] sm:$0xf]
  %v123 = vld [vmem:[%s1 + $0x28] sm:$0xf]
  %v124 = vld [vmem:[%s1 + $0x2c] sm:$0xf]
  %v125 = vld [vmem:[%s1 + $0x30] sm:$0xf]
  %v126 = vld [vmem:[%s1 + $0x34] sm:$0xf]
  %v127 = vld [vmem:[%s1 + $0x38] sm:$0xf]
  %v128 = vld [vmem:[%s1 + $0x3c] sm:$0xf]
  %v129 = vld [vmem:[%s1 + $0x40] sm:$0xf]
  %v130 = vld [vmem:[%s1 + $0x44] sm:$0xf]
  %v131 = vld [vmem:[%s1 + $0x48] sm:$0xf]
  %v132 = vld [vmem:[%s1 + $0x4c] sm:$0xf]
  %v133 = vld [vmem:[%s1 + $0x50] sm:$0xf]
  %v134 = vld [vmem:[%s1 + $0x54] sm:$0xf]
  %v135 = vld [vmem:[%s1 + $0x58] sm:$0xf]
  %v136 = vld [vmem:[%s1 + $0x5c] sm:$0xf]
  %v137 = vld [vmem:[%s1 + $0x60] sm:$0xf]
  %v138 = vld [vmem:[%s1 + $0x64] sm:$0xf]
  %v139 = vld [vmem:[%s1 + $0x68] sm:$0xf]
  %v140 = vld [vmem:[%s1 + $0x6c] sm:$0xf]
  %v141 = vld [vmem:[%s1 + $0x70] sm:$0xf]
  %v142 = vld [vmem:[%s1 + $0x74] sm:$0xf]
  %v143 = vld [vmem:[%s1 + $0x78] sm:$0xf]
  %v144 = vld [vmem:[%s1 + $0x7c] sm:$0xf]
  %v145 = vld [vmem:[%s1 + $0x80] sm:$0xf]
  %v146 = vld [vmem:[%s1 + $0x84] sm:$0xf]
  %v147 = vld [vmem:[%s1 + $0x88] sm:$0xf]
  %v148 = vld [vmem:[%s1 + $0x8c] sm:$0xf]
  %v149 = vld [vmem:[%s1 + $0x90] sm:$0xf]
  %v150 = vld [vmem:[%s1 + $0x94] sm:$0xf]
  %v151 = vld [vmem:[%s1 + $0x98] sm:$0xf]
  %v152 = vld [vmem:[%s1 + $0x9c] sm:$0xf]
  %v153 = vld [vmem:[%s1 + $0xa0] sm:$0xf]
  %v154 = vld [vmem:[%s1 + $0xa4] sm:$0xf]
  %v155 = vld [vmem:[%s1 + $0xa8] sm:$0xf]
  %v156 = vld [vmem:[%s1 + $0xac] sm:$0xf]
  %v157 = vld [vmem:[%s1 + $0xb0] sm:$0xf]
  %v158 = vld [vmem:[%s1 + $0xb4] sm:$0xf]
  %v159 = vld [vmem:[%s1 + $0xb8] sm:$0xf]
  %v160 = vld [vmem:[%s1 + $0xbc] sm:$0xf]
  %v161 = vld [vmem:[%s2] sm:$0x1]
  %v163 = vlaneseq
  %v164 = vshrl.u32 %v163, 7
  %v165 = vsub.s32 0, %v164
  %v166 = vrot.slane %v161, %v165
  %v266 = vunpack.c.l.b16 %v15
  %v267 = vunpack.c.h.b16 %v15
  %v268 = vunpack.c.l.b16 %v16
  %v269 = vunpack.c.l.b16 %v17
  %v270 = vunpack.c.h.b16 %v17
  %v271 = vunpack.c.l.b16 %v18
  %v272 = vunpack.c.l.b16 %v19
  %v273 = vunpack.c.h.b16 %v19
  %v274 = vunpack.c.l.b16 %v20
  %v275 = vunpack.c.l.b16 %v21
  %v276 = vunpack.c.h.b16 %v21
  %v277 = vunpack.c.l.b16 %v22
  %v278 = vunpack.c.l.b16 %v23
  %v279 = vunpack.c.h.b16 %v23
  %v280 = vunpack.c.l.b16 %v24
  %v281 = vunpack.c.l.b16 %v25
  %v282 = vunpack.c.h.b16 %v25
  %v283 = vunpack.c.l.b16 %v26
  %v284 = vunpack.c.l.b16 %v27
  %v285 = vunpack.c.h.b16 %v27
  %v286 = vunpack.c.l.b16 %v28
  %v287 = vunpack.c.l.b16 %v29
  %v288 = vunpack.c.h.b16 %v29
  %v289 = vunpack.c.l.b16 %v30
  %v290 = vunpack.c.l.b16 %v31
  %v291 = vunpack.c.h.b16 %v31
  %v292 = vunpack.c.l.b16 %v32
  %v293 = vunpack.c.l.b16 %v33
  %v294 = vunpack.c.h.b16 %v33
  %v295 = vunpack.c.l.b16 %v34
  %v296 = vunpack.c.l.b16 %v35
  %v297 = vunpack.c.h.b16 %v35
  %v298 = vunpack.c.l.b16 %v36
  %v299 = vunpack.c.l.b16 %v37
  %v300 = vunpack.c.h.b16 %v37
  %v301 = vunpack.c.l.b16 %v38
  %v302 = vunpack.c.l.b16 %v39
  %v303 = vunpack.c.h.b16 %v39
  %v304 = vunpack.c.l.b16 %v40
  %v305 = vunpack.c.l.b16 %v41
  %v306 = vunpack.c.h.b16 %v41
  %v307 = vunpack.c.l.b16 %v42
  %v308 = vunpack.c.l.b16 %v43
  %v309 = vunpack.c.h.b16 %v43
  %v310 = vunpack.c.l.b16 %v44
  %v311 = vunpack.c.l.b16 %v45
  %v312 = vunpack.c.h.b16 %v45
  %v313 = vunpack.c.l.b16 %v46
  %v314 = vunpack.c.l.b16 %v47
  %v315 = vunpack.c.h.b16 %v47
  %v316 = vunpack.c.l.b16 %v48
  %v317 = vunpack.c.l.b16 %v49
  %v318 = vunpack.c.h.b16 %v49
  %v319 = vunpack.c.l.b16 %v50
  %v320 = vunpack.c.l.b16 %v51
  %v321 = vunpack.c.h.b16 %v51
  %v322 = vunpack.c.l.b16 %v52
  %v323 = vunpack.c.l.b16 %v53
  %v324 = vunpack.c.h.b16 %v53
  %v325 = vunpack.c.l.b16 %v54
  %v326 = vunpack.c.l.b16 %v55
  %v327 = vunpack.c.h.b16 %v55
  %v328 = vunpack.c.l.b16 %v56
  %v329 = vunpack.c.l.b16 %v57
  %v330 = vunpack.c.h.b16 %v57
  %v331 = vunpack.c.l.b16 %v58
  %v332 = vunpack.c.l.b16 %v59
  %v333 = vunpack.c.h.b16 %v59
  %v334 = vunpack.c.l.b16 %v60
  %v335 = vunpack.c.l.b16 %v61
  %v336 = vunpack.c.h.b16 %v61
  %v337 = vunpack.c.l.b16 %v62
  %v338 = vunpack.c.l.b16 %v63
  %v339 = vunpack.c.h.b16 %v63
  %v340 = vunpack.c.l.b16 %v64
  %v341 = vunpack.c.l.b16 %v65
  %v342 = vunpack.c.h.b16 %v65
  %v343 = vunpack.c.l.b16 %v66
  %v344 = vunpack.c.l.b16 %v67
  %v345 = vunpack.c.h.b16 %v67
  %v346 = vunpack.c.l.b16 %v68
  %v347 = vunpack.c.l.b16 %v69
  %v348 = vunpack.c.h.b16 %v69
  %v349 = vunpack.c.l.b16 %v70
  %v350 = vunpack.c.l.b16 %v71
  %v351 = vunpack.c.h.b16 %v71
  %v352 = vunpack.c.l.b16 %v72
  %v353 = vunpack.c.l.b16 %v73
  %v354 = vunpack.c.h.b16 %v73
  %v355 = vunpack.c.l.b16 %v74
  %v356 = vunpack.c.l.b16 %v75
  %v357 = vunpack.c.h.b16 %v75
  %v358 = vunpack.c.l.b16 %v76
  %v359 = vunpack.c.l.b16 %v77
  %v360 = vunpack.c.h.b16 %v77
  %v361 = vunpack.c.l.b16 %v78
  %v362 = vunpack.c.l.b16 %v79
  %v363 = vunpack.c.h.b16 %v79
  %v364 = vunpack.c.l.b16 %v80
  %v365 = vunpack.c.l.b16 %v81
  %v366 = vunpack.c.h.b16 %v81
  %v367 = vunpack.c.l.b16 %v82
  %v368 = vunpack.c.l.b16 %v83
  %v369 = vunpack.c.h.b16 %v83
  %v370 = vunpack.c.l.b16 %v84
  %v371 = vunpack.c.l.b16 %v85
  %v372 = vunpack.c.h.b16 %v85
  %v373 = vunpack.c.l.b16 %v86
  %v374 = vunpack.c.l.b16 %v87
  %v375 = vunpack.c.h.b16 %v87
  %v376 = vunpack.c.l.b16 %v88
  %v377 = vunpack.c.l.b16 %v89
  %v378 = vunpack.c.h.b16 %v89
  %v379 = vunpack.c.l.b16 %v90
  %v380 = vunpack.c.l.b16 %v91
  %v381 = vunpack.c.h.b16 %v91
  %v382 = vunpack.c.l.b16 %v92
  %v383 = vunpack.c.l.b16 %v93
  %v384 = vunpack.c.h.b16 %v93
  %v385 = vunpack.c.l.b16 %v94
  %v386 = vunpack.c.l.b16 %v95
  %v387 = vunpack.c.h.b16 %v95
  %v388 = vunpack.c.l.b16 %v96
  %v389 = vunpack.c.l.b16 %v97
  %v390 = vunpack.c.h.b16 %v97
  %v391 = vunpack.c.l.b16 %v98
  %v392 = vunpack.c.l.b16 %v99
  %v393 = vunpack.c.h.b16 %v99
  %v394 = vunpack.c.l.b16 %v100
  %v395 = vunpack.c.l.b16 %v101
  %v396 = vunpack.c.h.b16 %v101
  %v397 = vunpack.c.l.b16 %v102
  %v398 = vunpack.c.l.b16 %v103
  %v399 = vunpack.c.h.b16 %v103
  %v400 = vunpack.c.l.b16 %v104
  %v401 = vunpack.c.l.b16 %v105
  %v402 = vunpack.c.h.b16 %v105
  %v403 = vunpack.c.l.b16 %v106
  %v404 = vunpack.c.l.b16 %v107
  %v405 = vunpack.c.h.b16 %v107
  %v406 = vunpack.c.l.b16 %v108
  %v407 = vunpack.c.l.b16 %v109
  %v408 = vunpack.c.h.b16 %v109
  %v409 = vunpack.c.l.b16 %v110
  %v410 = vunpack.c.l.b16 %v111
  %v411 = vunpack.c.h.b16 %v111
  %v412 = vunpack.c.l.b16 %v112
  %v413 = vpack.c.b16 %v269, %v266
  %v414 = vpack.c.b16 %v270, %v267
  %v415 = vpack.c.b16 %v271, %v268
  %v416 = vpack.c.b16 %v275, %v272
  %v417 = vpack.c.b16 %v276, %v273
  %v418 = vpack.c.b16 %v277, %v274
  %v419 = vpack.c.b16 %v281, %v278
  %v420 = vpack.c.b16 %v282, %v279
  %v421 = vpack.c.b16 %v283, %v280
  %v422 = vpack.c.b16 %v287, %v284
  %v423 = vpack.c.b16 %v288, %v285
  %v424 = vpack.c.b16 %v289, %v286
  %v425 = vpack.c.b16 %v293, %v290
  %v426 = vpack.c.b16 %v294, %v291
  %v427 = vpack.c.b16 %v295, %v292
  %v428 = vpack.c.b16 %v299, %v296
  %v429 = vpack.c.b16 %v300, %v297
  %v430 = vpack.c.b16 %v301, %v298
  %v431 = vpack.c.b16 %v305, %v302
  %v432 = vpack.c.b16 %v306, %v303
  %v433 = vpack.c.b16 %v307, %v304
  %v434 = vpack.c.b16 %v311, %v308
  %v435 = vpack.c.b16 %v312, %v309
  %v436 = vpack.c.b16 %v313, %v310
  %v437 = vpack.c.b16 %v317, %v314
  %v438 = vpack.c.b16 %v318, %v315
  %v439 = vpack.c.b16 %v319, %v316
  %v440 = vpack.c.b16 %v323, %v320
  %v441 = vpack.c.b16 %v324, %v321
  %v442 = vpack.c.b16 %v325, %v322
  %v443 = vpack.c.b16 %v329, %v326
  %v444 = vpack.c.b16 %v330, %v327
  %v445 = vpack.c.b16 %v331, %v328
  %v446 = vpack.c.b16 %v335, %v332
  %v447 = vpack.c.b16 %v336, %v333
  %v448 = vpack.c.b16 %v337, %v334
  %v449 = vpack.c.b16 %v341, %v338
  %v450 = vpack.c.b16 %v342, %v339
  %v451 = vpack.c.b16 %v343, %v340
  %v452 = vpack.c.b16 %v347, %v344
  %v453 = vpack.c.b16 %v348, %v345
  %v454 = vpack.c.b16 %v349, %v346
  %v455 = vpack.c.b16 %v353, %v350
  %v456 = vpack.c.b16 %v354, %v351
  %v457 = vpack.c.b16 %v355, %v352
  %v458 = vpack.c.b16 %v359, %v356
  %v459 = vpack.c.b16 %v360, %v357
  %v460 = vpack.c.b16 %v361, %v358
  %v461 = vpack.c.b16 %v365, %v362
  %v462 = vpack.c.b16 %v366, %v363
  %v463 = vpack.c.b16 %v367, %v364
  %v464 = vpack.c.b16 %v371, %v368
  %v465 = vpack.c.b16 %v372, %v369
  %v466 = vpack.c.b16 %v373, %v370
  %v467 = vpack.c.b16 %v377, %v374
  %v468 = vpack.c.b16 %v378, %v375
  %v469 = vpack.c.b16 %v379, %v376
  %v470 = vpack.c.b16 %v383, %v380
  %v471 = vpack.c.b16 %v384, %v381
  %v472 = vpack.c.b16 %v385, %v382
  %v473 = vpack.c.b16 %v389, %v386
  %v474 = vpack.c.b16 %v390, %v387
  %v475 = vpack.c.b16 %v391, %v388
  %v476 = vpack.c.b16 %v395, %v392
  %v477 = vpack.c.b16 %v396, %v393
  %v478 = vpack.c.b16 %v397, %v394
  %v479 = vpack.c.b16 %v401, %v398
  %v480 = vpack.c.b16 %v402, %v399
  %v481 = vpack.c.b16 %v403, %v400
  %v482 = vpack.c.b16 %v407, %v404
  %v483 = vpack.c.b16 %v408, %v405
  %v484 = vpack.c.b16 %v409, %v406
  %v485 = vpack.c.b16 %v410, %v410
  %v486 = vpack.c.b16 %v411, %v411
  %v487 = vpack.c.b16 %v412, %v412
  %v611 = vunpack.c.l.b16 %v113
  %v612 = vunpack.c.l.b16 %v114
  %v613 = vunpack.c.l.b16 %v115
  %v614 = vunpack.c.l.b16 %v116
  %v615 = vunpack.c.l.b16 %v117
  %v616 = vunpack.c.l.b16 %v118
  %v617 = vunpack.c.l.b16 %v119
  %v618 = vunpack.c.l.b16 %v120
  %v619 = vunpack.c.l.b16 %v121
  %v620 = vunpack.c.l.b16 %v122
  %v621 = vunpack.c.l.b16 %v123
  %v622 = vunpack.c.l.b16 %v124
  %v623 = vunpack.c.l.b16 %v125
  %v624 = vunpack.c.l.b16 %v126
  %v625 = vunpack.c.l.b16 %v127
  %v626 = vunpack.c.l.b16 %v128
  %v627 = vunpack.c.l.b16 %v129
  %v628 = vunpack.c.l.b16 %v130
  %v629 = vunpack.c.l.b16 %v131
  %v630 = vunpack.c.l.b16 %v132
  %v631 = vunpack.c.l.b16 %v133
  %v632 = vunpack.c.l.b16 %v134
  %v633 = vunpack.c.l.b16 %v135
  %v634 = vunpack.c.l.b16 %v136
  %v635 = vunpack.c.l.b16 %v137
  %v636 = vunpack.c.l.b16 %v138
  %v637 = vunpack.c.l.b16 %v139
  %v638 = vunpack.c.l.b16 %v140
  %v639 = vunpack.c.l.b16 %v141
  %v640 = vunpack.c.l.b16 %v142
  %v641 = vunpack.c.l.b16 %v143
  %v642 = vunpack.c.l.b16 %v144
  %v643 = vunpack.c.l.b16 %v145
  %v644 = vunpack.c.l.b16 %v146
  %v645 = vunpack.c.l.b16 %v147
  %v646 = vunpack.c.l.b16 %v148
  %v647 = vunpack.c.l.b16 %v149
  %v648 = vunpack.c.l.b16 %v150
  %v649 = vunpack.c.l.b16 %v151
  %v650 = vunpack.c.l.b16 %v152
  %v651 = vunpack.c.l.b16 %v153
  %v652 = vunpack.c.l.b16 %v154
  %v653 = vunpack.c.l.b16 %v155
  %v654 = vunpack.c.l.b16 %v156
  %v655 = vunpack.c.l.b16 %v157
  %v656 = vunpack.c.l.b16 %v158
  %v657 = vunpack.c.l.b16 %v159
  %v658 = vunpack.c.l.b16 %v160
  %v659 = vpack.c.b16 %v612, %v611
  %v660 = vpack.c.b16 %v614, %v613
  %v661 = vpack.c.b16 %v616, %v615
  %v662 = vpack.c.b16 %v618, %v617
  %v663 = vpack.c.b16 %v620, %v619
  %v664 = vpack.c.b16 %v622, %v621
  %v665 = vpack.c.b16 %v624, %v623
  %v666 = vpack.c.b16 %v626, %v625
  %v667 = vpack.c.b16 %v628, %v627
  %v668 = vpack.c.b16 %v630, %v629
  %v669 = vpack.c.b16 %v632, %v631
  %v670 = vpack.c.b16 %v634, %v633
  %v671 = vpack.c.b16 %v636, %v635
  %v672 = vpack.c.b16 %v638, %v637
  %v673 = vpack.c.b16 %v640, %v639
  %v674 = vpack.c.b16 %v642, %v641
  %v675 = vpack.c.b16 %v644, %v643
  %v676 = vpack.c.b16 %v646, %v645
  %v677 = vpack.c.b16 %v648, %v647
  %v678 = vpack.c.b16 %v650, %v649
  %v679 = vpack.c.b16 %v652, %v651
  %v680 = vpack.c.b16 %v654, %v653
  %v681 = vpack.c.b16 %v656, %v655
  %v682 = vpack.c.b16 %v658, %v657
  %707 = vmatprep.subr.bf16.mxu0 0
  %708 = vmatpush1.bf16.msra.mxu0 %v666
  %709 = vmatprep.subr.bf16.mxu0 0
  %710 = vmatpush1.bf16.msra.mxu0 %v665
  %711 = vmatprep.subr.bf16.mxu0 0
  %712 = vmatpush1.bf16.msra.mxu0 %v664
  %713 = vmatprep.subr.bf16.mxu0 0
  %714 = vmatpush1.bf16.msra.mxu0 %v663
  %715 = vmatprep.subr.bf16.mxu0 0
  %716 = vmatpush1.bf16.msra.mxu0 %v662
  %717 = vmatprep.subr.bf16.mxu0 0
  %718 = vmatpush1.bf16.msra.mxu0 %v661
  %719 = vmatprep.subr.bf16.mxu0 0
  %720 = vmatpush1.bf16.msra.mxu0 %v660
  %721 = vmatprep.subr.bf16.mxu0 0
  %722 = vmatpush1.bf16.msra.mxu0 %v659
  %723 = vmatprep.subr.bf16.mxu0 0
  %724 = vmatpush2.bf16.msra.mxu0 %v674
  %725 = vmatprep.subr.bf16.mxu0 0
  %726 = vmatpush2.bf16.msra.mxu0 %v673
  %727 = vmatprep.subr.bf16.mxu0 0
  %728 = vmatpush2.bf16.msra.mxu0 %v672
  %729 = vmatprep.subr.bf16.mxu0 0
  %730 = vmatpush2.bf16.msra.mxu0 %v671
  %731 = vmatprep.subr.bf16.mxu0 0
  %732 = vmatpush2.bf16.msra.mxu0 %v670
  %733 = vmatprep.subr.bf16.mxu0 0
  %734 = vmatpush2.bf16.msra.mxu0 %v669
  %735 = vmatprep.subr.bf16.mxu0 0
  %736 = vmatpush2.bf16.msra.mxu0 %v668
  %737 = vmatprep.subr.bf16.mxu0 0
  %738 = vmatpush2.bf16.msra.mxu0 %v667
  %739 = vmatprep.mubr.bf16.mxu0 %v414
  %740 = vmatmul.mubr.bf16.gmra.mxu0 %v413
  %v741 = vpop.f32.mrf.mxu0
  %v742 = vadd.f32 %v166, %v741
  %v743 = vpop.f32.mrf.mxu0
  %v744 = vpop.f32.mrf.mxu0
  %v745 = vadd.f32 %v166, %v744
  %v746 = vpop.f32.mrf.mxu0
  %747 = vmatprep.mubr.bf16.mxu0 %v417
  %748 = vmatmul.mubr.bf16.gmra.mxu0 %v416
  %v749 = vpop.f32.mrf.mxu0
  %v750 = vadd.f32 %v166, %v749
  %v751 = vpop.f32.mrf.mxu0
  %v752 = vpop.f32.mrf.mxu0
  %v753 = vadd.f32 %v166, %v752
  %v754 = vpop.f32.mrf.mxu0
  %755 = vmatprep.mubr.bf16.mxu0 %v420
  %756 = vmatmul.mubr.bf16.gmra.mxu0 %v419
  %v757 = vpop.f32.mrf.mxu0
  %v758 = vadd.f32 %v166, %v757
  %v759 = vpop.f32.mrf.mxu0
  %v760 = vpop.f32.mrf.mxu0
  %v761 = vadd.f32 %v166, %v760
  %v762 = vpop.f32.mrf.mxu0
  %763 = vmatprep.mubr.bf16.mxu0 %v423
  %764 = vmatmul.mubr.bf16.gmra.mxu0 %v422
  %v765 = vpop.f32.mrf.mxu0
  %v766 = vadd.f32 %v166, %v765
  %v767 = vpop.f32.mrf.mxu0
  %v768 = vpop.f32.mrf.mxu0
  %v769 = vadd.f32 %v166, %v768
  %v770 = vpop.f32.mrf.mxu0
  %771 = vmatprep.mubr.bf16.mxu0 %v426
  %772 = vmatmul.mubr.bf16.gmra.mxu0 %v425
  %v773 = vpop.f32.mrf.mxu0
  %v774 = vadd.f32 %v166, %v773
  %v775 = vpop.f32.mrf.mxu0
  %v776 = vpop.f32.mrf.mxu0
  %v777 = vadd.f32 %v166, %v776
  %v778 = vpop.f32.mrf.mxu0
  %779 = vmatprep.mubr.bf16.mxu0 %v429
  %780 = vmatmul.mubr.bf16.gmra.mxu0 %v428
  %v781 = vpop.f32.mrf.mxu0
  %v782 = vadd.f32 %v166, %v781
  %v783 = vpop.f32.mrf.mxu0
  %v784 = vpop.f32.mrf.mxu0
  %v785 = vadd.f32 %v166, %v784
  %v786 = vpop.f32.mrf.mxu0
  %787 = vmatprep.mubr.bf16.mxu0 %v432
  %788 = vmatmul.mubr.bf16.gmra.mxu0 %v431
  %v789 = vpop.f32.mrf.mxu0
  %v790 = vadd.f32 %v166, %v789
  %v791 = vpop.f32.mrf.mxu0
  %v792 = vpop.f32.mrf.mxu0
  %v793 = vadd.f32 %v166, %v792
  %v794 = vpop.f32.mrf.mxu0
  %795 = vmatprep.mubr.bf16.mxu0 %v435
  %796 = vmatmul.mubr.bf16.gmra.mxu0 %v434
  %v797 = vpop.f32.mrf.mxu0
  %v798 = vadd.f32 %v166, %v797
  %v799 = vpop.f32.mrf.mxu0
  %v800 = vpop.f32.mrf.mxu0
  %v801 = vadd.f32 %v166, %v800
  %v802 = vpop.f32.mrf.mxu0
  %803 = vmatprep.mubr.bf16.mxu0 %v438
  %804 = vmatmul.mubr.bf16.gmra.mxu0 %v437
  %v805 = vpop.f32.mrf.mxu0
  %v806 = vadd.f32 %v166, %v805
  %v807 = vpop.f32.mrf.mxu0
  %v808 = vpop.f32.mrf.mxu0
  %v809 = vadd.f32 %v166, %v808
  %v810 = vpop.f32.mrf.mxu0
  %811 = vmatprep.mubr.bf16.mxu0 %v441
  %812 = vmatmul.mubr.bf16.gmra.mxu0 %v440
  %v813 = vpop.f32.mrf.mxu0
  %v814 = vadd.f32 %v166, %v813
  %v815 = vpop.f32.mrf.mxu0
  %v816 = vpop.f32.mrf.mxu0
  %v817 = vadd.f32 %v166, %v816
  %v818 = vpop.f32.mrf.mxu0
  %819 = vmatprep.mubr.bf16.mxu0 %v444
  %820 = vmatmul.mubr.bf16.gmra.mxu0 %v443
  %v821 = vpop.f32.mrf.mxu0
  %v822 = vadd.f32 %v166, %v821
  %v823 = vpop.f32.mrf.mxu0
  %v824 = vpop.f32.mrf.mxu0
  %v825 = vadd.f32 %v166, %v824
  %v826 = vpop.f32.mrf.mxu0
  %827 = vmatprep.mubr.bf16.mxu0 %v447
  %828 = vmatmul.mubr.bf16.gmra.mxu0 %v446
  %v829 = vpop.f32.mrf.mxu0
  %v830 = vadd.f32 %v166, %v829
  %v831 = vpop.f32.mrf.mxu0
  %v832 = vpop.f32.mrf.mxu0
  %v833 = vadd.f32 %v166, %v832
  %v834 = vpop.f32.mrf.mxu0
  %835 = vmatprep.mubr.bf16.mxu0 %v450
  %836 = vmatmul.mubr.bf16.gmra.mxu0 %v449
  %v837 = vpop.f32.mrf.mxu0
  %v838 = vadd.f32 %v166, %v837
  %v839 = vpop.f32.mrf.mxu0
  %v840 = vpop.f32.mrf.mxu0
  %v841 = vadd.f32 %v166, %v840
  %v842 = vpop.f32.mrf.mxu0
  %843 = vmatprep.mubr.bf16.mxu0 %v453
  %844 = vmatmul.mubr.bf16.gmra.mxu0 %v452
  %v845 = vpop.f32.mrf.mxu0
  %v846 = vadd.f32 %v166, %v845
  %v847 = vpop.f32.mrf.mxu0
  %v848 = vpop.f32.mrf.mxu0
  %v849 = vadd.f32 %v166, %v848
  %v850 = vpop.f32.mrf.mxu0
  %851 = vmatprep.mubr.bf16.mxu0 %v456
  %852 = vmatmul.mubr.bf16.gmra.mxu0 %v455
  %v853 = vpop.f32.mrf.mxu0
  %v854 = vadd.f32 %v166, %v853
  %v855 = vpop.f32.mrf.mxu0
  %v856 = vpop.f32.mrf.mxu0
  %v857 = vadd.f32 %v166, %v856
  %v858 = vpop.f32.mrf.mxu0
  %859 = vmatprep.mubr.bf16.mxu0 %v459
  %860 = vmatmul.mubr.bf16.gmra.mxu0 %v458
  %v861 = vpop.f32.mrf.mxu0
  %v862 = vadd.f32 %v166, %v861
  %v863 = vpop.f32.mrf.mxu0
  %v864 = vpop.f32.mrf.mxu0
  %v865 = vadd.f32 %v166, %v864
  %v866 = vpop.f32.mrf.mxu0
  %867 = vmatprep.mubr.bf16.mxu0 %v462
  %868 = vmatmul.mubr.bf16.gmra.mxu0 %v461
  %v869 = vpop.f32.mrf.mxu0
  %v870 = vadd.f32 %v166, %v869
  %v871 = vpop.f32.mrf.mxu0
  %v872 = vpop.f32.mrf.mxu0
  %v873 = vadd.f32 %v166, %v872
  %v874 = vpop.f32.mrf.mxu0
  %875 = vmatprep.mubr.bf16.mxu0 %v465
  %876 = vmatmul.mubr.bf16.gmra.mxu0 %v464
  %v877 = vpop.f32.mrf.mxu0
  %v878 = vadd.f32 %v166, %v877
  %v879 = vpop.f32.mrf.mxu0
  %v880 = vpop.f32.mrf.mxu0
  %v881 = vadd.f32 %v166, %v880
  %v882 = vpop.f32.mrf.mxu0
  %883 = vmatprep.mubr.bf16.mxu0 %v468
  %884 = vmatmul.mubr.bf16.gmra.mxu0 %v467
  %v885 = vpop.f32.mrf.mxu0
  %v886 = vadd.f32 %v166, %v885
  %v887 = vpop.f32.mrf.mxu0
  %v888 = vpop.f32.mrf.mxu0
  %v889 = vadd.f32 %v166, %v888
  %v890 = vpop.f32.mrf.mxu0
  %891 = vmatprep.mubr.bf16.mxu0 %v471
  %892 = vmatmul.mubr.bf16.gmra.mxu0 %v470
  %v893 = vpop.f32.mrf.mxu0
  %v894 = vadd.f32 %v166, %v893
  %v895 = vpop.f32.mrf.mxu0
  %v896 = vpop.f32.mrf.mxu0
  %v897 = vadd.f32 %v166, %v896
  %v898 = vpop.f32.mrf.mxu0
  %899 = vmatprep.mubr.bf16.mxu0 %v474
  %900 = vmatmul.mubr.bf16.gmra.mxu0 %v473
  %v901 = vpop.f32.mrf.mxu0
  %v902 = vadd.f32 %v166, %v901
  %v903 = vpop.f32.mrf.mxu0
  %v904 = vpop.f32.mrf.mxu0
  %v905 = vadd.f32 %v166, %v904
  %v906 = vpop.f32.mrf.mxu0
  %907 = vmatprep.mubr.bf16.mxu0 %v477
  %908 = vmatmul.mubr.bf16.gmra.mxu0 %v476
  %v909 = vpop.f32.mrf.mxu0
  %v910 = vadd.f32 %v166, %v909
  %v911 = vpop.f32.mrf.mxu0
  %v912 = vpop.f32.mrf.mxu0
  %v913 = vadd.f32 %v166, %v912
  %v914 = vpop.f32.mrf.mxu0
  %915 = vmatprep.mubr.bf16.mxu0 %v480
  %916 = vmatmul.mubr.bf16.gmra.mxu0 %v479
  %v917 = vpop.f32.mrf.mxu0
  %v918 = vadd.f32 %v166, %v917
  %v919 = vpop.f32.mrf.mxu0
  %v920 = vpop.f32.mrf.mxu0
  %v921 = vadd.f32 %v166, %v920
  %v922 = vpop.f32.mrf.mxu0
  %923 = vmatprep.mubr.bf16.mxu0 %v483
  %924 = vmatmul.mubr.bf16.gmra.mxu0 %v482
  %v925 = vpop.f32.mrf.mxu0
  %v926 = vadd.f32 %v166, %v925
  %v927 = vpop.f32.mrf.mxu0
  %v928 = vpop.f32.mrf.mxu0
  %v929 = vadd.f32 %v166, %v928
  %v930 = vpop.f32.mrf.mxu0
  %931 = vmatprep.mubr.bf16.mxu0 %v486
  %932 = vmatmul.mubr.bf16.gmra.mxu0 %v485
  %v933 = vpop.f32.mrf.mxu0
  %v934 = vadd.f32 %v166, %v933
  %v935 = vpop.f32.mrf.mxu0
  %v936 = vpop.f32.mrf.mxu0
  %v937 = vpop.f32.mrf.mxu0
  %938 = vdwg.mxu0
  %939 = vmatprep.subr.bf16.mxu0 0
  %940 = vmatpush1.bf16.msra.mxu0 %v682
  %941 = vmatprep.subr.bf16.mxu0 0
  %942 = vmatpush1.bf16.msra.mxu0 %v681
  %943 = vmatprep.subr.bf16.mxu0 0
  %944 = vmatpush1.bf16.msra.mxu0 %v680
  %945 = vmatprep.subr.bf16.mxu0 0
  %946 = vmatpush1.bf16.msra.mxu0 %v679
  %947 = vmatprep.subr.bf16.mxu0 0
  %948 = vmatpush1.bf16.msra.mxu0 %v678
  %949 = vmatprep.subr.bf16.mxu0 0
  %950 = vmatpush1.bf16.msra.mxu0 %v677
  %951 = vmatprep.subr.bf16.mxu0 0
  %952 = vmatpush1.bf16.msra.mxu0 %v676
  %953 = vmatprep.subr.bf16.mxu0 0
  %954 = vmatpush1.bf16.msra.mxu0 %v675
  %955 = vmatprep.subr.bf16.mxu0 0
  %956 = vmatpush2.bf16.msra.mxu0 0
  %957 = vmatprep.subr.bf16.mxu0 0
  %958 = vmatpush2.bf16.msra.mxu0 0
  %959 = vmatprep.subr.bf16.mxu0 0
  %960 = vmatpush2.bf16.msra.mxu0 0
  %961 = vmatprep.subr.bf16.mxu0 0
  %962 = vmatpush2.bf16.msra.mxu0 0
  %963 = vmatprep.subr.bf16.mxu0 0
  %964 = vmatpush2.bf16.msra.mxu0 0
  %965 = vmatprep.subr.bf16.mxu0 0
  %966 = vmatpush2.bf16.msra.mxu0 0
  %967 = vmatprep.subr.bf16.mxu0 0
  %968 = vmatpush2.bf16.msra.mxu0 0
  %969 = vmatprep.subr.bf16.mxu0 0
  %970 = vmatpush2.bf16.msra.mxu0 0
  %971 = vmatprep.mubr.bf16.mxu0 0
  %972 = vmatmul.mubr.bf16.gmra.mxu0 %v415
  %v973 = vpop.f32.mrf.mxu0
  %v974 = vadd.f32 %v742, %v973
  %v975 = vpop.f32.mrf.mxu0
  %v976 = vpop.f32.mrf.mxu0
  %v977 = vadd.f32 %v745, %v976
  %v978 = vpop.f32.mrf.mxu0
  %979 = vmatprep.mubr.bf16.mxu0 0
  %980 = vmatmul.mubr.bf16.gmra.mxu0 %v418
  %v981 = vpop.f32.mrf.mxu0
  %v982 = vadd.f32 %v750, %v981
  %v983 = vpop.f32.mrf.mxu0
  %v984 = vpop.f32.mrf.mxu0
  %v985 = vadd.f32 %v753, %v984
  %v986 = vpop.f32.mrf.mxu0
  %987 = vmatprep.mubr.bf16.mxu0 0
  %988 = vmatmul.mubr.bf16.gmra.mxu0 %v421
  %v989 = vpop.f32.mrf.mxu0
  %v990 = vadd.f32 %v758, %v989
  %v991 = vpop.f32.mrf.mxu0
  %v992 = vpop.f32.mrf.mxu0
  %v993 = vadd.f32 %v761, %v992
  %v994 = vpop.f32.mrf.mxu0
  %995 = vmatprep.mubr.bf16.mxu0 0
  %996 = vmatmul.mubr.bf16.gmra.mxu0 %v424
  %v997 = vpop.f32.mrf.mxu0
  %v998 = vadd.f32 %v766, %v997
  %v999 = vpop.f32.mrf.mxu0
  %v1000 = vpop.f32.mrf.mxu0
  %v1001 = vadd.f32 %v769, %v1000
  %v1002 = vpop.f32.mrf.mxu0
  %1003 = vmatprep.mubr.bf16.mxu0 0
  %1004 = vmatmul.mubr.bf16.gmra.mxu0 %v427
  %v1005 = vpop.f32.mrf.mxu0
  %v1006 = vadd.f32 %v774, %v1005
  %v1007 = vpop.f32.mrf.mxu0
  %v1008 = vpop.f32.mrf.mxu0
  %v1009 = vadd.f32 %v777, %v1008
  %v1010 = vpop.f32.mrf.mxu0
  %1011 = vmatprep.mubr.bf16.mxu0 0
  %1012 = vmatmul.mubr.bf16.gmra.mxu0 %v430
  %v1013 = vpop.f32.mrf.mxu0
  %v1014 = vadd.f32 %v782, %v1013
  %v1015 = vpop.f32.mrf.mxu0
  %v1016 = vpop.f32.mrf.mxu0
  %v1017 = vadd.f32 %v785, %v1016
  %v1018 = vpop.f32.mrf.mxu0
  %1019 = vmatprep.mubr.bf16.mxu0 0
  %1020 = vmatmul.mubr.bf16.gmra.mxu0 %v433
  %v1021 = vpop.f32.mrf.mxu0
  %v1022 = vadd.f32 %v790, %v1021
  %v1023 = vpop.f32.mrf.mxu0
  %v1024 = vpop.f32.mrf.mxu0
  %v1025 = vadd.f32 %v793, %v1024
  %v1026 = vpop.f32.mrf.mxu0
  %1027 = vmatprep.mubr.bf16.mxu0 0
  %1028 = vmatmul.mubr.bf16.gmra.mxu0 %v436
  %v1029 = vpop.f32.mrf.mxu0
  %v1030 = vadd.f32 %v798, %v1029
  %v1031 = vpop.f32.mrf.mxu0
  %v1032 = vpop.f32.mrf.mxu0
  %v1033 = vadd.f32 %v801, %v1032
  %v1034 = vpop.f32.mrf.mxu0
  %1035 = vmatprep.mubr.bf16.mxu0 0
  %1036 = vmatmul.mubr.bf16.gmra.mxu0 %v439
  %v1037 = vpop.f32.mrf.mxu0
  %v1038 = vadd.f32 %v806, %v1037
  %v1039 = vpop.f32.mrf.mxu0
  %v1040 = vpop.f32.mrf.mxu0
  %v1041 = vadd.f32 %v809, %v1040
  %v1042 = vpop.f32.mrf.mxu0
  %1043 = vmatprep.mubr.bf16.mxu0 0
  %1044 = vmatmul.mubr.bf16.gmra.mxu0 %v442
  %v1045 = vpop.f32.mrf.mxu0
  %v1046 = vadd.f32 %v814, %v1045
  %v1047 = vpop.f32.mrf.mxu0
  %v1048 = vpop.f32.mrf.mxu0
  %v1049 = vadd.f32 %v817, %v1048
  %v1050 = vpop.f32.mrf.mxu0
  %1051 = vmatprep.mubr.bf16.mxu0 0
  %1052 = vmatmul.mubr.bf16.gmra.mxu0 %v445
  %v1053 = vpop.f32.mrf.mxu0
  %v1054 = vadd.f32 %v822, %v1053
  %v1055 = vpop.f32.mrf.mxu0
  %v1056 = vpop.f32.mrf.mxu0
  %v1057 = vadd.f32 %v825, %v1056
  %v1058 = vpop.f32.mrf.mxu0
  %1059 = vmatprep.mubr.bf16.mxu0 0
  %1060 = vmatmul.mubr.bf16.gmra.mxu0 %v448
  %v1061 = vpop.f32.mrf.mxu0
  %v1062 = vadd.f32 %v830, %v1061
  %v1063 = vpop.f32.mrf.mxu0
  %v1064 = vpop.f32.mrf.mxu0
  %v1065 = vadd.f32 %v833, %v1064
  %v1066 = vpop.f32.mrf.mxu0
  %1067 = vmatprep.mubr.bf16.mxu0 0
  %1068 = vmatmul.mubr.bf16.gmra.mxu0 %v451
  %v1069 = vpop.f32.mrf.mxu0
  %v1070 = vadd.f32 %v838, %v1069
  %v1071 = vpop.f32.mrf.mxu0
  %v1072 = vpop.f32.mrf.mxu0
  %v1073 = vadd.f32 %v841, %v1072
  %v1074 = vpop.f32.mrf.mxu0
  %1075 = vmatprep.mubr.bf16.mxu0 0
  %1076 = vmatmul.mubr.bf16.gmra.mxu0 %v454
  %v1077 = vpop.f32.mrf.mxu0
  %v1078 = vadd.f32 %v846, %v1077
  %v1079 = vpop.f32.mrf.mxu0
  %v1080 = vpop.f32.mrf.mxu0
  %v1081 = vadd.f32 %v849, %v1080
  %v1082 = vpop.f32.mrf.mxu0
  %1083 = vmatprep.mubr.bf16.mxu0 0
  %1084 = vmatmul.mubr.bf16.gmra.mxu0 %v457
  %v1085 = vpop.f32.mrf.mxu0
  %v1086 = vadd.f32 %v854, %v1085
  %v1087 = vpop.f32.mrf.mxu0
  %v1088 = vpop.f32.mrf.mxu0
  %v1089 = vadd.f32 %v857, %v1088
  %v1090 = vpop.f32.mrf.mxu0
  %1091 = vmatprep.mubr.bf16.mxu0 0
  %1092 = vmatmul.mubr.bf16.gmra.mxu0 %v460
  %v1093 = vpop.f32.mrf.mxu0
  %v1094 = vadd.f32 %v862, %v1093
  %v1095 = vpop.f32.mrf.mxu0
  %v1096 = vpop.f32.mrf.mxu0
  %v1097 = vadd.f32 %v865, %v1096
  %v1098 = vpop.f32.mrf.mxu0
  %1099 = vmatprep.mubr.bf16.mxu0 0
  %1100 = vmatmul.mubr.bf16.gmra.mxu0 %v463
  %v1101 = vpop.f32.mrf.mxu0
  %v1102 = vadd.f32 %v870, %v1101
  %v1103 = vpop.f32.mrf.mxu0
  %v1104 = vpop.f32.mrf.mxu0
  %v1105 = vadd.f32 %v873, %v1104
  %v1106 = vpop.f32.mrf.mxu0
  %1107 = vmatprep.mubr.bf16.mxu0 0
  %1108 = vmatmul.mubr.bf16.gmra.mxu0 %v466
  %v1109 = vpop.f32.mrf.mxu0
  %v1110 = vadd.f32 %v878, %v1109
  %v1111 = vpop.f32.mrf.mxu0
  %v1112 = vpop.f32.mrf.mxu0
  %v1113 = vadd.f32 %v881, %v1112
  %v1114 = vpop.f32.mrf.mxu0
  %1115 = vmatprep.mubr.bf16.mxu0 0
  %1116 = vmatmul.mubr.bf16.gmra.mxu0 %v469
  %v1117 = vpop.f32.mrf.mxu0
  %v1118 = vadd.f32 %v886, %v1117
  %v1119 = vpop.f32.mrf.mxu0
  %v1120 = vpop.f32.mrf.mxu0
  %v1121 = vadd.f32 %v889, %v1120
  %v1122 = vpop.f32.mrf.mxu0
  %1123 = vmatprep.mubr.bf16.mxu0 0
  %1124 = vmatmul.mubr.bf16.gmra.mxu0 %v472
  %v1125 = vpop.f32.mrf.mxu0
  %v1126 = vadd.f32 %v894, %v1125
  %v1127 = vpop.f32.mrf.mxu0
  %v1128 = vpop.f32.mrf.mxu0
  %v1129 = vadd.f32 %v897, %v1128
  %v1130 = vpop.f32.mrf.mxu0
  %1131 = vmatprep.mubr.bf16.mxu0 0
  %1132 = vmatmul.mubr.bf16.gmra.mxu0 %v475
  %v1133 = vpop.f32.mrf.mxu0
  %v1134 = vadd.f32 %v902, %v1133
  %v1135 = vpop.f32.mrf.mxu0
  %v1136 = vpop.f32.mrf.mxu0
  %v1137 = vadd.f32 %v905, %v1136
  %v1138 = vpop.f32.mrf.mxu0
  %1139 = vmatprep.mubr.bf16.mxu0 0
  %1140 = vmatmul.mubr.bf16.gmra.mxu0 %v478
  %v1141 = vpop.f32.mrf.mxu0
  %v1142 = vadd.f32 %v910, %v1141
  %v1143 = vpop.f32.mrf.mxu0
  %v1144 = vpop.f32.mrf.mxu0
  %v1145 = vadd.f32 %v913, %v1144
  %v1146 = vpop.f32.mrf.mxu0
  %1147 = vmatprep.mubr.bf16.mxu0 0
  %1148 = vmatmul.mubr.bf16.gmra.mxu0 %v481
  %v1149 = vpop.f32.mrf.mxu0
  %v1150 = vadd.f32 %v918, %v1149
  %v1151 = vpop.f32.mrf.mxu0
  %v1152 = vpop.f32.mrf.mxu0
  %v1153 = vadd.f32 %v921, %v1152
  %v1154 = vpop.f32.mrf.mxu0
  %1155 = vmatprep.mubr.bf16.mxu0 0
  %1156 = vmatmul.mubr.bf16.gmra.mxu0 %v484
  %v1157 = vpop.f32.mrf.mxu0
  %v1158 = vadd.f32 %v926, %v1157
  %v1159 = vpop.f32.mrf.mxu0
  %v1160 = vpop.f32.mrf.mxu0
  %v1161 = vadd.f32 %v929, %v1160
  %v1162 = vpop.f32.mrf.mxu0
  %1163 = vmatprep.mubr.bf16.mxu0 0
  %1164 = vmatmul.mubr.bf16.gmra.mxu0 %v487
  %v1165 = vpop.f32.mrf.mxu0
  %v1166 = vadd.f32 %v934, %v1165
  %v1167 = vpop.f32.mrf.mxu0
  %v1168 = vpop.f32.mrf.mxu0
  %v1169 = vpop.f32.mrf.mxu0
  %1170 = vdwg.mxu0
  %vm1171 = vcmp.ge.f32.partialorder %v974, 0.0
  %vm1172 = vcmp.ge.f32.partialorder %v977, 0.0
  %vm1173 = vcmp.ge.f32.partialorder %v982, 0.0
  %vm1174 = vcmp.ge.f32.partialorder %v985, 0.0
  %vm1175 = vcmp.ge.f32.partialorder %v990, 0.0
  %vm1176 = vcmp.ge.f32.partialorder %v993, 0.0
  %vm1177 = vcmp.ge.f32.partialorder %v998, 0.0
  %vm1178 = vcmp.ge.f32.partialorder %v1001, 0.0
  %vm1179 = vcmp.ge.f32.partialorder %v1006, 0.0
  %vm1180 = vcmp.ge.f32.partialorder %v1009, 0.0
  %vm1181 = vcmp.ge.f32.partialorder %v1014, 0.0
  %vm1182 = vcmp.ge.f32.partialorder %v1017, 0.0
  %vm1183 = vcmp.ge.f32.partialorder %v1022, 0.0
  %vm1184 = vcmp.ge.f32.partialorder %v1025, 0.0
  %vm1185 = vcmp.ge.f32.partialorder %v1030, 0.0
  %vm1186 = vcmp.ge.f32.partialorder %v1033, 0.0
  %vm1187 = vcmp.ge.f32.partialorder %v1038, 0.0
  %vm1188 = vcmp.ge.f32.partialorder %v1041, 0.0
  %vm1189 = vcmp.ge.f32.partialorder %v1046, 0.0
  %vm1190 = vcmp.ge.f32.partialorder %v1049, 0.0
  %vm1191 = vcmp.ge.f32.partialorder %v1054, 0.0
  %vm1192 = vcmp.ge.f32.partialorder %v1057, 0.0
  %vm1193 = vcmp.ge.f32.partialorder %v1062, 0.0
  %vm1194 = vcmp.ge.f32.partialorder %v1065, 0.0
  %vm1195 = vcmp.ge.f32.partialorder %v1070, 0.0
  %vm1196 = vcmp.ge.f32.partialorder %v1073, 0.0
  %vm1197 = vcmp.ge.f32.partialorder %v1078, 0.0
  %vm1198 = vcmp.ge.f32.partialorder %v1081, 0.0
  %vm1199 = vcmp.ge.f32.partialorder %v1086, 0.0
  %vm1200 = vcmp.ge.f32.partialorder %v1089, 0.0
  %vm1201 = vcmp.ge.f32.partialorder %v1094, 0.0
  %vm1202 = vcmp.ge.f32.partialorder %v1097, 0.0
  %vm1203 = vcmp.ge.f32.partialorder %v1102, 0.0
  %vm1204 = vcmp.ge.f32.partialorder %v1105, 0.0
  %vm1205 = vcmp.ge.f32.partialorder %v1110, 0.0
  %vm1206 = vcmp.ge.f32.partialorder %v1113, 0.0
  %vm1207 = vcmp.ge.f32.partialorder %v1118, 0.0
  %vm1208 = vcmp.ge.f32.partialorder %v1121, 0.0
  %vm1209 = vcmp.ge.f32.partialorder %v1126, 0.0
  %vm1210 = vcmp.ge.f32.partialorder %v1129, 0.0
  %vm1211 = vcmp.ge.f32.partialorder %v1134, 0.0
  %vm1212 = vcmp.ge.f32.partialorder %v1137, 0.0
  %vm1213 = vcmp.ge.f32.partialorder %v1142, 0.0
  %vm1214 = vcmp.ge.f32.partialorder %v1145, 0.0
  %vm1215 = vcmp.ge.f32.partialorder %v1150, 0.0
  %vm1216 = vcmp.ge.f32.partialorder %v1153, 0.0
  %vm1217 = vcmp.ge.f32.partialorder %v1158, 0.0
  %vm1218 = vcmp.ge.f32.partialorder %v1161, 0.0
  %vm1219 = vcmp.ge.f32.partialorder %v1166, 0.0
  %v1220 = vmul.f32 %v974, 0.01
  %v1221 = vmul.f32 %v977, 0.01
  %v1222 = vmul.f32 %v982, 0.01
  %v1223 = vmul.f32 %v985, 0.01
  %v1224 = vmul.f32 %v990, 0.01
  %v1225 = vmul.f32 %v993, 0.01
  %v1226 = vmul.f32 %v998, 0.01
  %v1227 = vmul.f32 %v1001, 0.01
  %v1228 = vmul.f32 %v1006, 0.01
  %v1229 = vmul.f32 %v1009, 0.01
  %v1230 = vmul.f32 %v1014, 0.01
  %v1231 = vmul.f32 %v1017, 0.01
  %v1232 = vmul.f32 %v1022, 0.01
  %v1233 = vmul.f32 %v1025, 0.01
  %v1234 = vmul.f32 %v1030, 0.01
  %v1235 = vmul.f32 %v1033, 0.01
  %v1236 = vmul.f32 %v1038, 0.01
  %v1237 = vmul.f32 %v1041, 0.01
  %v1238 = vmul.f32 %v1046, 0.01
  %v1239 = vmul.f32 %v1049, 0.01
  %v1240 = vmul.f32 %v1054, 0.01
  %v1241 = vmul.f32 %v1057, 0.01
  %v1242 = vmul.f32 %v1062, 0.01
  %v1243 = vmul.f32 %v1065, 0.01
  %v1244 = vmul.f32 %v1070, 0.01
  %v1245 = vmul.f32 %v1073, 0.01
  %v1246 = vmul.f32 %v1078, 0.01
  %v1247 = vmul.f32 %v1081, 0.01
  %v1248 = vmul.f32 %v1086, 0.01
  %v1249 = vmul.f32 %v1089, 0.01
  %v1250 = vmul.f32 %v1094, 0.01
  %v1251 = vmul.f32 %v1097, 0.01
  %v1252 = vmul.f32 %v1102, 0.01
  %v1253 = vmul.f32 %v1105, 0.01
  %v1254 = vmul.f32 %v1110, 0.01
  %v1255 = vmul.f32 %v1113, 0.01
  %v1256 = vmul.f32 %v1118, 0.01
  %v1257 = vmul.f32 %v1121, 0.01
  %v1258 = vmul.f32 %v1126, 0.01
  %v1259 = vmul.f32 %v1129, 0.01
  %v1260 = vmul.f32 %v1134, 0.01
  %v1261 = vmul.f32 %v1137, 0.01
  %v1262 = vmul.f32 %v1142, 0.01
  %v1263 = vmul.f32 %v1145, 0.01
  %v1264 = vmul.f32 %v1150, 0.01
  %v1265 = vmul.f32 %v1153, 0.01
  %v1266 = vmul.f32 %v1158, 0.01
  %v1267 = vmul.f32 %v1161, 0.01
  %v1268 = vmul.f32 %v1166, 0.01
  %v1269 = vsel %vm1171, %v974, %v1220
  %v1270 = vsel %vm1172, %v977, %v1221
  %v1271 = vsel %vm1173, %v982, %v1222
  %v1272 = vsel %vm1174, %v985, %v1223
  %v1273 = vsel %vm1175, %v990, %v1224
  %v1274 = vsel %vm1176, %v993, %v1225
  %v1275 = vsel %vm1177, %v998, %v1226
  %v1276 = vsel %vm1178, %v1001, %v1227
  %v1277 = vsel %vm1179, %v1006, %v1228
  %v1278 = vsel %vm1180, %v1009, %v1229
  %v1279 = vsel %vm1181, %v1014, %v1230
  %v1280 = vsel %vm1182, %v1017, %v1231
  %v1281 = vsel %vm1183, %v1022, %v1232
  %v1282 = vsel %vm1184, %v1025, %v1233
  %v1283 = vsel %vm1185, %v1030, %v1234
  %v1284 = vsel %vm1186, %v1033, %v1235
  %v1285 = vsel %vm1187, %v1038, %v1236
  %v1286 = vsel %vm1188, %v1041, %v1237
  %v1287 = vsel %vm1189, %v1046, %v1238
  %v1288 = vsel %vm1190, %v1049, %v1239
  %v1289 = vsel %vm1191, %v1054, %v1240
  %v1290 = vsel %vm1192, %v1057, %v1241
  %v1291 = vsel %vm1193, %v1062, %v1242
  %v1292 = vsel %vm1194, %v1065, %v1243
  %v1293 = vsel %vm1195, %v1070, %v1244
  %v1294 = vsel %vm1196, %v1073, %v1245
  %v1295 = vsel %vm1197, %v1078, %v1246
  %v1296 = vsel %vm1198, %v1081, %v1247
  %v1297 = vsel %vm1199, %v1086, %v1248
  %v1298 = vsel %vm1200, %v1089, %v1249
  %v1299 = vsel %vm1201, %v1094, %v1250
  %v1300 = vsel %vm1202, %v1097, %v1251
  %v1301 = vsel %vm1203, %v1102, %v1252
  %v1302 = vsel %vm1204, %v1105, %v1253
  %v1303 = vsel %vm1205, %v1110, %v1254
  %v1304 = vsel %vm1206, %v1113, %v1255
  %v1305 = vsel %vm1207, %v1118, %v1256
  %v1306 = vsel %vm1208, %v1121, %v1257
  %v1307 = vsel %vm1209, %v1126, %v1258
  %v1308 = vsel %vm1210, %v1129, %v1259
  %v1309 = vsel %vm1211, %v1134, %v1260
  %v1310 = vsel %vm1212, %v1137, %v1261
  %v1311 = vsel %vm1213, %v1142, %v1262
  %v1312 = vsel %vm1214, %v1145, %v1263
  %v1313 = vsel %vm1215, %v1150, %v1264
  %v1314 = vsel %vm1216, %v1153, %v1265
  %v1315 = vsel %vm1217, %v1158, %v1266
  %v1316 = vsel %vm1218, %v1161, %v1267
  %v1317 = vsel %vm1219, %v1166, %v1268
  %v1318 = vpack.c.bf16 %v1270, %v1269
  %v1319 = vpack.c.bf16 %v1272, %v1271
  %v1320 = vpack.c.bf16 %v1274, %v1273
  %v1321 = vpack.c.bf16 %v1276, %v1275
  %v1322 = vpack.c.bf16 %v1278, %v1277
  %v1323 = vpack.c.bf16 %v1280, %v1279
  %v1324 = vpack.c.bf16 %v1282, %v1281
  %v1325 = vpack.c.bf16 %v1284, %v1283
  %v1326 = vpack.c.bf16 %v1286, %v1285
  %v1327 = vpack.c.bf16 %v1288, %v1287
  %v1328 = vpack.c.bf16 %v1290, %v1289
  %v1329 = vpack.c.bf16 %v1292, %v1291
  %v1330 = vpack.c.bf16 %v1294, %v1293
  %v1331 = vpack.c.bf16 %v1296, %v1295
  %v1332 = vpack.c.bf16 %v1298, %v1297
  %v1333 = vpack.c.bf16 %v1300, %v1299
  %v1334 = vpack.c.bf16 %v1302, %v1301
  %v1335 = vpack.c.bf16 %v1304, %v1303
  %v1336 = vpack.c.bf16 %v1306, %v1305
  %v1337 = vpack.c.bf16 %v1308, %v1307
  %v1338 = vpack.c.bf16 %v1310, %v1309
  %v1339 = vpack.c.bf16 %v1312, %v1311
  %v1340 = vpack.c.bf16 %v1314, %v1313
  %v1341 = vpack.c.bf16 %v1316, %v1315
  %v1342 = vpack.c.bf16 %v1317, %v1317
  %v1368 = vunpack.c.l.b16 %v1318
  %v1369 = vunpack.c.h.b16 %v1318
  %v1370 = vunpack.c.l.b16 %v1319
  %v1371 = vunpack.c.h.b16 %v1319
  %v1372 = vunpack.c.l.b16 %v1320
  %v1373 = vunpack.c.h.b16 %v1320
  %v1374 = vunpack.c.l.b16 %v1321
  %v1375 = vunpack.c.h.b16 %v1321
  %v1376 = vunpack.c.l.b16 %v1322
  %v1377 = vunpack.c.h.b16 %v1322
  %v1378 = vunpack.c.l.b16 %v1323
  %v1379 = vunpack.c.h.b16 %v1323
  %v1380 = vunpack.c.l.b16 %v1324
  %v1381 = vunpack.c.h.b16 %v1324
  %v1382 = vunpack.c.l.b16 %v1325
  %v1383 = vunpack.c.h.b16 %v1325
  %v1384 = vunpack.c.l.b16 %v1326
  %v1385 = vunpack.c.h.b16 %v1326
  %v1386 = vunpack.c.l.b16 %v1327
  %v1387 = vunpack.c.h.b16 %v1327
  %v1388 = vunpack.c.l.b16 %v1328
  %v1389 = vunpack.c.h.b16 %v1328
  %v1390 = vunpack.c.l.b16 %v1329
  %v1391 = vunpack.c.h.b16 %v1329
  %v1392 = vunpack.c.l.b16 %v1330
  %v1393 = vunpack.c.h.b16 %v1330
  %v1394 = vunpack.c.l.b16 %v1331
  %v1395 = vunpack.c.h.b16 %v1331
  %v1396 = vunpack.c.l.b16 %v1332
  %v1397 = vunpack.c.h.b16 %v1332
  %v1398 = vunpack.c.l.b16 %v1333
  %v1399 = vunpack.c.h.b16 %v1333
  %v1400 = vunpack.c.l.b16 %v1334
  %v1401 = vunpack.c.h.b16 %v1334
  %v1402 = vunpack.c.l.b16 %v1335
  %v1403 = vunpack.c.h.b16 %v1335
  %v1404 = vunpack.c.l.b16 %v1336
  %v1405 = vunpack.c.h.b16 %v1336
  %v1406 = vunpack.c.l.b16 %v1337
  %v1407 = vunpack.c.h.b16 %v1337
  %v1408 = vunpack.c.l.b16 %v1338
  %v1409 = vunpack.c.h.b16 %v1338
  %v1410 = vunpack.c.l.b16 %v1339
  %v1411 = vunpack.c.h.b16 %v1339
  %v1412 = vunpack.c.l.b16 %v1340
  %v1413 = vunpack.c.h.b16 %v1340
  %v1414 = vunpack.c.l.b16 %v1341
  %v1415 = vunpack.c.h.b16 %v1341
  %v1416 = vunpack.c.l.b16 %v1342
  %v1417 = vpack.c.b16 %v1368, %v1368
  %v1418 = vpack.c.b16 %v1369, %v1369
  %v1419 = vpack.c.b16 %v1370, %v1370
  %v1420 = vpack.c.b16 %v1371, %v1371
  %v1421 = vpack.c.b16 %v1372, %v1372
  %v1422 = vpack.c.b16 %v1373, %v1373
  %v1423 = vpack.c.b16 %v1374, %v1374
  %v1424 = vpack.c.b16 %v1375, %v1375
  %v1425 = vpack.c.b16 %v1376, %v1376
  %v1426 = vpack.c.b16 %v1377, %v1377
  %v1427 = vpack.c.b16 %v1378, %v1378
  %v1428 = vpack.c.b16 %v1379, %v1379
  %v1429 = vpack.c.b16 %v1380, %v1380
  %v1430 = vpack.c.b16 %v1381, %v1381
  %v1431 = vpack.c.b16 %v1382, %v1382
  %v1432 = vpack.c.b16 %v1383, %v1383
  %v1433 = vpack.c.b16 %v1384, %v1384
  %v1434 = vpack.c.b16 %v1385, %v1385
  %v1435 = vpack.c.b16 %v1386, %v1386
  %v1436 = vpack.c.b16 %v1387, %v1387
  %v1437 = vpack.c.b16 %v1388, %v1388
  %v1438 = vpack.c.b16 %v1389, %v1389
  %v1439 = vpack.c.b16 %v1390, %v1390
  %v1440 = vpack.c.b16 %v1391, %v1391
  %v1441 = vpack.c.b16 %v1392, %v1392
  %v1442 = vpack.c.b16 %v1393, %v1393
  %v1443 = vpack.c.b16 %v1394, %v1394
  %v1444 = vpack.c.b16 %v1395, %v1395
  %v1445 = vpack.c.b16 %v1396, %v1396
  %v1446 = vpack.c.b16 %v1397, %v1397
  %v1447 = vpack.c.b16 %v1398, %v1398
  %v1448 = vpack.c.b16 %v1399, %v1399
  %v1449 = vpack.c.b16 %v1400, %v1400
  %v1450 = vpack.c.b16 %v1401, %v1401
  %v1451 = vpack.c.b16 %v1402, %v1402
  %v1452 = vpack.c.b16 %v1403, %v1403
  %v1453 = vpack.c.b16 %v1404, %v1404
  %v1454 = vpack.c.b16 %v1405, %v1405
  %v1455 = vpack.c.b16 %v1406, %v1406
  %v1456 = vpack.c.b16 %v1407, %v1407
  %v1457 = vpack.c.b16 %v1408, %v1408
  %v1458 = vpack.c.b16 %v1409, %v1409
  %v1459 = vpack.c.b16 %v1410, %v1410
  %v1460 = vpack.c.b16 %v1411, %v1411
  %v1461 = vpack.c.b16 %v1412, %v1412
  %v1462 = vpack.c.b16 %v1413, %v1413
  %v1463 = vpack.c.b16 %v1414, %v1414
  %v1464 = vpack.c.b16 %v1415, %v1415
  %v1465 = vpack.c.b16 %v1416, %v1416
  %vm1515 = vcmask 519168
  %1516 = vst.msk [vmem:[%s3] sm:$0xf] %vm1515, %v1417
  %1517 = vst.msk [vmem:[%s3 + $0x4] sm:$0xf] %vm1515, %v1418
  %1518 = vst.msk [vmem:[%s3 + $0x8] sm:$0xf] %vm1515, %v1419
  %1519 = vst.msk [vmem:[%s3 + $0xc] sm:$0xf] %vm1515, %v1420
  %1520 = vst.msk [vmem:[%s3 + $0x10] sm:$0xf] %vm1515, %v1421
  %1521 = vst.msk [vmem:[%s3 + $0x14] sm:$0xf] %vm1515, %v1422
  %1522 = vst.msk [vmem:[%s3 + $0x18] sm:$0xf] %vm1515, %v1423
  %1523 = vst.msk [vmem:[%s3 + $0x1c] sm:$0xf] %vm1515, %v1424
  %1524 = vst.msk [vmem:[%s3 + $0x20] sm:$0xf] %vm1515, %v1425
  %1525 = vst.msk [vmem:[%s3 + $0x24] sm:$0xf] %vm1515, %v1426
  %1526 = vst.msk [vmem:[%s3 + $0x28] sm:$0xf] %vm1515, %v1427
  %1527 = vst.msk [vmem:[%s3 + $0x2c] sm:$0xf] %vm1515, %v1428
  %1528 = vst.msk [vmem:[%s3 + $0x30] sm:$0xf] %vm1515, %v1429
  %1529 = vst.msk [vmem:[%s3 + $0x34] sm:$0xf] %vm1515, %v1430
  %1530 = vst.msk [vmem:[%s3 + $0x38] sm:$0xf] %vm1515, %v1431
  %1531 = vst.msk [vmem:[%s3 + $0x3c] sm:$0xf] %vm1515, %v1432
  %1532 = vst.msk [vmem:[%s3 + $0x40] sm:$0xf] %vm1515, %v1433
  %1533 = vst.msk [vmem:[%s3 + $0x44] sm:$0xf] %vm1515, %v1434
  %1534 = vst.msk [vmem:[%s3 + $0x48] sm:$0xf] %vm1515, %v1435
  %1535 = vst.msk [vmem:[%s3 + $0x4c] sm:$0xf] %vm1515, %v1436
  %1536 = vst.msk [vmem:[%s3 + $0x50] sm:$0xf] %vm1515, %v1437
  %1537 = vst.msk [vmem:[%s3 + $0x54] sm:$0xf] %vm1515, %v1438
  %1538 = vst.msk [vmem:[%s3 + $0x58] sm:$0xf] %vm1515, %v1439
  %1539 = vst.msk [vmem:[%s3 + $0x5c] sm:$0xf] %vm1515, %v1440
  %1540 = vst.msk [vmem:[%s3 + $0x60] sm:$0xf] %vm1515, %v1441
  %1541 = vst.msk [vmem:[%s3 + $0x64] sm:$0xf] %vm1515, %v1442
  %1542 = vst.msk [vmem:[%s3 + $0x68] sm:$0xf] %vm1515, %v1443
  %1543 = vst.msk [vmem:[%s3 + $0x6c] sm:$0xf] %vm1515, %v1444
  %1544 = vst.msk [vmem:[%s3 + $0x70] sm:$0xf] %vm1515, %v1445
  %1545 = vst.msk [vmem:[%s3 + $0x74] sm:$0xf] %vm1515, %v1446
  %1546 = vst.msk [vmem:[%s3 + $0x78] sm:$0xf] %vm1515, %v1447
  %1547 = vst.msk [vmem:[%s3 + $0x7c] sm:$0xf] %vm1515, %v1448
  %1548 = vst.msk [vmem:[%s3 + $0x80] sm:$0xf] %vm1515, %v1449
  %1549 = vst.msk [vmem:[%s3 + $0x84] sm:$0xf] %vm1515, %v1450
  %1550 = vst.msk [vmem:[%s3 + $0x88] sm:$0xf] %vm1515, %v1451
  %1551 = vst.msk [vmem:[%s3 + $0x8c] sm:$0xf] %vm1515, %v1452
  %1552 = vst.msk [vmem:[%s3 + $0x90] sm:$0xf] %vm1515, %v1453
  %1553 = vst.msk [vmem:[%s3 + $0x94] sm:$0xf] %vm1515, %v1454
  %1554 = vst.msk [vmem:[%s3 + $0x98] sm:$0xf] %vm1515, %v1455
  %1555 = vst.msk [vmem:[%s3 + $0x9c] sm:$0xf] %vm1515, %v1456
  %1556 = vst.msk [vmem:[%s3 + $0xa0] sm:$0xf] %vm1515, %v1457
  %1557 = vst.msk [vmem:[%s3 + $0xa4] sm:$0xf] %vm1515, %v1458
  %1558 = vst.msk [vmem:[%s3 + $0xa8] sm:$0xf] %vm1515, %v1459
  %1559 = vst.msk [vmem:[%s3 + $0xac] sm:$0xf] %vm1515, %v1460
  %1560 = vst.msk [vmem:[%s3 + $0xb0] sm:$0xf] %vm1515, %v1461
  %1561 = vst.msk [vmem:[%s3 + $0xb4] sm:$0xf] %vm1515, %v1462
  %1562 = vst.msk [vmem:[%s3 + $0xb8] sm:$0xf] %vm1515, %v1463
  %1563 = vst.msk [vmem:[%s3 + $0xbc] sm:$0xf] %vm1515, %v1464
  %1564 = vst.msk [vmem:[%s3 + $0xc0] sm:$0xf] %vm1515, %v1465
  // Predicated region
  $region14: #{d2_forward.4} parent=0 // pred_check
    _
  $region15: #{d2_forward.4} parent=0 // pred_check_branch
    %1566 = sbr.rel (0) target = $region17
  $region16: #{d2_forward.4} parent=0 // pred_region
    _
  $region17: #{d2_forward.4} parent=0 // pred_fallthru
    _
  // Predicated region
  $region18: #{d2_forward.4} parent=0 // pred_check
    _
  $region19: #{d2_forward.4} parent=0 // pred_check_branch
    %1568 = sbr.rel (0) target = $region21
  $region20: #{d2_forward.4} parent=0 // pred_region
    _
  $region21: #{d2_forward.4} parent=0 // pred_fallthru
    _

// kernel: d2_forward.5
$region0: #{d2_forward.5}
  #allocation0 [shape = 'u32[]', space=smem, size = 0x4, offset = 0x4, fixed_abs, tag = 'smem constant byte address 0x4 - core index']
  #allocation1 [shape = 'u32[144,128]{1,0:T(1,128)}', space=vmem, size = 0x12000, scoped, tag = 'internal scratch']
  #allocation2 [shape = 'f32[2,256]{1,0:T(2,128)}', space=vmem, size = 0x800, scoped, tag = 'scratch operand']
  #allocation3 [shape = 'f32[1,1]{1,0:T(1,128)S(1)}', space=vmem, size = 0x200, scoped, tag = 'scoped memory for d2_forward.5']
  %s0 = inlined_call_operand.vmem [shape: bf16[2,12544], index: 0, kind: input, shape index: {}]
  %s1 = inlined_call_operand.vmem [shape: s8[12544,256], index: 1, kind: input, shape index: {}]
  %s2 = inlined_call_operand.vmem [shape: f32[1,256], index: 2, kind: input, shape index: {}]
  %s3 = inlined_call_operand.vmem [shape: f32[2,240], index: 3, kind: input, shape index: {}]
  %s4 = inlined_call_operand.vmem [shape: f32[240,256], index: 4, kind: input, shape index: {}]
  %s5 = inlined_call_operand.vmem [shape: f32[1,256], index: 5, kind: input, shape index: {}]
  %s6 = inlined_call_operand.vmem [shape: f32[1,256], index: 6, kind: input, shape index: {}]
  %s7 = inlined_call_operand.<no memory space> [shape: f32[1,1], index: 7, kind: input, shape index: {}]
  %s8 = inlined_call_operand.vmem [shape: f32[2,1], index: 8, kind: output, shape index: {}]
  %s9 = sld [smem:[#allocation0]]
  $region73: #{d2_forward.5} parent=0
    _
  %s11 = ssub.s32 1, %s9
  %s12 = scalar_select 0, %s11, %s9
  %v13 = vstv %s7
  %14 = vst [vmem:[#allocation3] sm:$0x1] %v13
  loop: start=0, step=1, limit=9
  $region2: #{d2_forward.5} parent=0 // loop_pre_header
    _
  $region3: #{d2_forward.5} parent=0 // loop_header
    %s16 = sphi 0, %s20
    %p17 = scmp.ge.s32.totalorder %s16, 9
    %s26 = sphi 0, %s28
    %s29 = sphi 0, %s26
    %s30 = sphi 0, %s29
    %s46 = sphi 0, %s30
    %s52 = sphi 0, %s54
    %s55 = sphi 0, %s52
    %s56 = sphi 0, %s55
    %s72 = sphi 0, %s56
    %s76 = sphi 0, %s76
    %s78 = sphi 0, %s76
    %s79 = sphi 0, %s78
    %s93 = sphi 0, %s79
    %s97 = sphi 0, %s97
    %s99 = sphi 0, %s97
    %s100 = sphi 0, %s99
    %s114 = sphi 0, %s100
    %s118 = sphi 0, %s118
    %s120 = sphi 0, %s118
    %s121 = sphi 0, %s120
    %s135 = sphi 0, %s121
    %s139 = sphi 0, %s139
    %s141 = sphi 0, %s139
    %s142 = sphi 0, %s141
    %s156 = sphi 0, %s142
    %s160 = sphi 0, %s160
    %s162 = sphi 0, %s160
    %s163 = sphi 0, %s162
    %s177 = sphi 0, %s163
    %s181 = sphi 0, %s181
    %s183 = sphi 0, %s181
    %s184 = sphi 0, %s183
    %s198 = sphi 0, %s184
    %s202 = sphi 0, %s202
    %s204 = sphi 0, %s202
    %s205 = sphi 0, %s204
    %s219 = sphi 0, %s205
  $region4: #{d2_forward.5} parent=0 // loop_header_branch
    %19 = sbr.rel (%p17) target = $region8
  $region5: #{d2_forward.5} parent=0 // loop_body
    %s21 = ssub.s32 %s16, 1
    %s22 = ssub.s32 %s16, 2
    %s23 = sadd.s32 %s16, 1
    %s24 = ssub.s32 %s16, %s23
    %p25 = scmp.eq.s32.totalorder %s24, 0
    %s27 = sadd.s32 %s26, 1
    %s28 = scalar_select %p25, %s26, %s27
    %p31 = pneg %p25
    %p32 = scmp.eq.s32.totalorder %s16, 6
    %p33 = por %p31, %p32
    %p34 = scmp.ne.s32.totalorder %s26, %s29
    %p35 = scmp.eq.s32.totalorder %s16, 0
    %p36 = por %p34, %p35
    %p37 = scmp.ne.s32.totalorder %s26, %s29
    %p38 = scmp.eq.s32.totalorder %s21, 6
    %p39 = por %p37, %p38
    %p40 = scmp.ne.s32.totalorder %s29, %s30
    %p41 = scmp.eq.s32.totalorder %s21, 0
    %p42 = por %p40, %p41
    %p43 = scmp.ne.s32.totalorder %s29, %s30
    %p44 = scmp.eq.s32.totalorder %s22, 6
    %p45 = por %p43, %p44
    %p47 = scmp.ne.s32.totalorder %s30, %s46
    %p48 = scmp.eq.s32.totalorder %s22, 0
    %p49 = por %p47, %p48
    %s50 = ssub.s32 %s16, %s23
    %p51 = scmp.eq.s32.totalorder %s50, 0
    %s53 = sadd.s32 %s52, 1
    %s54 = scalar_select %p51, %s52, %s53
    %p57 = pneg %p51
    %p58 = scmp.eq.s32.totalorder %s16, 6
    %p59 = por %p57, %p58
    %p60 = scmp.ne.s32.totalorder %s52, %s55
    %p61 = scmp.eq.s32.totalorder %s16, 0
    %p62 = por %p60, %p61
    %p63 = scmp.ne.s32.totalorder %s52, %s55
    %p64 = scmp.eq.s32.totalorder %s21, 6
    %p65 = por %p63, %p64
    %p66 = scmp.ne.s32.totalorder %s55, %s56
    %p67 = scmp.eq.s32.totalorder %s21, 0
    %p68 = por %p66, %p67
    %p69 = scmp.ne.s32.totalorder %s55, %s56
    %p70 = scmp.eq.s32.totalorder %s22, 6
    %p71 = por %p69, %p70
    %p73 = scmp.ne.s32.totalorder %s56, %s72
    %p74 = scmp.eq.s32.totalorder %s22, 0
    %p75 = por %p73, %p74
    %s77 = sadd.s32 %s76, 1
    %p80 = scmp.eq.s32.totalorder %s16, 6
    %p81 = scmp.ne.s32.totalorder %s76, %s78
    %p82 = scmp.eq.s32.totalorder %s16, 0
    %p83 = por %p81, %p82
    %p84 = scmp.ne.s32.totalorder %s76, %s78
    %p85 = scmp.eq.s32.totalorder %s21, 6
    %p86 = por %p84, %p85
    %p87 = scmp.ne.s32.totalorder %s78, %s79
    %p88 = scmp.eq.s32.totalorder %s21, 0
    %p89 = por %p87, %p88
    %p90 = scmp.ne.s32.totalorder %s78, %s79
    %p91 = scmp.eq.s32.totalorder %s22, 6
    %p92 = por %p90, %p91
    %p94 = scmp.ne.s32.totalorder %s79, %s93
    %p95 = scmp.eq.s32.totalorder %s22, 0
    %p96 = por %p94, %p95
    %s98 = sadd.s32 %s97, 1
    %p101 = scmp.eq.s32.totalorder %s16, 6
    %p102 = scmp.ne.s32.totalorder %s97, %s99
    %p103 = scmp.eq.s32.totalorder %s16, 0
    %p104 = por %p102, %p103
    %p105 = scmp.ne.s32.totalorder %s97, %s99
    %p106 = scmp.eq.s32.totalorder %s21, 6
    %p107 = por %p105, %p106
    %p108 = scmp.ne.s32.totalorder %s99, %s100
    %p109 = scmp.eq.s32.totalorder %s21, 0
    %p110 = por %p108, %p109
    %p111 = scmp.ne.s32.totalorder %s99, %s100
    %p112 = scmp.eq.s32.totalorder %s22, 6
    %p113 = por %p111, %p112
    %p115 = scmp.ne.s32.totalorder %s100, %s114
    %p116 = scmp.eq.s32.totalorder %s22, 0
    %p117 = por %p115, %p116
    %s119 = sadd.s32 %s118, 1
    %p122 = scmp.eq.s32.totalorder %s16, 6
    %p123 = scmp.ne.s32.totalorder %s118, %s120
    %p124 = scmp.eq.s32.totalorder %s16, 0
    %p125 = por %p123, %p124
    %p126 = scmp.ne.s32.totalorder %s118, %s120
    %p127 = scmp.eq.s32.totalorder %s21, 6
    %p128 = por %p126, %p127
    %p129 = scmp.ne.s32.totalorder %s120, %s121
    %p130 = scmp.eq.s32.totalorder %s21, 0
    %p131 = por %p129, %p130
    %p132 = scmp.ne.s32.totalorder %s120, %s121
    %p133 = scmp.eq.s32.totalorder %s22, 6
    %p134 = por %p132, %p133
    %p136 = scmp.ne.s32.totalorder %s121, %s135
    %p137 = scmp.eq.s32.totalorder %s22, 0
    %p138 = por %p136, %p137
    %s140 = sadd.s32 %s139, 1
    %p143 = scmp.eq.s32.totalorder %s16, 6
    %p144 = scmp.ne.s32.totalorder %s139, %s141
    %p145 = scmp.eq.s32.totalorder %s16, 0
    %p146 = por %p144, %p145
    %p147 = scmp.ne.s32.totalorder %s139, %s141
    %p148 = scmp.eq.s32.totalorder %s21, 6
    %p149 = por %p147, %p148
    %p150 = scmp.ne.s32.totalorder %s141, %s142
    %p151 = scmp.eq.s32.totalorder %s21, 0
    %p152 = por %p150, %p151
    %p153 = scmp.ne.s32.totalorder %s141, %s142
    %p154 = scmp.eq.s32.totalorder %s22, 6
    %p155 = por %p153, %p154
    %p157 = scmp.ne.s32.totalorder %s142, %s156
    %p158 = scmp.eq.s32.totalorder %s22, 0
    %p159 = por %p157, %p158
    %s161 = sadd.s32 %s160, 1
    %p164 = scmp.eq.s32.totalorder %s16, 6
    %p165 = scmp.ne.s32.totalorder %s160, %s162
    %p166 = scmp.eq.s32.totalorder %s16, 0
    %p167 = por %p165, %p166
    %p168 = scmp.ne.s32.totalorder %s160, %s162
    %p169 = scmp.eq.s32.totalorder %s21, 6
    %p170 = por %p168, %p169
    %p171 = scmp.ne.s32.totalorder %s162, %s163
    %p172 = scmp.eq.s32.totalorder %s21, 0
    %p173 = por %p171, %p172
    %p174 = scmp.ne.s32.totalorder %s162, %s163
    %p175 = scmp.eq.s32.totalorder %s22, 6
    %p176 = por %p174, %p175
    %p178 = scmp.ne.s32.totalorder %s163, %s177
    %p179 = scmp.eq.s32.totalorder %s22, 0
    %p180 = por %p178, %p179
    %s182 = sadd.s32 %s181, 1
    %p185 = scmp.eq.s32.totalorder %s16, 6
    %p186 = scmp.ne.s32.totalorder %s181, %s183
    %p187 = scmp.eq.s32.totalorder %s16, 0
    %p188 = por %p186, %p187
    %p189 = scmp.ne.s32.totalorder %s181, %s183
    %p190 = scmp.eq.s32.totalorder %s21, 6
    %p191 = por %p189, %p190
    %p192 = scmp.ne.s32.totalorder %s183, %s184
    %p193 = scmp.eq.s32.totalorder %s21, 0
    %p194 = por %p192, %p193
    %p195 = scmp.ne.s32.totalorder %s183, %s184
    %p196 = scmp.eq.s32.totalorder %s22, 6
    %p197 = por %p195, %p196
    %p199 = scmp.ne.s32.totalorder %s184, %s198
    %p200 = scmp.eq.s32.totalorder %s22, 0
    %p201 = por %p199, %p200
    %s203 = sadd.s32 %s202, 1
    %p206 = scmp.eq.s32.totalorder %s16, 6
    %p207 = scmp.ne.s32.totalorder %s202, %s204
    %p208 = scmp.eq.s32.totalorder %s16, 0
    %p209 = por %p207, %p208
    %p210 = scmp.ne.s32.totalorder %s202, %s204
    %p211 = scmp.eq.s32.totalorder %s21, 6
    %p212 = por %p210, %p211
    %p213 = scmp.ne.s32.totalorder %s204, %s205
    %p214 = scmp.eq.s32.totalorder %s21, 0
    %p215 = por %p213, %p214
    %p216 = scmp.ne.s32.totalorder %s204, %s205
    %p217 = scmp.eq.s32.totalorder %s22, 6
    %p218 = por %p216, %p217
    %p220 = scmp.ne.s32.totalorder %s205, %s219
    %p221 = scmp.eq.s32.totalorder %s22, 0
    %p222 = por %p220, %p221
    %p223 = scmp.le.s32.totalorder 1, %s16
    %p224 = scmp.lt.s32.totalorder %s16, 8
    %p225 = pnand %p223, %p224
    %p226 = pneg %p225
    // Predicated region
    $region9: #{d2_forward.5} parent=5 // pred_check
      _
    $region10: #{d2_forward.5} parent=5 // pred_check_branch
      %228 = sbr.rel (%p225) target = $region12
    $region11: #{d2_forward.5} parent=5 // pred_region
      %s229 = ssub.s32 %s16, 1
      // Predicated region
      $region13: #{d2_forward.5} parent=11 // pred_check
        %p230 = pneg %p89
      $region14: #{d2_forward.5} parent=11 // pred_check_branch
        %232 = sbr.rel (%p230) target = $region16
      $region15: #{d2_forward.5} parent=11 // pred_region
        _
      $region16: #{d2_forward.5} parent=11 // pred_fallthru
        _
      // Predicated region
      $region17: #{d2_forward.5} parent=11 // pred_check
        %p233 = pneg %p110
      $region18: #{d2_forward.5} parent=11 // pred_check_branch
        %235 = sbr.rel (%p233) target = $region20
      $region19: #{d2_forward.5} parent=11 // pred_region
        _
      $region20: #{d2_forward.5} parent=11 // pred_fallthru
        _
      // Predicated region
      $region21: #{d2_forward.5} parent=11 // pred_check
        %p236 = pneg %p131
      $region22: #{d2_forward.5} parent=11 // pred_check_branch
        %238 = sbr.rel (%p236) target = $region24
      $region23: #{d2_forward.5} parent=11 // pred_region
        _
      $region24: #{d2_forward.5} parent=11 // pred_fallthru
        _
      // Predicated region
      $region25: #{d2_forward.5} parent=11 // pred_check
        %p239 = pneg %p152
      $region26: #{d2_forward.5} parent=11 // pred_check_branch
        %241 = sbr.rel (%p239) target = $region28
      $region27: #{d2_forward.5} parent=11 // pred_region
        _
      $region28: #{d2_forward.5} parent=11 // pred_fallthru
        _
      // Predicated region
      $region29: #{d2_forward.5} parent=11 // pred_check
        %p242 = pneg %p173
      $region30: #{d2_forward.5} parent=11 // pred_check_branch
        %244 = sbr.rel (%p242) target = $region32
      $region31: #{d2_forward.5} parent=11 // pred_region
        _
      $region32: #{d2_forward.5} parent=11 // pred_fallthru
        _
      // Predicated region
      $region33: #{d2_forward.5} parent=11 // pred_check
        %p245 = pneg %p194
      $region34: #{d2_forward.5} parent=11 // pred_check_branch
        %247 = sbr.rel (%p245) target = $region36
      $region35: #{d2_forward.5} parent=11 // pred_region
        _
      $region36: #{d2_forward.5} parent=11 // pred_fallthru
        _
    $region12: #{d2_forward.5} parent=5 // pred_fallthru
      _
    %p248 = scmp.lt.s32.totalorder %s16, 7
    // Predicated region
    $region37: #{d2_forward.5} parent=5 // pred_check
      %p249 = pneg %p248
    $region38: #{d2_forward.5} parent=5 // pred_check_branch
      %251 = sbr.rel (%p249) target = $region40
    $region39: #{d2_forward.5} parent=5 // pred_region
      // Predicated region
      $region41: #{d2_forward.5} parent=39 // pred_check
        %p252 = pneg %p36
      $region42: #{d2_forward.5} parent=39 // pred_check_branch
        %254 = sbr.rel (%p252) target = $region44
      $region43: #{d2_forward.5} parent=39 // pred_region
        %s255 = smul.u32 14, %s16
        %p256 = scmp.lt.s32.totalorder %s255, 97
        %s257 = scalar_select %p256, %s255, 97
        %s258 = scalar_lea.vmem %s0, %s257
        %s259 = smul.u32 14, %s16
      $region44: #{d2_forward.5} parent=39 // pred_fallthru
        _
      // Predicated region
      $region45: #{d2_forward.5} parent=39 // pred_check
        %p260 = pneg %p62
      $region46: #{d2_forward.5} parent=39 // pred_check_branch
        %262 = sbr.rel (%p260) target = $region48
      $region47: #{d2_forward.5} parent=39 // pred_region
        %s263 = smul.u32 56, %s16
        %p264 = scmp.lt.s32.totalorder %s263, 391
        %s265 = scalar_select %p264, %s263, 391
        %s266 = smul.addr %s265, 2
        %s267 = smul.addr %s266, 8
        %s268 = scalar_lea.vmem %s1, %s267
        %s269 = smul.u32 56, %s16
      $region48: #{d2_forward.5} parent=39 // pred_fallthru
        _
    $region40: #{d2_forward.5} parent=5 // pred_fallthru
      _
    %p270 = scmp.le.s32.totalorder 1, %s16
    %p271 = scmp.lt.s32.totalorder %s16, 8
    %p272 = pnand %p270, %p271
    %p273 = pneg %p272
    // Predicated region
    $region49: #{d2_forward.5} parent=5 // pred_check
      _
    $region50: #{d2_forward.5} parent=5 // pred_check_branch
      %275 = sbr.rel (%p272) target = $region52
    $region51: #{d2_forward.5} parent=5 // pred_region
      %s276 = ssub.s32 %s16, 1
      %s277 = smul.u32 14, %s21
      %p278 = scmp.lt.s32.totalorder %s277, 97
      %s279 = scalar_select %p278, %s277, 97
      %s280 = scalar_lea.vmem %s0, %s279
      %p281 = pneg %p42
      %p282 = pneg %p39
      %s283 = smul.u32 56, %s21
      %p284 = scmp.lt.s32.totalorder %s283, 391
      %s285 = scalar_select %p284, %s283, 391
      %s286 = smul.addr %s285, 2
      %s287 = smul.addr %s286, 8
      %s288 = scalar_lea.vmem %s1, %s287
      %p289 = pneg %p68
      %p290 = pneg %p65
      %p291 = pneg %p89
      %p292 = pneg %p86
      %p293 = pneg %p110
      %p294 = pneg %p107
      %p295 = pneg %p131
      %p296 = pneg %p128
      %p297 = pneg %p152
      %p298 = pneg %p149
      %p299 = pneg %p173
      %p300 = pneg %p170
      %p301 = pneg %p194
      %p302 = pneg %p191
      %p303 = pneg %p215
      %p304 = pneg %p212
      %s305 = smul.u32 14, %s21
      %p306 = scmp.lt.s32.totalorder %s305, 97
      %s307 = scalar_select %p306, %s305, 97
      %s308 = scalar_lea.vmem %s0, %s307
      %s309 = smul.u32 14, %s21
      %s310 = smul.u32 56, %s21
      %p311 = scmp.lt.s32.totalorder %s310, 391
      %s312 = scalar_select %p311, %s310, 391
      %s313 = smul.addr %s312, 2
      %s314 = smul.addr %s313, 8
      %s315 = scalar_lea.vmem %s1, %s314
      %s316 = smul.u32 56, %s21
      %p317 = scmp.eq.s32.totalorder %s21, 0
      // Predicated region
      $region53: #{d2_forward.5} parent=51 // pred_check
        %p318 = pneg %p317
      $region54: #{d2_forward.5} parent=51 // pred_check_branch
        %320 = sbr.rel (%p318) target = $region56
      $region55: #{d2_forward.5} parent=51 // pred_region
        %321 = vst [vmem:[#allocation2] sm:$0xf] 0.0
      $region56: #{d2_forward.5} parent=51 // pred_fallthru
        _
      %v322 = vld [vmem:[%s315] sm:$0xff]
      %v323 = vld [vmem:[%s315 + $0x8] sm:$0xff]
      %v324 = vld [vmem:[%s315 + $0x10] sm:$0xff]
      %v325 = vld [vmem:[%s315 + $0x18] sm:$0xff]
      %v326 = vld [vmem:[%s315 + $0x20] sm:$0xff]
      %v327 = vld [vmem:[%s315 + $0x28] sm:$0xff]
      %v328 = vld [vmem:[%s315 + $0x30] sm:$0xff]
      %v329 = vld [vmem:[%s315 + $0x38] sm:$0xff]
      %v330 = vld [vmem:[%s315 + $0x40] sm:$0xff]
      %v331 = vld [vmem:[%s315 + $0x48] sm:$0xff]
      %v332 = vld [vmem:[%s315 + $0x50] sm:$0xff]
      %v333 = vld [vmem:[%s315 + $0x58] sm:$0xff]
      %v334 = vld [vmem:[%s315 + $0x60] sm:$0xff]
      %v335 = vld [vmem:[%s315 + $0x68] sm:$0xff]
      %v336 = vld [vmem:[%s315 + $0x70] sm:$0xff]
      %v337 = vld [vmem:[%s315 + $0x78] sm:$0xff]
      %v338 = vld [vmem:[%s315 + $0x80] sm:$0xff]
      %v339 = vld [vmem:[%s315 + $0x88] sm:$0xff]
      %v340 = vld [vmem:[%s315 + $0x90] sm:$0xff]
      %v341 = vld [vmem:[%s315 + $0x98] sm:$0xff]
      %v342 = vld [vmem:[%s315 + $0xa0] sm:$0xff]
      %v343 = vld [vmem:[%s315 + $0xa8] sm:$0xff]
      %v344 = vld [vmem:[%s315 + $0xb0] sm:$0xff]
      %v345 = vld [vmem:[%s315 + $0xb8] sm:$0xff]
      %v346 = vld [vmem:[%s315 + $0xc0] sm:$0xff]
      %v347 = vld [vmem:[%s315 + $0xc8] sm:$0xff]
      %v348 = vld [vmem:[%s315 + $0xd0] sm:$0xff]
      %v349 = vld [vmem:[%s315 + $0xd8] sm:$0xff]
      %v350 = vld [vmem:[%s315 + $0xe0] sm:$0xff]
      %v351 = vld [vmem:[%s315 + $0xe8] sm:$0xff]
      %v352 = vld [vmem:[%s315 + $0xf0] sm:$0xff]
      %v353 = vld [vmem:[%s315 + $0xf8] sm:$0xff]
      %v354 = vld [vmem:[%s315 + $0x100] sm:$0xff]
      %v355 = vld [vmem:[%s315 + $0x108] sm:$0xff]
      %v356 = vld [vmem:[%s315 + $0x110] sm:$0xff]
      %v357 = vld [vmem:[%s315 + $0x118] sm:$0xff]
      %v358 = vld [vmem:[%s315 + $0x120] sm:$0xff]
      %v359 = vld [vmem:[%s315 + $0x128] sm:$0xff]
      %v360 = vld [vmem:[%s315 + $0x130] sm:$0xff]
      %v361 = vld [vmem:[%s315 + $0x138] sm:$0xff]
      %v362 = vld [vmem:[%s315 + $0x140] sm:$0xff]
      %v363 = vld [vmem:[%s315 + $0x148] sm:$0xff]
      %v364 = vld [vmem:[%s315 + $0x150] sm:$0xff]
      %v365 = vld [vmem:[%s315 + $0x158] sm:$0xff]
      %v366 = vld [vmem:[%s315 + $0x160] sm:$0xff]
      %v367 = vld [vmem:[%s315 + $0x168] sm:$0xff]
      %v368 = vld [vmem:[%s315 + $0x170] sm:$0xff]
      %v369 = vld [vmem:[%s315 + $0x178] sm:$0xff]
      %v370 = vld [vmem:[%s315 + $0x180] sm:$0xff]
      %v371 = vld [vmem:[%s315 + $0x188] sm:$0xff]
      %v372 = vld [vmem:[%s315 + $0x190] sm:$0xff]
      %v373 = vld [vmem:[%s315 + $0x198] sm:$0xff]
      %v374 = vld [vmem:[%s315 + $0x1a0] sm:$0xff]
      %v375 = vld [vmem:[%s315 + $0x1a8] sm:$0xff]
      %v376 = vld [vmem:[%s315 + $0x1b0] sm:$0xff]
      %v377 = vld [vmem:[%s315 + $0x1b8] sm:$0xff]
      %v378 = vld [vmem:[%s315 + $0x1c0] sm:$0xff]
      %v379 = vld [vmem:[%s315 + $0x1c8] sm:$0xff]
      %v380 = vld [vmem:[%s315 + $0x1d0] sm:$0xff]
      %v381 = vld [vmem:[%s315 + $0x1d8] sm:$0xff]
      %v382 = vld [vmem:[%s315 + $0x1e0] sm:$0xff]
      %v383 = vld [vmem:[%s315 + $0x1e8] sm:$0xff]
      %v384 = vld [vmem:[%s315 + $0x1f0] sm:$0xff]
      %v385 = vld [vmem:[%s315 + $0x1f8] sm:$0xff]
      %v386 = vld [vmem:[%s315 + $0x200] sm:$0xff]
      %v387 = vld [vmem:[%s315 + $0x208] sm:$0xff]
      %v388 = vld [vmem:[%s315 + $0x210] sm:$0xff]
      %v389 = vld [vmem:[%s315 + $0x218] sm:$0xff]
      %v390 = vld [vmem:[%s315 + $0x220] sm:$0xff]
      %v391 = vld [vmem:[%s315 + $0x228] sm:$0xff]
      %v392 = vld [vmem:[%s315 + $0x230] sm:$0xff]
      %v393 = vld [vmem:[%s315 + $0x238] sm:$0xff]
      %v394 = vld [vmem:[%s315 + $0x240] sm:$0xff]
      %v395 = vld [vmem:[%s315 + $0x248] sm:$0xff]
      %v396 = vld [vmem:[%s315 + $0x250] sm:$0xff]
      %v397 = vld [vmem:[%s315 + $0x258] sm:$0xff]
      %v398 = vld [vmem:[%s315 + $0x260] sm:$0xff]
      %v399 = vld [vmem:[%s315 + $0x268] sm:$0xff]
      %v400 = vld [vmem:[%s315 + $0x270] sm:$0xff]
      %v401 = vld [vmem:[%s315 + $0x278] sm:$0xff]
      %v402 = vld [vmem:[%s315 + $0x280] sm:$0xff]
      %v403 = vld [vmem:[%s315 + $0x288] sm:$0xff]
      %v404 = vld [vmem:[%s315 + $0x290] sm:$0xff]
      %v405 = vld [vmem:[%s315 + $0x298] sm:$0xff]
      %v406 = vld [vmem:[%s315 + $0x2a0] sm:$0xff]
      %v407 = vld [vmem:[%s315 + $0x2a8] sm:$0xff]
      %v408 = vld [vmem:[%s315 + $0x2b0] sm:$0xff]
      %v409 = vld [vmem:[%s315 + $0x2b8] sm:$0xff]
      %v410 = vld [vmem:[%s315 + $0x2c0] sm:$0xff]
      %v411 = vld [vmem:[%s315 + $0x2c8] sm:$0xff]
      %v412 = vld [vmem:[%s315 + $0x2d0] sm:$0xff]
      %v413 = vld [vmem:[%s315 + $0x2d8] sm:$0xff]
      %v414 = vld [vmem:[%s315 + $0x2e0] sm:$0xff]
      %v415 = vld [vmem:[%s315 + $0x2e8] sm:$0xff]
      %v416 = vld [vmem:[%s315 + $0x2f0] sm:$0xff]
      %v417 = vld [vmem:[%s315 + $0x2f8] sm:$0xff]
      %v418 = vld [vmem:[%s315 + $0x300] sm:$0xff]
      %v419 = vld [vmem:[%s315 + $0x308] sm:$0xff]
      %v420 = vld [vmem:[%s315 + $0x310] sm:$0xff]
      %v421 = vld [vmem:[%s315 + $0x318] sm:$0xff]
      %v422 = vld [vmem:[%s315 + $0x320] sm:$0xff]
      %v423 = vld [vmem:[%s315 + $0x328] sm:$0xff]
      %v424 = vld [vmem:[%s315 + $0x330] sm:$0xff]
      %v425 = vld [vmem:[%s315 + $0x338] sm:$0xff]
      %v426 = vld [vmem:[%s315 + $0x340] sm:$0xff]
      %v427 = vld [vmem:[%s315 + $0x348] sm:$0xff]
      %v428 = vld [vmem:[%s315 + $0x350] sm:$0xff]
      %v429 = vld [vmem:[%s315 + $0x358] sm:$0xff]
      %v430 = vld [vmem:[%s315 + $0x360] sm:$0xff]
      %v431 = vld [vmem:[%s315 + $0x368] sm:$0xff]
      %v432 = vld [vmem:[%s315 + $0x370] sm:$0xff]
      %v433 = vld [vmem:[%s315 + $0x378] sm:$0xff]
      %v434 = vunpack.c.l.s8.bf16 %v322
      %v435 = vunpack.c.l.s8.bf16 %v323
      %v436 = vunpack.c.h.s8.bf16 %v322
      %v437 = vunpack.c.h.s8.bf16 %v323
      %v438 = vunpack.c.l.s8.bf16 %v324
      %v439 = vunpack.c.l.s8.bf16 %v325
      %v440 = vunpack.c.h.s8.bf16 %v324
      %v441 = vunpack.c.h.s8.bf16 %v325
      %v442 = vunpack.c.l.s8.bf16 %v326
      %v443 = vunpack.c.l.s8.bf16 %v327
      %v444 = vunpack.c.h.s8.bf16 %v326
      %v445 = vunpack.c.h.s8.bf16 %v327
      %v446 = vunpack.c.l.s8.bf16 %v328
      %v447 = vunpack.c.l.s8.bf16 %v329
      %v448 = vunpack.c.h.s8.bf16 %v328
      %v449 = vunpack.c.h.s8.bf16 %v329
      %v450 = vunpack.c.l.s8.bf16 %v330
      %v451 = vunpack.c.l.s8.bf16 %v331
      %v452 = vunpack.c.h.s8.bf16 %v330
      %v453 = vunpack.c.h.s8.bf16 %v331
      %v454 = vunpack.c.l.s8.bf16 %v332
      %v455 = vunpack.c.l.s8.bf16 %v333
      %v456 = vunpack.c.h.s8.bf16 %v332
      %v457 = vunpack.c.h.s8.bf16 %v333
      %v458 = vunpack.c.l.s8.bf16 %v334
      %v459 = vunpack.c.l.s8.bf16 %v335
      %v460 = vunpack.c.h.s8.bf16 %v334
      %v461 = vunpack.c.h.s8.bf16 %v335
      %v462 = vunpack.c.l.s8.bf16 %v336
      %v463 = vunpack.c.l.s8.bf16 %v337
      %v464 = vunpack.c.h.s8.bf16 %v336
      %v465 = vunpack.c.h.s8.bf16 %v337
      %v466 = vunpack.c.l.s8.bf16 %v338
      %v467 = vunpack.c.l.s8.bf16 %v339
      %v468 = vunpack.c.h.s8.bf16 %v338
      %v469 = vunpack.c.h.s8.bf16 %v339
      %v470 = vunpack.c.l.s8.bf16 %v340
      %v471 = vunpack.c.l.s8.bf16 %v341
      %v472 = vunpack.c.h.s8.bf16 %v340
      %v473 = vunpack.c.h.s8.bf16 %v341
      %v474 = vunpack.c.l.s8.bf16 %v342
      %v475 = vunpack.c.l.s8.bf16 %v343
      %v476 = vunpack.c.h.s8.bf16 %v342
      %v477 = vunpack.c.h.s8.bf16 %v343
      %v478 = vunpack.c.l.s8.bf16 %v344
      %v479 = vunpack.c.l.s8.bf16 %v345
      %v480 = vunpack.c.h.s8.bf16 %v344
      %v481 = vunpack.c.h.s8.bf16 %v345
      %v482 = vunpack.c.l.s8.bf16 %v346
      %v483 = vunpack.c.l.s8.bf16 %v347
      %v484 = vunpack.c.h.s8.bf16 %v346
      %v485 = vunpack.c.h.s8.bf16 %v347
      %v486 = vunpack.c.l.s8.bf16 %v348
      %v487 = vunpack.c.l.s8.bf16 %v349
      %v488 = vunpack.c.h.s8.bf16 %v348
      %v489 = vunpack.c.h.s8.bf16 %v349
      %v490 = vunpack.c.l.s8.bf16 %v350
      %v491 = vunpack.c.l.s8.bf16 %v351
      %v492 = vunpack.c.h.s8.bf16 %v350
      %v493 = vunpack.c.h.s8.bf16 %v351
      %v494 = vunpack.c.l.s8.bf16 %v352
      %v495 = vunpack.c.l.s8.bf16 %v353
      %v496 = vunpack.c.h.s8.bf16 %v352
      %v497 = vunpack.c.h.s8.bf16 %v353
      %v498 = vunpack.c.l.s8.bf16 %v354
      %v499 = vunpack.c.l.s8.bf16 %v355
      %v500 = vunpack.c.h.s8.bf16 %v354
      %v501 = vunpack.c.h.s8.bf16 %v355
      %v502 = vunpack.c.l.s8.bf16 %v356
      %v503 = vunpack.c.l.s8.bf16 %v357
      %v504 = vunpack.c.h.s8.bf16 %v356
      %v505 = vunpack.c.h.s8.bf16 %v357
      %v506 = vunpack.c.l.s8.bf16 %v358
      %v507 = vunpack.c.l.s8.bf16 %v359
      %v508 = vunpack.c.h.s8.bf16 %v358
      %v509 = vunpack.c.h.s8.bf16 %v359
      %v510 = vunpack.c.l.s8.bf16 %v360
      %v511 = vunpack.c.l.s8.bf16 %v361
      %v512 = vunpack.c.h.s8.bf16 %v360
      %v513 = vunpack.c.h.s8.bf16 %v361
      %v514 = vunpack.c.l.s8.bf16 %v362
      %v515 = vunpack.c.l.s8.bf16 %v363
      %v516 = vunpack.c.h.s8.bf16 %v362
      %v517 = vunpack.c.h.s8.bf16 %v363
      %v518 = vunpack.c.l.s8.bf16 %v364
      %v519 = vunpack.c.l.s8.bf16 %v365
      %v520 = vunpack.c.h.s8.bf16 %v364
      %v521 = vunpack.c.h.s8.bf16 %v365
      %v522 = vunpack.c.l.s8.bf16 %v366
      %v523 = vunpack.c.l.s8.bf16 %v367
      %v524 = vunpack.c.h.s8.bf16 %v366
      %v525 = vunpack.c.h.s8.bf16 %v367
      %v526 = vunpack.c.l.s8.bf16 %v368
      %v527 = vunpack.c.l.s8.bf16 %v369
      %v528 = vunpack.c.h.s8.bf16 %v368
      %v529 = vunpack.c.h.s8.bf16 %v369
      %v530 = vunpack.c.l.s8.bf16 %v370
      %v531 = vunpack.c.l.s8.bf16 %v371
      %v532 = vunpack.c.h.s8.bf16 %v370
      %v533 = vunpack.c.h.s8.bf16 %v371
      %v534 = vunpack.c.l.s8.bf16 %v372
      %v535 = vunpack.c.l.s8.bf16 %v373
      %v536 = vunpack.c.h.s8.bf16 %v372
      %v537 = vunpack.c.h.s8.bf16 %v373
      %v538 = vunpack.c.l.s8.bf16 %v374
      %v539 = vunpack.c.l.s8.bf16 %v375
      %v540 = vunpack.c.h.s8.bf16 %v374
      %v541 = vunpack.c.h.s8.bf16 %v375
      %v542 = vunpack.c.l.s8.bf16 %v376
      %v543 = vunpack.c.l.s8.bf16 %v377
      %v544 = vunpack.c.h.s8.bf16 %v376
      %v545 = vunpack.c.h.s8.bf16 %v377
      %v546 = vunpack.c.l.s8.bf16 %v378
      %v547 = vunpack.c.l.s8.bf16 %v379
      %v548 = vunpack.c.h.s8.bf16 %v378
      %v549 = vunpack.c.h.s8.bf16 %v379
      %v550 = vunpack.c.l.s8.bf16 %v380
      %v551 = vunpack.c.l.s8.bf16 %v381
      %v552 = vunpack.c.h.s8.bf16 %v380
      %v553 = vunpack.c.h.s8.bf16 %v381
      %v554 = vunpack.c.l.s8.bf16 %v382
      %v555 = vunpack.c.l.s8.bf16 %v383
      %v556 = vunpack.c.h.s8.bf16 %v382
      %v557 = vunpack.c.h.s8.bf16 %v383
      %v558 = vunpack.c.l.s8.bf16 %v384
      %v559 = vunpack.c.l.s8.bf16 %v385
      %v560 = vunpack.c.h.s8.bf16 %v384
      %v561 = vunpack.c.h.s8.bf16 %v385
      %v562 = vunpack.c.l.s8.bf16 %v386
      %v563 = vunpack.c.l.s8.bf16 %v387
      %v564 = vunpack.c.h.s8.bf16 %v386
      %v565 = vunpack.c.h.s8.bf16 %v387
      %v566 = vunpack.c.l.s8.bf16 %v388
      %v567 = vunpack.c.l.s8.bf16 %v389
      %v568 = vunpack.c.h.s8.bf16 %v388
      %v569 = vunpack.c.h.s8.bf16 %v389
      %v570 = vunpack.c.l.s8.bf16 %v390
      %v571 = vunpack.c.l.s8.bf16 %v391
      %v572 = vunpack.c.h.s8.bf16 %v390
      %v573 = vunpack.c.h.s8.bf16 %v391
      %v574 = vunpack.c.l.s8.bf16 %v392
      %v575 = vunpack.c.l.s8.bf16 %v393
      %v576 = vunpack.c.h.s8.bf16 %v392
      %v577 = vunpack.c.h.s8.bf16 %v393
      %v578 = vunpack.c.l.s8.bf16 %v394
      %v579 = vunpack.c.l.s8.bf16 %v395
      %v580 = vunpack.c.h.s8.bf16 %v394
      %v581 = vunpack.c.h.s8.bf16 %v395
      %v582 = vunpack.c.l.s8.bf16 %v396
      %v583 = vunpack.c.l.s8.bf16 %v397
      %v584 = vunpack.c.h.s8.bf16 %v396
      %v585 = vunpack.c.h.s8.bf16 %v397
      %v586 = vunpack.c.l.s8.bf16 %v398
      %v587 = vunpack.c.l.s8.bf16 %v399
      %v588 = vunpack.c.h.s8.bf16 %v398
      %v589 = vunpack.c.h.s8.bf16 %v399
      %v590 = vunpack.c.l.s8.bf16 %v400
      %v591 = vunpack.c.l.s8.bf16 %v401
      %v592 = vunpack.c.h.s8.bf16 %v400
      %v593 = vunpack.c.h.s8.bf16 %v401
      %v594 = vunpack.c.l.s8.bf16 %v402
      %v595 = vunpack.c.l.s8.bf16 %v403
      %v596 = vunpack.c.h.s8.bf16 %v402
      %v597 = vunpack.c.h.s8.bf16 %v403
      %v598 = vunpack.c.l.s8.bf16 %v404
      %v599 = vunpack.c.l.s8.bf16 %v405
      %v600 = vunpack.c.h.s8.bf16 %v404
      %v601 = vunpack.c.h.s8.bf16 %v405
      %v602 = vunpack.c.l.s8.bf16 %v406
      %v603 = vunpack.c.l.s8.bf16 %v407
      %v604 = vunpack.c.h.s8.bf16 %v406
      %v605 = vunpack.c.h.s8.bf16 %v407
      %v606 = vunpack.c.l.s8.bf16 %v408
      %v607 = vunpack.c.l.s8.bf16 %v409
      %v608 = vunpack.c.h.s8.bf16 %v408
      %v609 = vunpack.c.h.s8.bf16 %v409
      %v610 = vunpack.c.l.s8.bf16 %v410
      %v611 = vunpack.c.l.s8.bf16 %v411
      %v612 = vunpack.c.h.s8.bf16 %v410
      %v613 = vunpack.c.h.s8.bf16 %v411
      %v614 = vunpack.c.l.s8.bf16 %v412
      %v615 = vunpack.c.l.s8.bf16 %v413
      %v616 = vunpack.c.h.s8.bf16 %v412
      %v617 = vunpack.c.h.s8.bf16 %v413
      %v618 = vunpack.c.l.s8.bf16 %v414
      %v619 = vunpack.c.l.s8.bf16 %v415
      %v620 = vunpack.c.h.s8.bf16 %v414
      %v621 = vunpack.c.h.s8.bf16 %v415
      %v622 = vunpack.c.l.s8.bf16 %v416
      %v623 = vunpack.c.l.s8.bf16 %v417
      %v624 = vunpack.c.h.s8.bf16 %v416
      %v625 = vunpack.c.h.s8.bf16 %v417
      %v626 = vunpack.c.l.s8.bf16 %v418
      %v627 = vunpack.c.l.s8.bf16 %v419
      %v628 = vunpack.c.h.s8.bf16 %v418
      %v629 = vunpack.c.h.s8.bf16 %v419
      %v630 = vunpack.c.l.s8.bf16 %v420
      %v631 = vunpack.c.l.s8.bf16 %v421
      %v632 = vunpack.c.h.s8.bf16 %v420
      %v633 = vunpack.c.h.s8.bf16 %v421
      %v634 = vunpack.c.l.s8.bf16 %v422
      %v635 = vunpack.c.l.s8.bf16 %v423
      %v636 = vunpack.c.h.s8.bf16 %v422
      %v637 = vunpack.c.h.s8.bf16 %v423
      %v638 = vunpack.c.l.s8.bf16 %v424
      %v639 = vunpack.c.l.s8.bf16 %v425
      %v640 = vunpack.c.h.s8.bf16 %v424
      %v641 = vunpack.c.h.s8.bf16 %v425
      %v642 = vunpack.c.l.s8.bf16 %v426
      %v643 = vunpack.c.l.s8.bf16 %v427
      %v644 = vunpack.c.h.s8.bf16 %v426
      %v645 = vunpack.c.h.s8.bf16 %v427
      %v646 = vunpack.c.l.s8.bf16 %v428
      %v647 = vunpack.c.l.s8.bf16 %v429
      %v648 = vunpack.c.h.s8.bf16 %v428
      %v649 = vunpack.c.h.s8.bf16 %v429
      %v650 = vunpack.c.l.s8.bf16 %v430
      %v651 = vunpack.c.l.s8.bf16 %v431
      %v652 = vunpack.c.h.s8.bf16 %v430
      %v653 = vunpack.c.h.s8.bf16 %v431
      %v654 = vunpack.c.l.s8.bf16 %v432
      %v655 = vunpack.c.l.s8.bf16 %v433
      %v656 = vunpack.c.h.s8.bf16 %v432
      %v657 = vunpack.c.h.s8.bf16 %v433
      %v658 = vld [vmem:[#allocation2] sm:$0xf]
      %v659 = vld [vmem:[%s308] sm:$0xff]
      %v660 = vld [vmem:[%s308 + $0x8] sm:$0x3f]
      %v663 = vcombine.high %v659, %v659
      %v665 = vunpack.c.l.s4 1966171168
      %v666 = vunpack.c.0.s8 %v665
      %v667 = vlaneseq
      %v668 = vshrl.u32 %v667, 7
      %v669 = vsub.s32 %v666, %v668
      %v670 = vrot.slane %v659, %v669
      %v672 = vunpack.c.l.s4 1966171168
      %v673 = vunpack.c.0.s8 %v672
      %v674 = vlaneseq
      %v675 = vshrl.u32 %v674, 7
      %v676 = vsub.s32 %v673, %v675
      %v677 = vrot.slane %v663, %v676
      %v678 = vcombine.high %v670, %v670
      %v679 = vcombine.high %v677, %v677
      %v681 = vunpack.c.l.s4 1966171168
      %v682 = vunpack.c.0.s8 %v681
      %v683 = vlaneseq
      %v684 = vshrl.u32 %v683, 7
      %v685 = vsub.s32 %v682, %v684
      %v686 = vrot.slane %v670, %v685
      %v688 = vunpack.c.l.s4 1966171168
      %v689 = vunpack.c.0.s8 %v688
      %v690 = vlaneseq
      %v691 = vshrl.u32 %v690, 7
      %v692 = vsub.s32 %v689, %v691
      %v693 = vrot.slane %v677, %v692
      %v695 = vunpack.c.l.s4 1966171168
      %v696 = vunpack.c.0.s8 %v695
      %v697 = vlaneseq
      %v698 = vshrl.u32 %v697, 7
      %v699 = vsub.s32 %v696, %v698
      %v700 = vrot.slane %v678, %v699
      %v702 = vunpack.c.l.s4 1966171168
      %v703 = vunpack.c.0.s8 %v702
      %v704 = vlaneseq
      %v705 = vshrl.u32 %v704, 7
      %v706 = vsub.s32 %v703, %v705
      %v707 = vrot.slane %v679, %v706
      %v708 = vcombine.high %v686, %v686
      %v709 = vcombine.high %v693, %v693
      %v710 = vcombine.high %v700, %v700
      %v711 = vcombine.high %v707, %v707
      %v712 = vcombine.high %v660, %v660
      %v714 = vunpack.c.l.s4 1966171168
      %v715 = vunpack.c.0.s8 %v714
      %v716 = vlaneseq
      %v717 = vshrl.u32 %v716, 7
      %v718 = vsub.s32 %v715, %v717
      %v719 = vrot.slane %v660, %v718
      %v721 = vunpack.c.l.s4 1966171168
      %v722 = vunpack.c.0.s8 %v721
      %v723 = vlaneseq
      %v724 = vshrl.u32 %v723, 7
      %v725 = vsub.s32 %v722, %v724
      %v726 = vrot.slane %v712, %v725
      %v727 = vcombine.high %v719, %v719
      %v728 = vcombine.high %v726, %v726
      %v730 = vunpack.c.l.s4 1966171168
      %v731 = vunpack.c.0.s8 %v730
      %v732 = vlaneseq
      %v733 = vshrl.u32 %v732, 7
      %v734 = vsub.s32 %v731, %v733
      %v735 = vrot.slane %v719, %v734
      %v737 = vunpack.c.l.s4 1966171168
      %v738 = vunpack.c.0.s8 %v737
      %v739 = vlaneseq
      %v740 = vshrl.u32 %v739, 7
      %v741 = vsub.s32 %v738, %v740
      %v742 = vrot.slane %v726, %v741
      %v744 = vunpack.c.l.s4 1966171168
      %v745 = vunpack.c.0.s8 %v744
      %v746 = vlaneseq
      %v747 = vshrl.u32 %v746, 7
      %v748 = vsub.s32 %v745, %v747
      %v749 = vrot.slane %v727, %v748
      %v751 = vunpack.c.l.s4 1966171168
      %v752 = vunpack.c.0.s8 %v751
      %v753 = vlaneseq
      %v754 = vshrl.u32 %v753, 7
      %v755 = vsub.s32 %v752, %v754
      %v756 = vrot.slane %v728, %v755
      %v757 = vcombine.high %v735, %v735
      %v758 = vcombine.high %v749, %v749
      %773 = vmatprep.subr.bf16.mxu0 %v449
      %774 = vmatpush1.bf16.msra.mxu0 %v448
      %775 = vmatprep.subr.bf16.mxu0 %v447
      %776 = vmatpush1.bf16.msra.mxu0 %v446
      %777 = vmatprep.subr.bf16.mxu0 %v445
      %778 = vmatpush1.bf16.msra.mxu0 %v444
      %779 = vmatprep.subr.bf16.mxu0 %v443
      %780 = vmatpush1.bf16.msra.mxu0 %v442
      %781 = vmatprep.subr.bf16.mxu0 %v441
      %782 = vmatpush1.bf16.msra.mxu0 %v440
      %783 = vmatprep.subr.bf16.mxu0 %v439
      %784 = vmatpush1.bf16.msra.mxu0 %v438
      %785 = vmatprep.subr.bf16.mxu0 %v437
      %786 = vmatpush1.bf16.msra.mxu0 %v436
      %787 = vmatprep.subr.bf16.mxu0 %v435
      %788 = vmatpush1.bf16.msra.mxu0 %v434
      %789 = vmatprep.subr.bf16.mxu0 %v465
      %790 = vmatpush2.bf16.msra.mxu0 %v464
      %791 = vmatprep.subr.bf16.mxu0 %v463
      %792 = vmatpush2.bf16.msra.mxu0 %v462
      %793 = vmatprep.subr.bf16.mxu0 %v461
      %794 = vmatpush2.bf16.msra.mxu0 %v460
      %795 = vmatprep.subr.bf16.mxu0 %v459
      %796 = vmatpush2.bf16.msra.mxu0 %v458
      %797 = vmatprep.subr.bf16.mxu0 %v457
      %798 = vmatpush2.bf16.msra.mxu0 %v456
      %799 = vmatprep.subr.bf16.mxu0 %v455
      %800 = vmatpush2.bf16.msra.mxu0 %v454
      %801 = vmatprep.subr.bf16.mxu0 %v453
      %802 = vmatpush2.bf16.msra.mxu0 %v452
      %803 = vmatprep.subr.bf16.mxu0 %v451
      %804 = vmatpush2.bf16.msra.mxu0 %v450
      %805 = vmatprep.mubr.bf16.mxu0 %v700
      %806 = vmatmul.mubr.bf16.gmra.mxu0 %v686
      %v807 = vpop.f32.mrf.mxu0
      %v808 = vadd.f32 0.0, %v807
      %v809 = vpop.f32.mrf.mxu0
      %v810 = vadd.f32 0.0, %v809
      %v811 = vpop.f32.mrf.mxu0
      %v812 = vpop.f32.mrf.mxu0
      %813 = vdwg.mxu0
      %814 = vmatprep.subr.bf16.mxu0 %v481
      %815 = vmatpush1.bf16.msra.mxu0 %v480
      %816 = vmatprep.subr.bf16.mxu0 %v479
      %817 = vmatpush1.bf16.msra.mxu0 %v478
      %818 = vmatprep.subr.bf16.mxu0 %v477
      %819 = vmatpush1.bf16.msra.mxu0 %v476
      %820 = vmatprep.subr.bf16.mxu0 %v475
      %821 = vmatpush1.bf16.msra.mxu0 %v474
      %822 = vmatprep.subr.bf16.mxu0 %v473
      %823 = vmatpush1.bf16.msra.mxu0 %v472
      %824 = vmatprep.subr.bf16.mxu0 %v471
      %825 = vmatpush1.bf16.msra.mxu0 %v470
      %826 = vmatprep.subr.bf16.mxu0 %v469
      %827 = vmatpush1.bf16.msra.mxu0 %v468
      %828 = vmatprep.subr.bf16.mxu0 %v467
      %829 = vmatpush1.bf16.msra.mxu0 %v466
      %830 = vmatprep.subr.bf16.mxu0 %v497
      %831 = vmatpush2.bf16.msra.mxu0 %v496
      %832 = vmatprep.subr.bf16.mxu0 %v495
      %833 = vmatpush2.bf16.msra.mxu0 %v494
      %834 = vmatprep.subr.bf16.mxu0 %v493
      %835 = vmatpush2.bf16.msra.mxu0 %v492
      %836 = vmatprep.subr.bf16.mxu0 %v491
      %837 = vmatpush2.bf16.msra.mxu0 %v490
      %838 = vmatprep.subr.bf16.mxu0 %v489
      %839 = vmatpush2.bf16.msra.mxu0 %v488
      %840 = vmatprep.subr.bf16.mxu0 %v487
      %841 = vmatpush2.bf16.msra.mxu0 %v486
      %842 = vmatprep.subr.bf16.mxu0 %v485
      %843 = vmatpush2.bf16.msra.mxu0 %v484
      %844 = vmatprep.subr.bf16.mxu0 %v483
      %845 = vmatpush2.bf16.msra.mxu0 %v482
      %846 = vmatprep.mubr.bf16.mxu0 %v710
      %847 = vmatmul.mubr.bf16.gmra.mxu0 %v708
      %v848 = vpop.f32.mrf.mxu0
      %v849 = vadd.f32 %v808, %v848
      %v850 = vpop.f32.mrf.mxu0
      %v851 = vadd.f32 %v810, %v850
      %v852 = vpop.f32.mrf.mxu0
      %v853 = vpop.f32.mrf.mxu0
      %854 = vdwg.mxu0
      %855 = vmatprep.subr.bf16.mxu0 %v513
      %856 = vmatpush1.bf16.msra.mxu0 %v512
      %857 = vmatprep.subr.bf16.mxu0 %v511
      %858 = vmatpush1.bf16.msra.mxu0 %v510
      %859 = vmatprep.subr.bf16.mxu0 %v509
      %860 = vmatpush1.bf16.msra.mxu0 %v508
      %861 = vmatprep.subr.bf16.mxu0 %v507
      %862 = vmatpush1.bf16.msra.mxu0 %v506
      %863 = vmatprep.subr.bf16.mxu0 %v505
      %864 = vmatpush1.bf16.msra.mxu0 %v504
      %865 = vmatprep.subr.bf16.mxu0 %v503
      %866 = vmatpush1.bf16.msra.mxu0 %v502
      %867 = vmatprep.subr.bf16.mxu0 %v501
      %868 = vmatpush1.bf16.msra.mxu0 %v500
      %869 = vmatprep.subr.bf16.mxu0 %v499
      %870 = vmatpush1.bf16.msra.mxu0 %v498
      %871 = vmatprep.subr.bf16.mxu0 %v529
      %872 = vmatpush2.bf16.msra.mxu0 %v528
      %873 = vmatprep.subr.bf16.mxu0 %v527
      %874 = vmatpush2.bf16.msra.mxu0 %v526
      %875 = vmatprep.subr.bf16.mxu0 %v525
      %876 = vmatpush2.bf16.msra.mxu0 %v524
      %877 = vmatprep.subr.bf16.mxu0 %v523
      %878 = vmatpush2.bf16.msra.mxu0 %v522
      %879 = vmatprep.subr.bf16.mxu0 %v521
      %880 = vmatpush2.bf16.msra.mxu0 %v520
      %881 = vmatprep.subr.bf16.mxu0 %v519
      %882 = vmatpush2.bf16.msra.mxu0 %v518
      %883 = vmatprep.subr.bf16.mxu0 %v517
      %884 = vmatpush2.bf16.msra.mxu0 %v516
      %885 = vmatprep.subr.bf16.mxu0 %v515
      %886 = vmatpush2.bf16.msra.mxu0 %v514
      %887 = vmatprep.mubr.bf16.mxu0 %v707
      %888 = vmatmul.mubr.bf16.gmra.mxu0 %v693
      %v889 = vpop.f32.mrf.mxu0
      %v890 = vadd.f32 %v849, %v889
      %v891 = vpop.f32.mrf.mxu0
      %v892 = vadd.f32 %v851, %v891
      %v893 = vpop.f32.mrf.mxu0
      %v894 = vpop.f32.mrf.mxu0
      %895 = vdwg.mxu0
      %896 = vmatprep.subr.bf16.mxu0 %v545
      %897 = vmatpush1.bf16.msra.mxu0 %v544
      %898 = vmatprep.subr.bf16.mxu0 %v543
      %899 = vmatpush1.bf16.msra.mxu0 %v542
      %900 = vmatprep.subr.bf16.mxu0 %v541
      %901 = vmatpush1.bf16.msra.mxu0 %v540
      %902 = vmatprep.subr.bf16.mxu0 %v539
      %903 = vmatpush1.bf16.msra.mxu0 %v538
      %904 = vmatprep.subr.bf16.mxu0 %v537
      %905 = vmatpush1.bf16.msra.mxu0 %v536
      %906 = vmatprep.subr.bf16.mxu0 %v535
      %907 = vmatpush1.bf16.msra.mxu0 %v534
      %908 = vmatprep.subr.bf16.mxu0 %v533
      %909 = vmatpush1.bf16.msra.mxu0 %v532
      %910 = vmatprep.subr.bf16.mxu0 %v531
      %911 = vmatpush1.bf16.msra.mxu0 %v530
      %912 = vmatprep.subr.bf16.mxu0 %v561
      %913 = vmatpush2.bf16.msra.mxu0 %v560
      %914 = vmatprep.subr.bf16.mxu0 %v559
      %915 = vmatpush2.bf16.msra.mxu0 %v558
      %916 = vmatprep.subr.bf16.mxu0 %v557
      %917 = vmatpush2.bf16.msra.mxu0 %v556
      %918 = vmatprep.subr.bf16.mxu0 %v555
      %919 = vmatpush2.bf16.msra.mxu0 %v554
      %920 = vmatprep.subr.bf16.mxu0 %v553
      %921 = vmatpush2.bf16.msra.mxu0 %v552
      %922 = vmatprep.subr.bf16.mxu0 %v551
      %923 = vmatpush2.bf16.msra.mxu0 %v550
      %924 = vmatprep.subr.bf16.mxu0 %v549
      %925 = vmatpush2.bf16.msra.mxu0 %v548
      %926 = vmatprep.subr.bf16.mxu0 %v547
      %927 = vmatpush2.bf16.msra.mxu0 %v546
      %928 = vmatprep.mubr.bf16.mxu0 %v711
      %929 = vmatmul.mubr.bf16.gmra.mxu0 %v709
      %v930 = vpop.f32.mrf.mxu0
      %v931 = vadd.f32 %v890, %v930
      %v932 = vpop.f32.mrf.mxu0
      %v933 = vadd.f32 %v892, %v932
      %v934 = vpop.f32.mrf.mxu0
      %v935 = vpop.f32.mrf.mxu0
      %936 = vdwg.mxu0
      %937 = vmatprep.subr.bf16.mxu0 %v577
      %938 = vmatpush1.bf16.msra.mxu0 %v576
      %939 = vmatprep.subr.bf16.mxu0 %v575
      %940 = vmatpush1.bf16.msra.mxu0 %v574
      %941 = vmatprep.subr.bf16.mxu0 %v573
      %942 = vmatpush1.bf16.msra.mxu0 %v572
      %943 = vmatprep.subr.bf16.mxu0 %v571
      %944 = vmatpush1.bf16.msra.mxu0 %v570
      %945 = vmatprep.subr.bf16.mxu0 %v569
      %946 = vmatpush1.bf16.msra.mxu0 %v568
      %947 = vmatprep.subr.bf16.mxu0 %v567
      %948 = vmatpush1.bf16.msra.mxu0 %v566
      %949 = vmatprep.subr.bf16.mxu0 %v565
      %950 = vmatpush1.bf16.msra.mxu0 %v564
      %951 = vmatprep.subr.bf16.mxu0 %v563
      %952 = vmatpush1.bf16.msra.mxu0 %v562
      %953 = vmatprep.subr.bf16.mxu0 %v593
      %954 = vmatpush2.bf16.msra.mxu0 %v592
      %955 = vmatprep.subr.bf16.mxu0 %v591
      %956 = vmatpush2.bf16.msra.mxu0 %v590
      %957 = vmatprep.subr.bf16.mxu0 %v589
      %958 = vmatpush2.bf16.msra.mxu0 %v588
      %959 = vmatprep.subr.bf16.mxu0 %v587
      %960 = vmatpush2.bf16.msra.mxu0 %v586
      %961 = vmatprep.subr.bf16.mxu0 %v585
      %962 = vmatpush2.bf16.msra.mxu0 %v584
      %963 = vmatprep.subr.bf16.mxu0 %v583
      %964 = vmatpush2.bf16.msra.mxu0 %v582
      %965 = vmatprep.subr.bf16.mxu0 %v581
      %966 = vmatpush2.bf16.msra.mxu0 %v580
      %967 = vmatprep.subr.bf16.mxu0 %v579
      %968 = vmatpush2.bf16.msra.mxu0 %v578
      %969 = vmatprep.mubr.bf16.mxu0 %v749
      %970 = vmatmul.mubr.bf16.gmra.mxu0 %v735
      %v971 = vpop.f32.mrf.mxu0
      %v972 = vadd.f32 %v931, %v971
      %v973 = vpop.f32.mrf.mxu0
      %v974 = vadd.f32 %v933, %v973
      %v975 = vpop.f32.mrf.mxu0
      %v976 = vpop.f32.mrf.mxu0
      %977 = vdwg.mxu0
      %978 = vmatprep.subr.bf16.mxu0 %v609
      %979 = vmatpush1.bf16.msra.mxu0 %v608
      %980 = vmatprep.subr.bf16.mxu0 %v607
      %981 = vmatpush1.bf16.msra.mxu0 %v606
      %982 = vmatprep.subr.bf16.mxu0 %v605
      %983 = vmatpush1.bf16.msra.mxu0 %v604
      %984 = vmatprep.subr.bf16.mxu0 %v603
      %985 = vmatpush1.bf16.msra.mxu0 %v602
      %986 = vmatprep.subr.bf16.mxu0 %v601
      %987 = vmatpush1.bf16.msra.mxu0 %v600
      %988 = vmatprep.subr.bf16.mxu0 %v599
      %989 = vmatpush1.bf16.msra.mxu0 %v598
      %990 = vmatprep.subr.bf16.mxu0 %v597
      %991 = vmatpush1.bf16.msra.mxu0 %v596
      %992 = vmatprep.subr.bf16.mxu0 %v595
      %993 = vmatpush1.bf16.msra.mxu0 %v594
      %994 = vmatprep.subr.bf16.mxu0 %v625
      %995 = vmatpush2.bf16.msra.mxu0 %v624
      %996 = vmatprep.subr.bf16.mxu0 %v623
      %997 = vmatpush2.bf16.msra.mxu0 %v622
      %998 = vmatprep.subr.bf16.mxu0 %v621
      %999 = vmatpush2.bf16.msra.mxu0 %v620
      %1000 = vmatprep.subr.bf16.mxu0 %v619
      %1001 = vmatpush2.bf16.msra.mxu0 %v618
      %1002 = vmatprep.subr.bf16.mxu0 %v617
      %1003 = vmatpush2.bf16.msra.mxu0 %v616
      %1004 = vmatprep.subr.bf16.mxu0 %v615
      %1005 = vmatpush2.bf16.msra.mxu0 %v614
      %1006 = vmatprep.subr.bf16.mxu0 %v613
      %1007 = vmatpush2.bf16.msra.mxu0 %v612
      %1008 = vmatprep.subr.bf16.mxu0 %v611
      %1009 = vmatpush2.bf16.msra.mxu0 %v610
      %1010 = vmatprep.mubr.bf16.mxu0 %v758
      %1011 = vmatmul.mubr.bf16.gmra.mxu0 %v757
      %v1012 = vpop.f32.mrf.mxu0
      %v1013 = vadd.f32 %v972, %v1012
      %v1014 = vpop.f32.mrf.mxu0
      %v1015 = vadd.f32 %v974, %v1014
      %v1016 = vpop.f32.mrf.mxu0
      %v1017 = vpop.f32.mrf.mxu0
      %1018 = vdwg.mxu0
      %1019 = vmatprep.subr.bf16.mxu0 %v641
      %1020 = vmatpush1.bf16.msra.mxu0 %v640
      %1021 = vmatprep.subr.bf16.mxu0 %v639
      %1022 = vmatpush1.bf16.msra.mxu0 %v638
      %1023 = vmatprep.subr.bf16.mxu0 %v637
      %1024 = vmatpush1.bf16.msra.mxu0 %v636
      %1025 = vmatprep.subr.bf16.mxu0 %v635
      %1026 = vmatpush1.bf16.msra.mxu0 %v634
      %1027 = vmatprep.subr.bf16.mxu0 %v633
      %1028 = vmatpush1.bf16.msra.mxu0 %v632
      %1029 = vmatprep.subr.bf16.mxu0 %v631
      %1030 = vmatpush1.bf16.msra.mxu0 %v630
      %1031 = vmatprep.subr.bf16.mxu0 %v629
      %1032 = vmatpush1.bf16.msra.mxu0 %v628
      %1033 = vmatprep.subr.bf16.mxu0 %v627
      %1034 = vmatpush1.bf16.msra.mxu0 %v626
      %1035 = vmatprep.subr.bf16.mxu0 %v657
      %1036 = vmatpush2.bf16.msra.mxu0 %v656
      %1037 = vmatprep.subr.bf16.mxu0 %v655
      %1038 = vmatpush2.bf16.msra.mxu0 %v654
      %1039 = vmatprep.subr.bf16.mxu0 %v653
      %1040 = vmatpush2.bf16.msra.mxu0 %v652
      %1041 = vmatprep.subr.bf16.mxu0 %v651
      %1042 = vmatpush2.bf16.msra.mxu0 %v650
      %1043 = vmatprep.subr.bf16.mxu0 %v649
      %1044 = vmatpush2.bf16.msra.mxu0 %v648
      %1045 = vmatprep.subr.bf16.mxu0 %v647
      %1046 = vmatpush2.bf16.msra.mxu0 %v646
      %1047 = vmatprep.subr.bf16.mxu0 %v645
      %1048 = vmatpush2.bf16.msra.mxu0 %v644
      %1049 = vmatprep.subr.bf16.mxu0 %v643
      %1050 = vmatpush2.bf16.msra.mxu0 %v642
      %1051 = vmatprep.mubr.bf16.mxu0 %v756
      %1052 = vmatmul.mubr.bf16.gmra.mxu0 %v742
      %v1053 = vpop.f32.mrf.mxu0
      %v1054 = vadd.f32 %v1013, %v1053
      %v1055 = vpop.f32.mrf.mxu0
      %v1056 = vadd.f32 %v1015, %v1055
      %v1057 = vpop.f32.mrf.mxu0
      %v1058 = vpop.f32.mrf.mxu0
      %1059 = vdwg.mxu0
      %v1062 = vcombine.low %v1054, %v1056
      %v1064 = vunpack.c.l.s4 1983009808
      %v1065 = vunpack.c.0.s8 %v1064
      %v1066 = vlaneseq
      %v1067 = vshrl.u32 %v1066, 7
      %v1068 = vsub.s32 %v1065, %v1067
      %v1069 = vrot.slane %v1062, %v1068
      %v1071 = vadd.f32 %v658, %v1069
      %1072 = vst [vmem:[#allocation2] sm:$0xf] %v1071
      %p1073 = scmp.eq.s32.totalorder %s21, 6
      // Predicated region
      $region57: #{d2_forward.5} parent=51 // pred_check
        %p1074 = pneg %p1073
      $region58: #{d2_forward.5} parent=51 // pred_check_branch
        %1076 = sbr.rel (%p1074) target = $region60
      $region59: #{d2_forward.5} parent=51 // pred_region
        %v1077 = vld [vmem:[#allocation2] sm:$0xf]
        %v1078 = vld [vmem:[%s2] sm:$0x3]
        %v1080 = vlaneseq
        %v1081 = vshrl.u32 %v1080, 7
        %v1082 = vsub.s32 0, %v1081
        %v1083 = vrot.slane %v1078, %v1082
        %v1084 = vlaneseq
        %v1085 = vshrl.u32 %v1084, 7
        %v1086 = vsub.s32 1, %v1085
        %v1087 = vrot.slane %v1078, %v1086
        %v1088 = vcombine.low %v1083, %v1087
        %v1090 = vunpack.c.l.s4 1983009808
        %v1091 = vunpack.c.0.s8 %v1090
        %v1092 = vlaneseq
        %v1093 = vshrl.u32 %v1092, 7
        %v1094 = vsub.s32 %v1091, %v1093
        %v1095 = vrot.slane %v1088, %v1094
        %v1097 = vmul.f32 %v1077, %v1095
        %v1098 = vld [vmem:[%s3] sm:$0xf]
        %v1099 = vld [vmem:[%s4] sm:$0xff]
        %v1100 = vld [vmem:[%s4 + $0x8] sm:$0xff]
        %v1101 = vld [vmem:[%s4 + $0x10] sm:$0xff]
        %v1102 = vld [vmem:[%s4 + $0x18] sm:$0xff]
        %v1103 = vld [vmem:[%s4 + $0x20] sm:$0xff]
        %v1104 = vld [vmem:[%s4 + $0x28] sm:$0xff]
        %v1105 = vld [vmem:[%s4 + $0x30] sm:$0xff]
        %v1106 = vld [vmem:[%s4 + $0x38] sm:$0xff]
        %v1107 = vld [vmem:[%s4 + $0x40] sm:$0xff]
        %v1108 = vld [vmem:[%s4 + $0x48] sm:$0xff]
        %v1109 = vld [vmem:[%s4 + $0x50] sm:$0xff]
        %v1110 = vld [vmem:[%s4 + $0x58] sm:$0xff]
        %v1111 = vld [vmem:[%s4 + $0x60] sm:$0xff]
        %v1112 = vld [vmem:[%s4 + $0x68] sm:$0xff]
        %v1113 = vld [vmem:[%s4 + $0x70] sm:$0xff]
        %v1114 = vld [vmem:[%s4 + $0x78] sm:$0xff]
        %v1115 = vld [vmem:[%s4 + $0x80] sm:$0xff]
        %v1116 = vld [vmem:[%s4 + $0x88] sm:$0xff]
        %v1117 = vld [vmem:[%s4 + $0x90] sm:$0xff]
        %v1118 = vld [vmem:[%s4 + $0x98] sm:$0xff]
        %v1119 = vld [vmem:[%s4 + $0xa0] sm:$0xff]
        %v1120 = vld [vmem:[%s4 + $0xa8] sm:$0xff]
        %v1121 = vld [vmem:[%s4 + $0xb0] sm:$0xff]
        %v1122 = vld [vmem:[%s4 + $0xb8] sm:$0xff]
        %v1123 = vld [vmem:[%s4 + $0xc0] sm:$0xff]
        %v1124 = vld [vmem:[%s4 + $0xc8] sm:$0xff]
        %v1125 = vld [vmem:[%s4 + $0xd0] sm:$0xff]
        %v1126 = vld [vmem:[%s4 + $0xd8] sm:$0xff]
        %v1127 = vld [vmem:[%s4 + $0xe0] sm:$0xff]
        %v1128 = vld [vmem:[%s4 + $0xe8] sm:$0xff]
        %v1129 = vld [vmem:[%s4 + $0xf0] sm:$0xff]
        %v1130 = vld [vmem:[%s4 + $0xf8] sm:$0xff]
        %v1131 = vld [vmem:[%s4 + $0x100] sm:$0xff]
        %v1132 = vld [vmem:[%s4 + $0x108] sm:$0xff]
        %v1133 = vld [vmem:[%s4 + $0x110] sm:$0xff]
        %v1134 = vld [vmem:[%s4 + $0x118] sm:$0xff]
        %v1135 = vld [vmem:[%s4 + $0x120] sm:$0xff]
        %v1136 = vld [vmem:[%s4 + $0x128] sm:$0xff]
        %v1137 = vld [vmem:[%s4 + $0x130] sm:$0xff]
        %v1138 = vld [vmem:[%s4 + $0x138] sm:$0xff]
        %v1139 = vld [vmem:[%s4 + $0x140] sm:$0xff]
        %v1140 = vld [vmem:[%s4 + $0x148] sm:$0xff]
        %v1141 = vld [vmem:[%s4 + $0x150] sm:$0xff]
        %v1142 = vld [vmem:[%s4 + $0x158] sm:$0xff]
        %v1143 = vld [vmem:[%s4 + $0x160] sm:$0xff]
        %v1144 = vld [vmem:[%s4 + $0x168] sm:$0xff]
        %v1145 = vld [vmem:[%s4 + $0x170] sm:$0xff]
        %v1146 = vld [vmem:[%s4 + $0x178] sm:$0xff]
        %v1147 = vld [vmem:[%s4 + $0x180] sm:$0xff]
        %v1148 = vld [vmem:[%s4 + $0x188] sm:$0xff]
        %v1149 = vld [vmem:[%s4 + $0x190] sm:$0xff]
        %v1150 = vld [vmem:[%s4 + $0x198] sm:$0xff]
        %v1151 = vld [vmem:[%s4 + $0x1a0] sm:$0xff]
        %v1152 = vld [vmem:[%s4 + $0x1a8] sm:$0xff]
        %v1153 = vld [vmem:[%s4 + $0x1b0] sm:$0xff]
        %v1154 = vld [vmem:[%s4 + $0x1b8] sm:$0xff]
        %v1155 = vld [vmem:[%s4 + $0x1c0] sm:$0xff]
        %v1156 = vld [vmem:[%s4 + $0x1c8] sm:$0xff]
        %v1157 = vld [vmem:[%s4 + $0x1d0] sm:$0xff]
        %v1158 = vld [vmem:[%s4 + $0x1d8] sm:$0xff]
        %v1161 = vunpack.c.l.s4 1983009808
        %v1162 = vunpack.c.0.s8 %v1161
        %v1163 = vlaneseq
        %v1164 = vshrl.u32 %v1163, 7
        %v1165 = vsub.s32 %v1162, %v1164
        %v1166 = vrot.slane %v1098, %v1165
        %v1167 = vcombine.high %v1166, %v1166
        %vm1169 = vcmask 916480
        %v1170 = vsel %vm1169, %v1167, 0
        %1172 = vmatprep.subr.mxu0 %v1130
        %1173 = vmatpush1.msra.mxu0 %v1129
        %1174 = vmatprep.subr.mxu0 %v1128
        %1175 = vmatpush1.msra.mxu0 %v1127
        %1176 = vmatprep.subr.mxu0 %v1126
        %1177 = vmatpush1.msra.mxu0 %v1125
        %1178 = vmatprep.subr.mxu0 %v1124
        %1179 = vmatpush1.msra.mxu0 %v1123
        %1180 = vmatprep.subr.mxu0 %v1122
        %1181 = vmatpush1.msra.mxu0 %v1121
        %1182 = vmatprep.subr.mxu0 %v1120
        %1183 = vmatpush1.msra.mxu0 %v1119
        %1184 = vmatprep.subr.mxu0 %v1118
        %1185 = vmatpush1.msra.mxu0 %v1117
        %1186 = vmatprep.subr.mxu0 %v1116
        %1187 = vmatpush1.msra.mxu0 %v1115
        %1188 = vmatprep.subr.mxu0 %v1114
        %1189 = vmatpush1.msra.mxu0 %v1113
        %1190 = vmatprep.subr.mxu0 %v1112
        %1191 = vmatpush1.msra.mxu0 %v1111
        %1192 = vmatprep.subr.mxu0 %v1110
        %1193 = vmatpush1.msra.mxu0 %v1109
        %1194 = vmatprep.subr.mxu0 %v1108
        %1195 = vmatpush1.msra.mxu0 %v1107
        %1196 = vmatprep.subr.mxu0 %v1106
        %1197 = vmatpush1.msra.mxu0 %v1105
        %1198 = vmatprep.subr.mxu0 %v1104
        %1199 = vmatpush1.msra.mxu0 %v1103
        %1200 = vmatprep.subr.mxu0 %v1102
        %1201 = vmatpush1.msra.mxu0 %v1101
        %1202 = vmatprep.subr.mxu0 %v1100
        %1203 = vmatpush1.msra.mxu0 %v1099
        %1204 = vmatprep.subr.mxu0 0.0
        %1205 = vmatpush2.msra.mxu0 0.0
        %1206 = vmatprep.subr.mxu0 0.0
        %1207 = vmatpush2.msra.mxu0 0.0
        %1208 = vmatprep.subr.mxu0 %v1158
        %1209 = vmatpush2.msra.mxu0 %v1157
        %1210 = vmatprep.subr.mxu0 %v1156
        %1211 = vmatpush2.msra.mxu0 %v1155
        %1212 = vmatprep.subr.mxu0 %v1154
        %1213 = vmatpush2.msra.mxu0 %v1153
        %1214 = vmatprep.subr.mxu0 %v1152
        %1215 = vmatpush2.msra.mxu0 %v1151
        %1216 = vmatprep.subr.mxu0 %v1150
        %1217 = vmatpush2.msra.mxu0 %v1149
        %1218 = vmatprep.subr.mxu0 %v1148
        %1219 = vmatpush2.msra.mxu0 %v1147
        %1220 = vmatprep.subr.mxu0 %v1146
        %1221 = vmatpush2.msra.mxu0 %v1145
        %1222 = vmatprep.subr.mxu0 %v1144
        %1223 = vmatpush2.msra.mxu0 %v1143
        %1224 = vmatprep.subr.mxu0 %v1142
        %1225 = vmatpush2.msra.mxu0 %v1141
        %1226 = vmatprep.subr.mxu0 %v1140
        %1227 = vmatpush2.msra.mxu0 %v1139
        %1228 = vmatprep.subr.mxu0 %v1138
        %1229 = vmatpush2.msra.mxu0 %v1137
        %1230 = vmatprep.subr.mxu0 %v1136
        %1231 = vmatpush2.msra.mxu0 %v1135
        %1232 = vmatprep.subr.mxu0 %v1134
        %1233 = vmatpush2.msra.mxu0 %v1133
        %1234 = vmatprep.subr.mxu0 %v1132
        %1235 = vmatpush2.msra.mxu0 %v1131
        %1236 = vmatprep.mubr.f32.mxu0 %v1170
        %1237 = vmatmul.mubr.f32.gmra.mxu0 %v1166
        %v1238 = vpop.f32.mrf.mxu0
        %v1239 = vadd.f32 0.0, %v1238
        %v1240 = vpop.f32.mrf.mxu0
        %v1241 = vadd.f32 0.0, %v1240
        %1242 = vdwg.mxu0
        %v1245 = vcombine.low %v1239, %v1241
        %v1247 = vunpack.c.l.s4 1983009808
        %v1248 = vunpack.c.0.s8 %v1247
        %v1249 = vlaneseq
        %v1250 = vshrl.u32 %v1249, 7
        %v1251 = vsub.s32 %v1248, %v1250
        %v1252 = vrot.slane %v1245, %v1251
        %v1254 = vadd.f32 %v1097, %v1252
        %v1255 = vld [vmem:[%s5] sm:$0x3]
        %v1257 = vlaneseq
        %v1258 = vshrl.u32 %v1257, 7
        %v1259 = vsub.s32 0, %v1258
        %v1260 = vrot.slane %v1255, %v1259
        %v1261 = vlaneseq
        %v1262 = vshrl.u32 %v1261, 7
        %v1263 = vsub.s32 1, %v1262
        %v1264 = vrot.slane %v1255, %v1263
        %v1265 = vcombine.low %v1260, %v1264
        %v1267 = vunpack.c.l.s4 1983009808
        %v1268 = vunpack.c.0.s8 %v1267
        %v1269 = vlaneseq
        %v1270 = vshrl.u32 %v1269, 7
        %v1271 = vsub.s32 %v1268, %v1270
        %v1272 = vrot.slane %v1265, %v1271
        %v1274 = vadd.f32 %v1254, %v1272
        %vm1275 = vcmp.ge.f32.partialorder %v1274, 0.0
        %v1276 = vmul.f32 %v1274, 0.01
        %v1277 = vsel %vm1275, %v1274, %v1276
        %v1278 = vld [vmem:[%s6] sm:$0x3]
        %v1280 = vlaneseq
        %v1281 = vshrl.u32 %v1280, 7
        %v1282 = vsub.s32 0, %v1281
        %v1283 = vrot.slane %v1278, %v1282
        %v1284 = vlaneseq
        %v1285 = vshrl.u32 %v1284, 7
        %v1286 = vsub.s32 1, %v1285
        %v1287 = vrot.slane %v1278, %v1286
        %v1288 = vcombine.low %v1283, %v1287
        %v1290 = vunpack.c.l.s4 1983009808
        %v1291 = vunpack.c.0.s8 %v1290
        %v1292 = vlaneseq
        %v1293 = vshrl.u32 %v1292, 7
        %v1294 = vsub.s32 %v1291, %v1293
        %v1295 = vrot.slane %v1288, %v1294
        %v1297 = vmul.f32 %v1277, %v1295
        %v1300 = vunpack.c.l.s4 1983009808
        %v1301 = vunpack.c.0.s8 %v1300
        %v1302 = vlaneseq
        %v1303 = vshrl.u32 %v1302, 7
        %v1304 = vsub.s32 %v1301, %v1303
        %v1305 = vrot.slane %v1297, %v1304
        %v1306 = vcombine.high %v1305, %v1305
        %vm1309 = vcmask 1041408
        %v1310 = vsel %vm1309, %v1305, 0.0
        %v1311 = vsel %vm1309, %v1306, 0.0
        %v1312 = vadd.f32 %v1310, %v1311
        %1313 = vadd.xlane.f32.xlu0 %v1312
        %v1314 = vpop.xlane.xlu0 %1313
        %v1315 = vld [vmem:[#allocation3] sm:$0x1]
        %v1317 = vlaneseq
        %v1318 = vshrl.u32 %v1317, 7
        %v1319 = vsub.s32 0, %v1318
        %v1320 = vrot.slane %v1315, %v1319
        %v1322 = vadd.f32 %v1314, %v1320
        %v1323 = vsub.f32 0.0, %v1322
        %v1324 = vmul.f32 %v1323, 1.442695
        %v1325 = vpow.pop %v1324
        %v1326 = vadd.f32 %v1325, 1.0
        %v1327 = vrcp.pop %v1326
        %v1328 = vmul.f32 1.0, %v1327
        %vm1329 = vcmask 1024
        %1330 = vst.msk [vmem:[%s8] sm:$0x3] %vm1329, %v1328
      $region60: #{d2_forward.5} parent=51 // pred_fallthru
        _
      // Predicated region
      $region61: #{d2_forward.5} parent=51 // pred_check
        %p1331 = pneg %p212
      $region62: #{d2_forward.5} parent=51 // pred_check_branch
        %1333 = sbr.rel (%p1331) target = $region64
      $region63: #{d2_forward.5} parent=51 // pred_region
        _
      $region64: #{d2_forward.5} parent=51 // pred_fallthru
        _
      // Predicated region
      $region65: #{d2_forward.5} parent=51 // pred_check
        %p1334 = pneg %p212
      $region66: #{d2_forward.5} parent=51 // pred_check_branch
        %1336 = sbr.rel (%p1334) target = $region68
      $region67: #{d2_forward.5} parent=51 // pred_region
        _
      $region68: #{d2_forward.5} parent=51 // pred_fallthru
        _
    $region52: #{d2_forward.5} parent=5 // pred_fallthru
      _
    %p1337 = scmp.le.s32.totalorder 2, %s16
    // Predicated region
    $region69: #{d2_forward.5} parent=5 // pred_check
      %p1338 = pneg %p1337
    $region70: #{d2_forward.5} parent=5 // pred_check_branch
      %1340 = sbr.rel (%p1338) target = $region72
    $region71: #{d2_forward.5} parent=5 // pred_region
      %s1341 = ssub.s32 %s16, 2
    $region72: #{d2_forward.5} parent=5 // pred_fallthru
      _
  $region6: #{d2_forward.5} parent=0 // loop_footer
    %s20 = sadd.s32 1, %s16
  $region7: #{d2_forward.5} parent=0 // loop_footer_branch
    %15 = sbr.rel target = $region3
  $region8: #{d2_forward.5} parent=0 // loop_exit
    _

</llo_original>
